<compile_context>
chip_gen: v6e
topology: v6e:2x2x1
jax: 0.10.0
libtpu: 0.0.40
codegen_flags: <defaults>
</compile_context>

<pallas_src>
import functools

import jax
import jax.numpy as jnp
from jax import lax
from jax.experimental import pallas as pl
from jax.experimental.pallas import tpu as pltpu


# ----------------------------------------------------------------------------- kernel


def _lstm_disc_kernel(Tc, Bt, Hp, nchunks, unroll,
                      xf_ref, xb_ref,                      # (1, Tc*Bt, Vp) fwd / mirrored chunk
                      wih_f_ref, wih_b_ref,                # (Vp, 4Hp)
                      b_f_ref, b_b_ref,                    # (1, 4Hp) f32 (b_ih + b_hh)
                      whh_f_ref, whh_b_ref,                # (Hp, 4Hp)
                      fc1_wf_ref, fc1_wb_ref, fc1_b_ref,   # (Hp, F1), (Hp, F1), (1, F1)
                      fc2_w_ref, fc2_b_ref,                # (F1, 1), (1, 1)
                      out_ref,                             # (Bt, 1)
                      gxf_ref, gxb_ref,                    # (Tc*Bt, 4Hp) scratch
                      hf_ref, cf_ref, hb_ref, cb_ref):     # (Bt, Hp) f32 state scratch
    f32 = jnp.float32
    mm_dtype = wih_f_ref.dtype            # storage dtype used for MXU operands
    t_chunk = pl.program_id(1)

    # ---- init recurrent state at the first time chunk of each batch tile ----
    @pl.when(t_chunk == 0)
    def _():
        hf_ref[...] = jnp.zeros_like(hf_ref)
        cf_ref[...] = jnp.zeros_like(cf_ref)
        hb_ref[...] = jnp.zeros_like(hb_ref)
        cb_ref[...] = jnp.zeros_like(cb_ref)

    # ---- phase 1: chunk input projection, one MXU matmul per direction, bias folded in ----
    xf = xf_ref[0].astype(mm_dtype)                        # (Tc*Bt, Vp), time-major rows
    xb = xb_ref[0].astype(mm_dtype)
    gxf_ref[...] = (jnp.dot(xf, wih_f_ref[...], preferred_element_type=f32)
                    + b_f_ref[...]).astype(gxf_ref.dtype)
    gxb_ref[...] = (jnp.dot(xb, wih_b_ref[...], preferred_element_type=f32)
                    + b_b_ref[...]).astype(gxb_ref.dtype)

    # ---- phase 2: recurrence over the chunk; h/c live in registers inside the chunk ----
    def cell(gates, c):
        # gate layout [ i | f | o | g ], each Hp wide (Hp % 128 == 0 -> lane-aligned slices)
        ifo = jax.nn.sigmoid(gates[:, :3 * Hp])
        g_g = jnp.tanh(gates[:, 3 * Hp:])
        i_g = ifo[:, :Hp]
        f_g = ifo[:, Hp:2 * Hp]
        o_g = ifo[:, 2 * Hp:]
        c = f_g * c + i_g * g_g
        h = o_g * jnp.tanh(c)
        return h, c

    def step(s, carry):
        hf, cf, hb, cb = carry
        rf = pl.multiple_of(s * Bt, Bt)                    # fwd: local time s
        rb = pl.multiple_of((Tc - 1 - s) * Bt, Bt)         # bwd: local time Tc-1-s of mirrored chunk
        gf = (gxf_ref[pl.ds(rf, Bt), :].astype(f32)
              + jnp.dot(hf.astype(mm_dtype), whh_f_ref[...], preferred_element_type=f32))
        gb = (gxb_ref[pl.ds(rb, Bt), :].astype(f32)
              + jnp.dot(hb.astype(mm_dtype), whh_b_ref[...], preferred_element_type=f32))
        hf, cf = cell(gf, cf)
        hb, cb = cell(gb, cb)
        return hf, cf, hb, cb

    carry0 = (hf_ref[...], cf_ref[...], hb_ref[...], cb_ref[...])
    hf, cf, hb, cb = lax.fori_loop(0, Tc, step, carry0, unroll=unroll)
    hf_ref[...] = hf
    cf_ref[...] = cf
    hb_ref[...] = hb
    cb_ref[...] = cb

    # ---- phase 3: heads, only on the last time chunk (h = [h_fwd | h_bwd] via split fc1) ----
    @pl.when(t_chunk == nchunks - 1)
    def _():
        z1 = jnp.maximum(
            jnp.dot(hf.astype(mm_dtype), fc1_wf_ref[...], preferred_element_type=f32)
            + jnp.dot(hb.astype(mm_dtype), fc1_wb_ref[...], preferred_element_type=f32)
            + fc1_b_ref[...], 0.0)
        # TODO(synk): nn.Dropout(0.3) is identity at inference; a training path would need
        #             pltpu.prng_seed / pltpu.prng_random_bits masking here.
        z2 = (jnp.dot(z1.astype(mm_dtype), fc2_w_ref[...], preferred_element_type=f32)
              + fc2_b_ref[...])
        out_ref[...] = jax.nn.sigmoid(z2)


# ----------------------------------------------------------------------------- weight prep


def _round_up(n, m):
    return ((n + m - 1) // m) * m


def _largest_divisor_leq(n, cap):
    best = 1
    for c in range(1, min(n, cap) + 1):
        if n % c == 0:
            best = c
    return best


def _perm_pad_gates(w, H, Hp):
    """(..., 4H) in PyTorch gate order (i, f, g, o) -> (..., 4Hp) in order (i, f, o, g),
    each gate block zero-padded from H to Hp columns (padded gates stay inert: h_pad == 0)."""
    i, f, g, o = jnp.split(w, 4, axis=-1)
    pad = [(0, 0)] * (w.ndim - 1) + [(0, Hp - H)]
    return jnp.concatenate([jnp.pad(blk, pad) for blk in (i, f, o, g)], axis=-1)


def _prepare_weights(params, H, Hp, V, Vp, dtype):
    def direction(sfx):
        wih = _perm_pad_gates(params["wih_" + sfx], H, Hp)            # (V, 4Hp)
        wih = jnp.pad(wih, ((0, Vp - V), (0, 0)))                     # (Vp, 4Hp)
        whh = _perm_pad_gates(params["whh_" + sfx], H, Hp)            # (H, 4Hp)
        whh = jnp.pad(whh, ((0, Hp - H), (0, 0)))                     # (Hp, 4Hp)
        b = _perm_pad_gates(params["b_" + sfx], H, Hp)                # (1, 4Hp)
        return wih.astype(dtype), whh.astype(dtype), b.astype(jnp.float32)

    wih_f, whh_f, b_f = direction("f")
    wih_b, whh_b, b_b = direction("b")

    F1 = params["fc1_w"].shape[1]
    fc1_wf = jnp.zeros((Hp, F1), jnp.float32).at[:H].set(params["fc1_w"][:H])
    fc1_wb = jnp.zeros((Hp, F1), jnp.float32).at[:H].set(params["fc1_w"][H:])
    return dict(
        wih_f=wih_f, wih_b=wih_b, whh_f=whh_f, whh_b=whh_b, b_f=b_f, b_b=b_b,
        fc1_wf=fc1_wf.astype(dtype), fc1_wb=fc1_wb.astype(dtype),
        fc1_b=params["fc1_b"].astype(jnp.float32),
        fc2_w=params["fc2_w"].astype(dtype),
        fc2_b=params["fc2_b"].astype(jnp.float32),
    )


# ----------------------------------------------------------------------------- wrapper


@functools.partial(jax.jit, static_argnames=("chunk_len", "batch_tile", "storage_dtype"))
def lstm_discriminator(x, params, *, chunk_len=None, batch_tile=None,
                       storage_dtype=jnp.float32):
    """x: (B, T, V) float32 -> (B, 1) float32 probability (eval mode)."""
    B, T, V = x.shape
    H = params["whh_f"].shape[0]
    F1 = params["fc1_w"].shape[1]

    Hp = _round_up(H, 128)        # lane-aligned gate blocks (all per-step slices are 128-multiples)
    Vp = _round_up(V, 8)

    Bp0 = _round_up(B, 8)                                  # f32 sublane tile
    Bt = batch_tile if batch_tile is not None else min(Bp0, 64)
    Bt = _round_up(Bt, 8)
    Bp = _round_up(Bp0, Bt)
    nbt = Bp // Bt

    Tc = chunk_len if chunk_len is not None else _largest_divisor_leq(T, 16)
    if T % Tc != 0:
        raise ValueError(f"chunk_len={Tc} must divide seq_len={T}")
    nchunks = T // Tc
    unroll = max(1, min(Tc, 8))

    w = _prepare_weights(params, H, Hp, V, Vp, storage_dtype)

    # Lay x out time-major inside each batch tile: (B, T, V) -> (nbt, T*Bt, Vp).
    # TODO(synk): x is tiny for DNA (V=4); for large V read (B,T,V) directly with a strided
    #             in-kernel DMA instead of this wrapper-side transpose/pad.
    xt = jnp.transpose(x, (1, 0, 2))                            # (T, B, V)
    xt = jnp.pad(xt, ((0, 0), (0, Bp - B), (0, Vp - V)))        # (T, Bp, Vp)
    xr = (xt.reshape(T, nbt, Bt, Vp).transpose(1, 0, 2, 3)
            .reshape(nbt, T * Bt, Vp).astype(storage_dtype))

    # VMEM budget derived from the actual buffers, capped for v7x's 64 MiB physical VMEM.
    sb = jnp.dtype(storage_dtype).itemsize
    est = (2 * 2 * Tc * Bt * Vp * sb                    # fwd/bwd x chunks, double-buffered
           + 2 * Tc * Bt * 4 * Hp * sb                  # fwd/bwd gate-chunk scratch
           + 2 * (Vp + Hp) * 4 * Hp * sb * 2            # wih / whh (both directions)
           + (2 * Hp * F1 + F1) * sb * 2                # fc weights
           + (2 * 4 * Hp + F1 + 2) * 4 * 2              # biases (f32)
           + 4 * Bt * Hp * 4                            # h/c state scratch
           + Bt * 4 * 2)                                # output tile
    vmem_limit = int(min(max(2 * est + (8 << 20), 32 << 20), 56 << 20))

    kernel = functools.partial(_lstm_disc_kernel, Tc, Bt, Hp, nchunks, unroll)

    def _full(arr):
        nd = arr.ndim
        return pl.BlockSpec(arr.shape, lambda b, t, _nd=nd: (0,) * _nd)

    x_fwd_spec = pl.BlockSpec((1, Tc * Bt, Vp), lambda b, t: (b, t, 0))
    x_bwd_spec = pl.BlockSpec((1, Tc * Bt, Vp), lambda b, t: (b, nchunks - 1 - t, 0))

    out = pl.pallas_call(
        kernel,
        out_shape=jax.ShapeDtypeStruct((Bp, 1), jnp.float32),
        grid_spec=pltpu.PrefetchScalarGridSpec(
            num_scalar_prefetch=0,
            grid=(nbt, nchunks),
            in_specs=[x_fwd_spec, x_bwd_spec,
                      _full(w["wih_f"]), _full(w["wih_b"]),
                      _full(w["b_f"]), _full(w["b_b"]),
                      _full(w["whh_f"]), _full(w["whh_b"]),
                      _full(w["fc1_wf"]), _full(w["fc1_wb"]), _full(w["fc1_b"]),
                      _full(w["fc2_w"]), _full(w["fc2_b"])],
            out_specs=pl.BlockSpec((Bt, 1), lambda b, t: (b, 0)),
            scratch_shapes=[
                pltpu.VMEM((Tc * Bt, 4 * Hp), storage_dtype),   # fwd gate chunk
                pltpu.VMEM((Tc * Bt, 4 * Hp), storage_dtype),   # bwd gate chunk
                pltpu.VMEM((Bt, Hp), jnp.float32),              # h_fwd
                pltpu.VMEM((Bt, Hp), jnp.float32),              # c_fwd
                pltpu.VMEM((Bt, Hp), jnp.float32),              # h_bwd
                pltpu.VMEM((Bt, Hp), jnp.float32),              # c_bwd
            ]),
        compiler_params=pltpu.CompilerParams(
            dimension_semantics=("parallel", "arbitrary"),
            vmem_limit_bytes=vmem_limit),
    )(xr, xr,
      w["wih_f"], w["wih_b"], w["b_f"], w["b_b"], w["whh_f"], w["whh_b"],
      w["fc1_wf"], w["fc1_wb"], w["fc1_b"], w["fc2_w"], w["fc2_b"])
    return out[:B]


# ----------------------------------------------------------------------------- params / reference


def init_params(key, vocab_size, hidden_dim, fc1_out=256):
    """Deterministic synthetic parameters (PyTorch-like uniform(-1/sqrt(H), 1/sqrt(H)))."""
    H, V = hidden_dim, vocab_size
    bound = 1.0 / jnp.sqrt(jnp.float32(H))
    ks = jax.random.split(key, 12)
    u = lambda k, shape: jax.random.uniform(k, shape, jnp.float32, -bound, bound)
    return {
        # forward direction (weights stored transposed: x @ W), gate order (i, f, g, o)
        "wih_f": u(ks[0], (V, 4 * H)),
        "whh_f": u(ks[1], (H, 4 * H)),
        "b_f": (u(ks[2], (1, 4 * H)) + u(ks[3], (1, 4 * H))),   # b_ih + b_hh
        # backward direction
        "wih_b": u(ks[4], (V, 4 * H)),
        "whh_b": u(ks[5], (H, 4 * H)),
        "b_b": (u(ks[6], (1, 4 * H)) + u(ks[7], (1, 4 * H))),
        # heads
        "fc1_w": u(ks[8], (2 * H, fc1_out)),
        "fc1_b": u(ks[9], (1, fc1_out)),
        "fc2_w": u(ks[10], (fc1_out, 1)),
        "fc2_b": u(ks[11], (1, 1)),
    }


def reference_forward(x, params):
    """Pure-JAX reference replicating the PyTorch forward (eval mode)."""
    H = params["whh_f"].shape[0]

    def cell(carry, xt, wih, whh, b):
        h, c = carry
        gates = xt @ wih + h @ whh + b
        i = jax.nn.sigmoid(gates[:, 0:H])
        f = jax.nn.sigmoid(gates[:, H:2 * H])
        g = jnp.tanh(gates[:, 2 * H:3 * H])
        o = jax.nn.sigmoid(gates[:, 3 * H:4 * H])
        c = f * c + i * g
        h = o * jnp.tanh(c)
        return (h, c), None

    B, T, V = x.shape
    h0 = jnp.zeros((B, H), jnp.float32)
    c0 = jnp.zeros((B, H), jnp.float32)
    (hf, _), _ = lax.scan(
        lambda carry, xt: cell(carry, xt, params["wih_f"], params["whh_f"], params["b_f"]),
        (h0, c0), jnp.transpose(x, (1, 0, 2)))
    (hb, _), _ = lax.scan(
        lambda carry, xt: cell(carry, xt, params["wih_b"], params["whh_b"], params["b_b"]),
        (h0, c0), jnp.transpose(x, (1, 0, 2))[::-1])
    hidden = jnp.concatenate([hf, hb], axis=1)
    z1 = jnp.maximum(hidden @ params["fc1_w"] + params["fc1_b"], 0.0)
    return jax.nn.sigmoid(z1 @ params["fc2_w"] + params["fc2_b"])


# ----------------------------------------------------------------------------- test


if __name__ == "__main__":
    # small shapes consistent with the module: (batch, seq_len, vocab_size)
    B, T, V, H = 2, 8, 4, 32
    key = jax.random.PRNGKey(0)
    k_x, k_x2, k_p = jax.random.split(key, 3)

    # soft one-hot DNA input, as produced by a gumbel-softmax generator
    x = jax.nn.softmax(jax.random.normal(k_x, (B, T, V), jnp.float32), axis=-1)
    params = init_params(k_p, vocab_size=V, hidden_dim=H, fc1_out=256)

    # main check: 2 time chunks (exercises state carry + mirrored bwd chunk indexing)
    out = jax.block_until_ready(lstm_discriminator(x, params, chunk_len=4))
    ref = reference_forward(x, params)
    assert out.shape == (B, 1), out.shape
    assert jnp.all(jnp.isfinite(out))
    assert jnp.allclose(out, ref, rtol=1e-4, atol=1e-4), (out, ref)

    # multi batch-tile + multi time-chunk path: grid (2, 4), padded batch rows discarded
    B2 = 10
    x2 = jax.nn.softmax(jax.random.normal(k_x2, (B2, T, V), jnp.float32), axis=-1)
    out2 = jax.block_until_ready(
        lstm_discriminator(x2, params, chunk_len=2, batch_tile=8))
    ref2 = reference_forward(x2, params)
    assert out2.shape == (B2, 1), out2.shape
    assert jnp.allclose(out2, ref2, rtol=1e-4, atol=1e-4), (out2, ref2)

    # bf16-storage path (x / gate chunks / matmul weights bf16, f32 state & accumulation)
    out_bf16 = jax.block_until_ready(
        lstm_discriminator(x, params, chunk_len=4, storage_dtype=jnp.bfloat16))
    assert jnp.all(jnp.isfinite(out_bf16))
    assert jnp.allclose(out_bf16, ref, rtol=0.0, atol=0.1), (out_bf16, ref)

    print("KERNEL_OK")
</pallas_src>

<mosaic_0001>
module attributes {stable_mosaic.version = 11 : i64} {
  func.func @_lstm_disc_kernel(%arg0: i32, %arg1: i32, %arg2: memref<1x32x8xf32, #tpu.memory_space<vmem>>, %arg3: memref<1x32x8xf32, #tpu.memory_space<vmem>>, %arg4: memref<8x512xf32, #tpu.memory_space<vmem>>, %arg5: memref<8x512xf32, #tpu.memory_space<vmem>>, %arg6: memref<1x512xf32, #tpu.memory_space<vmem>>, %arg7: memref<1x512xf32, #tpu.memory_space<vmem>>, %arg8: memref<128x512xf32, #tpu.memory_space<vmem>>, %arg9: memref<128x512xf32, #tpu.memory_space<vmem>>, %arg10: memref<128x256xf32, #tpu.memory_space<vmem>>, %arg11: memref<128x256xf32, #tpu.memory_space<vmem>>, %arg12: memref<1x256xf32, #tpu.memory_space<vmem>>, %arg13: memref<256x1xf32, #tpu.memory_space<vmem>>, %arg14: memref<1x1xf32, #tpu.memory_space<vmem>>, %arg15: memref<8x1xf32, #tpu.memory_space<vmem>>, %arg16: memref<32x512xf32, #tpu.memory_space<vmem>>, %arg17: memref<32x512xf32, #tpu.memory_space<vmem>>, %arg18: memref<8x128xf32, #tpu.memory_space<vmem>>, %arg19: memref<8x128xf32, #tpu.memory_space<vmem>>, %arg20: memref<8x128xf32, #tpu.memory_space<vmem>>, %arg21: memref<8x128xf32, #tpu.memory_space<vmem>>) attributes {dimension_semantics = [#tpu.dimension_semantics<parallel>, #tpu.dimension_semantics<arbitrary>], iteration_bounds = array<i64: 1, 2>, scalar_prefetch = 0 : i64, scratch_operands = 6 : i64, tpu.core_type = #tpu.core_type<tc>, window_params = [{transform_indices = @transform_0, window_bounds = array<i64: 1, 32, 8>}, {transform_indices = @transform_1, window_bounds = array<i64: 1, 32, 8>}, {pipeline_mode = #tpu.pipeline_mode<synchronous>, transform_indices = @transform_2, window_bounds = array<i64: 8, 512>}, {pipeline_mode = #tpu.pipeline_mode<synchronous>, transform_indices = @transform_3, window_bounds = array<i64: 8, 512>}, {pipeline_mode = #tpu.pipeline_mode<synchronous>, transform_indices = @transform_4, window_bounds = array<i64: 1, 512>}, {pipeline_mode = #tpu.pipeline_mode<synchronous>, transform_indices = @transform_5, window_bounds = array<i64: 1, 512>}, {pipeline_mode = #tpu.pipeline_mode<synchronous>, transform_indices = @transform_6, window_bounds = array<i64: 128, 512>}, {pipeline_mode = #tpu.pipeline_mode<synchronous>, transform_indices = @transform_7, window_bounds = array<i64: 128, 512>}, {pipeline_mode = #tpu.pipeline_mode<synchronous>, transform_indices = @transform_8, window_bounds = array<i64: 128, 256>}, {pipeline_mode = #tpu.pipeline_mode<synchronous>, transform_indices = @transform_9, window_bounds = array<i64: 128, 256>}, {pipeline_mode = #tpu.pipeline_mode<synchronous>, transform_indices = @transform_10, window_bounds = array<i64: 1, 256>}, {pipeline_mode = #tpu.pipeline_mode<synchronous>, transform_indices = @transform_11, window_bounds = array<i64: 256, 1>}, {pipeline_mode = #tpu.pipeline_mode<synchronous>, transform_indices = @transform_12, window_bounds = array<i64: 1, 1>}, {transform_indices = @transform_13, window_bounds = array<i64: 8, 1>}]} {
    %c0_i32 = arith.constant 0 : i32
    %0 = arith.cmpi eq, %arg1, %c0_i32 : i32
    %1 = arith.extui %0 : i1 to i32
    %c0_i32_0 = arith.constant 0 : i32
    %2 = arith.cmpi ne, %1, %c0_i32_0 : i32
    scf.if %2 {
      %cst_89 = arith.constant 0.000000e+00 : f32
      %218 = vector.broadcast %cst_89 : f32 to vector<8x128xf32>
      %c0_90 = arith.constant 0 : index
      %c0_91 = arith.constant 0 : index
      %219 = vector.load %arg18[%c0_90, %c0_91] : memref<8x128xf32, #tpu.memory_space<vmem>>, vector<8x128xf32>
      tpu.vector_store %arg18[%c0_90, %c0_91], %218 {strides = array<i32>} : memref<8x128xf32, #tpu.memory_space<vmem>>, vector<8x128xf32>,
      %cst_92 = arith.constant 0.000000e+00 : f32
      %220 = vector.broadcast %cst_92 : f32 to vector<8x128xf32>
      %c0_93 = arith.constant 0 : index
      %c0_94 = arith.constant 0 : index
      %221 = vector.load %arg19[%c0_93, %c0_94] : memref<8x128xf32, #tpu.memory_space<vmem>>, vector<8x128xf32>
      tpu.vector_store %arg19[%c0_93, %c0_94], %220 {strides = array<i32>} : memref<8x128xf32, #tpu.memory_space<vmem>>, vector<8x128xf32>,
      %cst_95 = arith.constant 0.000000e+00 : f32
      %222 = vector.broadcast %cst_95 : f32 to vector<8x128xf32>
      %c0_96 = arith.constant 0 : index
      %c0_97 = arith.constant 0 : index
      %223 = vector.load %arg20[%c0_96, %c0_97] : memref<8x128xf32, #tpu.memory_space<vmem>>, vector<8x128xf32>
      tpu.vector_store %arg20[%c0_96, %c0_97], %222 {strides = array<i32>} : memref<8x128xf32, #tpu.memory_space<vmem>>, vector<8x128xf32>,
      %cst_98 = arith.constant 0.000000e+00 : f32
      %224 = vector.broadcast %cst_98 : f32 to vector<8x128xf32>
      %c0_99 = arith.constant 0 : index
      %c0_100 = arith.constant 0 : index
      %225 = vector.load %arg21[%c0_99, %c0_100] : memref<8x128xf32, #tpu.memory_space<vmem>>, vector<8x128xf32>
      tpu.vector_store %arg21[%c0_99, %c0_100], %224 {strides = array<i32>} : memref<8x128xf32, #tpu.memory_space<vmem>>, vector<8x128xf32>,
    } else {
    }
    %c0 = arith.constant 0 : index
    %c0_1 = arith.constant 0 : index
    %c0_2 = arith.constant 0 : index
    %3 = vector.load %arg2[%c0, %c0_1, %c0_2] : memref<1x32x8xf32, #tpu.memory_space<vmem>>, vector<1x32x8xf32>
    %4 = vector.shape_cast %3 : vector<1x32x8xf32> to vector<32x8xf32>
    %c0_3 = arith.constant 0 : index
    %c0_4 = arith.constant 0 : index
    %c0_5 = arith.constant 0 : index
    %5 = vector.load %arg3[%c0_3, %c0_4, %c0_5] : memref<1x32x8xf32, #tpu.memory_space<vmem>>, vector<1x32x8xf32>
    %6 = vector.shape_cast %5 : vector<1x32x8xf32> to vector<32x8xf32>
    %c0_6 = arith.constant 0 : index
    %c0_7 = arith.constant 0 : index
    %7 = vector.load %arg4[%c0_6, %c0_7] : memref<8x512xf32, #tpu.memory_space<vmem>>, vector<8x512xf32>
    %cst = arith.constant dense<0.000000e+00> : vector<32x512xf32>
    %8 = tpu.matmul %4, %7, %cst {dimension_numbers = #tpu.dot_dimension_numbers<[1], [0], [0], [1], [0, 0, 1, 1], [], []>} : vector<32x8xf32>, vector<8x512xf32>, vector<32x512xf32> -> vector<32x512xf32>
    %c0_8 = arith.constant 0 : index
    %c0_9 = arith.constant 0 : index
    %9 = vector.load %arg6[%c0_8, %c0_9] : memref<1x512xf32, #tpu.memory_space<vmem>>, vector<1x512xf32>
    %10 = vector.broadcast %9 : vector<1x512xf32> to vector<32x512xf32>
    %11 = arith.addf %8, %10 : vector<32x512xf32>
    %c0_10 = arith.constant 0 : index
    %c0_11 = arith.constant 0 : index
    %12 = vector.load %arg16[%c0_10, %c0_11] : memref<32x512xf32, #tpu.memory_space<vmem>>, vector<32x512xf32>
    tpu.vector_store %arg16[%c0_10, %c0_11], %11 {strides = array<i32>} : memref<32x512xf32, #tpu.memory_space<vmem>>, vector<32x512xf32>,
    %c0_12 = arith.constant 0 : index
    %c0_13 = arith.constant 0 : index
    %13 = vector.load %arg5[%c0_12, %c0_13] : memref<8x512xf32, #tpu.memory_space<vmem>>, vector<8x512xf32>
    %cst_14 = arith.constant dense<0.000000e+00> : vector<32x512xf32>
    %14 = tpu.matmul %6, %13, %cst_14 {dimension_numbers = #tpu.dot_dimension_numbers<[1], [0], [0], [1], [0, 0, 1, 1], [], []>} : vector<32x8xf32>, vector<8x512xf32>, vector<32x512xf32> -> vector<32x512xf32>
    %c0_15 = arith.constant 0 : index
    %c0_16 = arith.constant 0 : index
    %15 = vector.load %arg7[%c0_15, %c0_16] : memref<1x512xf32, #tpu.memory_space<vmem>>, vector<1x512xf32>
    %16 = vector.broadcast %15 : vector<1x512xf32> to vector<32x512xf32>
    %17 = arith.addf %14, %16 : vector<32x512xf32>
    %c0_17 = arith.constant 0 : index
    %c0_18 = arith.constant 0 : index
    %18 = vector.load %arg17[%c0_17, %c0_18] : memref<32x512xf32, #tpu.memory_space<vmem>>, vector<32x512xf32>
    tpu.vector_store %arg17[%c0_17, %c0_18], %17 {strides = array<i32>} : memref<32x512xf32, #tpu.memory_space<vmem>>, vector<32x512xf32>,
    %c0_19 = arith.constant 0 : index
    %c0_20 = arith.constant 0 : index
    %19 = vector.load %arg18[%c0_19, %c0_20] : memref<8x128xf32, #tpu.memory_space<vmem>>, vector<8x128xf32>
    %c0_21 = arith.constant 0 : index
    %c0_22 = arith.constant 0 : index
    %20 = vector.load %arg19[%c0_21, %c0_22] : memref<8x128xf32, #tpu.memory_space<vmem>>, vector<8x128xf32>
    %c0_23 = arith.constant 0 : index
    %c0_24 = arith.constant 0 : index
    %21 = vector.load %arg20[%c0_23, %c0_24] : memref<8x128xf32, #tpu.memory_space<vmem>>, vector<8x128xf32>
    %c0_25 = arith.constant 0 : index
    %c0_26 = arith.constant 0 : index
    %22 = vector.load %arg21[%c0_25, %c0_26] : memref<8x128xf32, #tpu.memory_space<vmem>>, vector<8x128xf32>
    %c0_i32_27 = arith.constant 0 : i32
    %c8_i32 = arith.constant 8 : i32
    %23 = arith.muli %c0_i32_27, %c8_i32 : i32
    %24 = tpu.assume_multiple %23, 8 : i32
    %c3_i32 = arith.constant 3 : i32
    %25 = arith.subi %c3_i32, %c0_i32_27 : i32
    %c8_i32_28 = arith.constant 8 : i32
    %26 = arith.muli %25, %c8_i32_28 : i32
    %27 = tpu.assume_multiple %26, 8 : i32
    %28 = arith.index_cast %24 : i32 to index
    %c0_29 = arith.constant 0 : index
    %29 = vector.load %arg16[%28, %c0_29] : memref<32x512xf32, #tpu.memory_space<vmem>>, vector<8x512xf32>
    %c0_30 = arith.constant 0 : index
    %c0_31 = arith.constant 0 : index
    %30 = vector.load %arg8[%c0_30, %c0_31] : memref<128x512xf32, #tpu.memory_space<vmem>>, vector<128x512xf32>
    %cst_32 = arith.constant dense<0.000000e+00> : vector<8x512xf32>
    %31 = tpu.matmul %19, %30, %cst_32 {dimension_numbers = #tpu.dot_dimension_numbers<[1], [0], [0], [1], [0, 0, 1, 1], [], []>} : vector<8x128xf32>, vector<128x512xf32>, vector<8x512xf32> -> vector<8x512xf32>
    %32 = arith.addf %29, %31 : vector<8x512xf32>
    %33 = arith.index_cast %27 : i32 to index
    %c0_33 = arith.constant 0 : index
    %34 = vector.load %arg17[%33, %c0_33] : memref<32x512xf32, #tpu.memory_space<vmem>>, vector<8x512xf32>
    %c0_34 = arith.constant 0 : index
    %c0_35 = arith.constant 0 : index
    %35 = vector.load %arg9[%c0_34, %c0_35] : memref<128x512xf32, #tpu.memory_space<vmem>>, vector<128x512xf32>
    %cst_36 = arith.constant dense<0.000000e+00> : vector<8x512xf32>
    %36 = tpu.matmul %21, %35, %cst_36 {dimension_numbers = #tpu.dot_dimension_numbers<[1], [0], [0], [1], [0, 0, 1, 1], [], []>} : vector<8x128xf32>, vector<128x512xf32>, vector<8x512xf32> -> vector<8x512xf32>
    %37 = arith.addf %34, %36 : vector<8x512xf32>
    %38 = vector.extract_strided_slice %32 {offsets = [0, 0], sizes = [8, 384], strides = [1, 1]} : vector<8x512xf32> to vector<8x384xf32>
    %39 = arith.negf %38 : vector<8x384xf32>
    %40 = math.exp %39 : vector<8x384xf32>
    %cst_37 = arith.constant 1.000000e+00 : f32
    %41 = vector.broadcast %cst_37 : f32 to vector<8x384xf32>
    %42 = arith.addf %41, %40 : vector<8x384xf32>
    %43 = arith.divf %41, %42 : vector<8x384xf32>
    %44 = vector.extract_strided_slice %32 {offsets = [0, 384], sizes = [8, 128], strides = [1, 1]} : vector<8x512xf32> to vector<8x128xf32>
    %45 = math.tanh %44 : vector<8x128xf32>
    %46 = vector.extract_strided_slice %43 {offsets = [0, 0], sizes = [8, 128], strides = [1, 1]} : vector<8x384xf32> to vector<8x128xf32>
    %47 = vector.extract_strided_slice %43 {offsets = [0, 128], sizes = [8, 128], strides = [1, 1]} : vector<8x384xf32> to vector<8x128xf32>
    %48 = vector.extract_strided_slice %43 {offsets = [0, 256], sizes = [8, 128], strides = [1, 1]} : vector<8x384xf32> to vector<8x128xf32>
    %49 = arith.mulf %47, %20 : vector<8x128xf32>
    %50 = arith.mulf %46, %45 : vector<8x128xf32>
    %51 = arith.addf %49, %50 : vector<8x128xf32>
    %52 = math.tanh %51 : vector<8x128xf32>
    %53 = arith.mulf %48, %52 : vector<8x128xf32>
    %54 = vector.extract_strided_slice %37 {offsets = [0, 0], sizes = [8, 384], strides = [1, 1]} : vector<8x512xf32> to vector<8x384xf32>
    %55 = arith.negf %54 : vector<8x384xf32>
    %56 = math.exp %55 : vector<8x384xf32>
    %cst_38 = arith.constant 1.000000e+00 : f32
    %57 = vector.broadcast %cst_38 : f32 to vector<8x384xf32>
    %58 = arith.addf %57, %56 : vector<8x384xf32>
    %59 = arith.divf %57, %58 : vector<8x384xf32>
    %60 = vector.extract_strided_slice %37 {offsets = [0, 384], sizes = [8, 128], strides = [1, 1]} : vector<8x512xf32> to vector<8x128xf32>
    %61 = math.tanh %60 : vector<8x128xf32>
    %62 = vector.extract_strided_slice %59 {offsets = [0, 0], sizes = [8, 128], strides = [1, 1]} : vector<8x384xf32> to vector<8x128xf32>
    %63 = vector.extract_strided_slice %59 {offsets = [0, 128], sizes = [8, 128], strides = [1, 1]} : vector<8x384xf32> to vector<8x128xf32>
    %64 = vector.extract_strided_slice %59 {offsets = [0, 256], sizes = [8, 128], strides = [1, 1]} : vector<8x384xf32> to vector<8x128xf32>
    %65 = arith.mulf %63, %22 : vector<8x128xf32>
    %66 = arith.mulf %62, %61 : vector<8x128xf32>
    %67 = arith.addf %65, %66 : vector<8x128xf32>
    %68 = math.tanh %67 : vector<8x128xf32>
    %69 = arith.mulf %64, %68 : vector<8x128xf32>
    %c1_i32 = arith.constant 1 : i32
    %c8_i32_39 = arith.constant 8 : i32
    %70 = arith.muli %c1_i32, %c8_i32_39 : i32
    %71 = tpu.assume_multiple %70, 8 : i32
    %c3_i32_40 = arith.constant 3 : i32
    %72 = arith.subi %c3_i32_40, %c1_i32 : i32
    %c8_i32_41 = arith.constant 8 : i32
    %73 = arith.muli %72, %c8_i32_41 : i32
    %74 = tpu.assume_multiple %73, 8 : i32
    %75 = arith.index_cast %71 : i32 to index
    %c0_42 = arith.constant 0 : index
    %76 = vector.load %arg16[%75, %c0_42] : memref<32x512xf32, #tpu.memory_space<vmem>>, vector<8x512xf32>
    %c0_43 = arith.constant 0 : index
    %c0_44 = arith.constant 0 : index
    %77 = vector.load %arg8[%c0_43, %c0_44] : memref<128x512xf32, #tpu.memory_space<vmem>>, vector<128x512xf32>
    %cst_45 = arith.constant dense<0.000000e+00> : vector<8x512xf32>
    %78 = tpu.matmul %53, %77, %cst_45 {dimension_numbers = #tpu.dot_dimension_numbers<[1], [0], [0], [1], [0, 0, 1, 1], [], []>} : vector<8x128xf32>, vector<128x512xf32>, vector<8x512xf32> -> vector<8x512xf32>
    %79 = arith.addf %76, %78 : vector<8x512xf32>
    %80 = arith.index_cast %74 : i32 to index
    %c0_46 = arith.constant 0 : index
    %81 = vector.load %arg17[%80, %c0_46] : memref<32x512xf32, #tpu.memory_space<vmem>>, vector<8x512xf32>
    %c0_47 = arith.constant 0 : index
    %c0_48 = arith.constant 0 : index
    %82 = vector.load %arg9[%c0_47, %c0_48] : memref<128x512xf32, #tpu.memory_space<vmem>>, vector<128x512xf32>
    %cst_49 = arith.constant dense<0.000000e+00> : vector<8x512xf32>
    %83 = tpu.matmul %69, %82, %cst_49 {dimension_numbers = #tpu.dot_dimension_numbers<[1], [0], [0], [1], [0, 0, 1, 1], [], []>} : vector<8x128xf32>, vector<128x512xf32>, vector<8x512xf32> -> vector<8x512xf32>
    %84 = arith.addf %81, %83 : vector<8x512xf32>
    %85 = vector.extract_strided_slice %79 {offsets = [0, 0], sizes = [8, 384], strides = [1, 1]} : vector<8x512xf32> to vector<8x384xf32>
    %86 = arith.negf %85 : vector<8x384xf32>
    %87 = math.exp %86 : vector<8x384xf32>
    %cst_50 = arith.constant 1.000000e+00 : f32
    %88 = vector.broadcast %cst_50 : f32 to vector<8x384xf32>
    %89 = arith.addf %88, %87 : vector<8x384xf32>
    %90 = arith.divf %88, %89 : vector<8x384xf32>
    %91 = vector.extract_strided_slice %79 {offsets = [0, 384], sizes = [8, 128], strides = [1, 1]} : vector<8x512xf32> to vector<8x128xf32>
    %92 = math.tanh %91 : vector<8x128xf32>
    %93 = vector.extract_strided_slice %90 {offsets = [0, 0], sizes = [8, 128], strides = [1, 1]} : vector<8x384xf32> to vector<8x128xf32>
    %94 = vector.extract_strided_slice %90 {offsets = [0, 128], sizes = [8, 128], strides = [1, 1]} : vector<8x384xf32> to vector<8x128xf32>
    %95 = vector.extract_strided_slice %90 {offsets = [0, 256], sizes = [8, 128], strides = [1, 1]} : vector<8x384xf32> to vector<8x128xf32>
    %96 = arith.mulf %94, %51 : vector<8x128xf32>
    %97 = arith.mulf %93, %92 : vector<8x128xf32>
    %98 = arith.addf %96, %97 : vector<8x128xf32>
    %99 = math.tanh %98 : vector<8x128xf32>
    %100 = arith.mulf %95, %99 : vector<8x128xf32>
    %101 = vector.extract_strided_slice %84 {offsets = [0, 0], sizes = [8, 384], strides = [1, 1]} : vector<8x512xf32> to vector<8x384xf32>
    %102 = arith.negf %101 : vector<8x384xf32>
    %103 = math.exp %102 : vector<8x384xf32>
    %cst_51 = arith.constant 1.000000e+00 : f32
    %104 = vector.broadcast %cst_51 : f32 to vector<8x384xf32>
    %105 = arith.addf %104, %103 : vector<8x384xf32>
    %106 = arith.divf %104, %105 : vector<8x384xf32>
    %107 = vector.extract_strided_slice %84 {offsets = [0, 384], sizes = [8, 128], strides = [1, 1]} : vector<8x512xf32> to vector<8x128xf32>
    %108 = math.tanh %107 : vector<8x128xf32>
    %109 = vector.extract_strided_slice %106 {offsets = [0, 0], sizes = [8, 128], strides = [1, 1]} : vector<8x384xf32> to vector<8x128xf32>
    %110 = vector.extract_strided_slice %106 {offsets = [0, 128], sizes = [8, 128], strides = [1, 1]} : vector<8x384xf32> to vector<8x128xf32>
    %111 = vector.extract_strided_slice %106 {offsets = [0, 256], sizes = [8, 128], strides = [1, 1]} : vector<8x384xf32> to vector<8x128xf32>
    %112 = arith.mulf %110, %67 : vector<8x128xf32>
    %113 = arith.mulf %109, %108 : vector<8x128xf32>
    %114 = arith.addf %112, %113 : vector<8x128xf32>
    %115 = math.tanh %114 : vector<8x128xf32>
    %116 = arith.mulf %111, %115 : vector<8x128xf32>
    %c2_i32 = arith.constant 2 : i32
    %c8_i32_52 = arith.constant 8 : i32
    %117 = arith.muli %c2_i32, %c8_i32_52 : i32
    %118 = tpu.assume_multiple %117, 8 : i32
    %c3_i32_53 = arith.constant 3 : i32
    %119 = arith.subi %c3_i32_53, %c2_i32 : i32
    %c8_i32_54 = arith.constant 8 : i32
    %120 = arith.muli %119, %c8_i32_54 : i32
    %121 = tpu.assume_multiple %120, 8 : i32
    %122 = arith.index_cast %118 : i32 to index
    %c0_55 = arith.constant 0 : index
    %123 = vector.load %arg16[%122, %c0_55] : memref<32x512xf32, #tpu.memory_space<vmem>>, vector<8x512xf32>
    %c0_56 = arith.constant 0 : index
    %c0_57 = arith.constant 0 : index
    %124 = vector.load %arg8[%c0_56, %c0_57] : memref<128x512xf32, #tpu.memory_space<vmem>>, vector<128x512xf32>
    %cst_58 = arith.constant dense<0.000000e+00> : vector<8x512xf32>
    %125 = tpu.matmul %100, %124, %cst_58 {dimension_numbers = #tpu.dot_dimension_numbers<[1], [0], [0], [1], [0, 0, 1, 1], [], []>} : vector<8x128xf32>, vector<128x512xf32>, vector<8x512xf32> -> vector<8x512xf32>
    %126 = arith.addf %123, %125 : vector<8x512xf32>
    %127 = arith.index_cast %121 : i32 to index
    %c0_59 = arith.constant 0 : index
    %128 = vector.load %arg17[%127, %c0_59] : memref<32x512xf32, #tpu.memory_space<vmem>>, vector<8x512xf32>
    %c0_60 = arith.constant 0 : index
    %c0_61 = arith.constant 0 : index
    %129 = vector.load %arg9[%c0_60, %c0_61] : memref<128x512xf32, #tpu.memory_space<vmem>>, vector<128x512xf32>
    %cst_62 = arith.constant dense<0.000000e+00> : vector<8x512xf32>
    %130 = tpu.matmul %116, %129, %cst_62 {dimension_numbers = #tpu.dot_dimension_numbers<[1], [0], [0], [1], [0, 0, 1, 1], [], []>} : vector<8x128xf32>, vector<128x512xf32>, vector<8x512xf32> -> vector<8x512xf32>
    %131 = arith.addf %128, %130 : vector<8x512xf32>
    %132 = vector.extract_strided_slice %126 {offsets = [0, 0], sizes = [8, 384], strides = [1, 1]} : vector<8x512xf32> to vector<8x384xf32>
    %133 = arith.negf %132 : vector<8x384xf32>
    %134 = math.exp %133 : vector<8x384xf32>
    %cst_63 = arith.constant 1.000000e+00 : f32
    %135 = vector.broadcast %cst_63 : f32 to vector<8x384xf32>
    %136 = arith.addf %135, %134 : vector<8x384xf32>
    %137 = arith.divf %135, %136 : vector<8x384xf32>
    %138 = vector.extract_strided_slice %126 {offsets = [0, 384], sizes = [8, 128], strides = [1, 1]} : vector<8x512xf32> to vector<8x128xf32>
    %139 = math.tanh %138 : vector<8x128xf32>
    %140 = vector.extract_strided_slice %137 {offsets = [0, 0], sizes = [8, 128], strides = [1, 1]} : vector<8x384xf32> to vector<8x128xf32>
    %141 = vector.extract_strided_slice %137 {offsets = [0, 128], sizes = [8, 128], strides = [1, 1]} : vector<8x384xf32> to vector<8x128xf32>
    %142 = vector.extract_strided_slice %137 {offsets = [0, 256], sizes = [8, 128], strides = [1, 1]} : vector<8x384xf32> to vector<8x128xf32>
    %143 = arith.mulf %141, %98 : vector<8x128xf32>
    %144 = arith.mulf %140, %139 : vector<8x128xf32>
    %145 = arith.addf %143, %144 : vector<8x128xf32>
    %146 = math.tanh %145 : vector<8x128xf32>
    %147 = arith.mulf %142, %146 : vector<8x128xf32>
    %148 = vector.extract_strided_slice %131 {offsets = [0, 0], sizes = [8, 384], strides = [1, 1]} : vector<8x512xf32> to vector<8x384xf32>
    %149 = arith.negf %148 : vector<8x384xf32>
    %150 = math.exp %149 : vector<8x384xf32>
    %cst_64 = arith.constant 1.000000e+00 : f32
    %151 = vector.broadcast %cst_64 : f32 to vector<8x384xf32>
    %152 = arith.addf %151, %150 : vector<8x384xf32>
    %153 = arith.divf %151, %152 : vector<8x384xf32>
    %154 = vector.extract_strided_slice %131 {offsets = [0, 384], sizes = [8, 128], strides = [1, 1]} : vector<8x512xf32> to vector<8x128xf32>
    %155 = math.tanh %154 : vector<8x128xf32>
    %156 = vector.extract_strided_slice %153 {offsets = [0, 0], sizes = [8, 128], strides = [1, 1]} : vector<8x384xf32> to vector<8x128xf32>
    %157 = vector.extract_strided_slice %153 {offsets = [0, 128], sizes = [8, 128], strides = [1, 1]} : vector<8x384xf32> to vector<8x128xf32>
    %158 = vector.extract_strided_slice %153 {offsets = [0, 256], sizes = [8, 128], strides = [1, 1]} : vector<8x384xf32> to vector<8x128xf32>
    %159 = arith.mulf %157, %114 : vector<8x128xf32>
    %160 = arith.mulf %156, %155 : vector<8x128xf32>
    %161 = arith.addf %159, %160 : vector<8x128xf32>
    %162 = math.tanh %161 : vector<8x128xf32>
    %163 = arith.mulf %158, %162 : vector<8x128xf32>
    %c3_i32_65 = arith.constant 3 : i32
    %c8_i32_66 = arith.constant 8 : i32
    %164 = arith.muli %c3_i32_65, %c8_i32_66 : i32
    %165 = tpu.assume_multiple %164, 8 : i32
    %c3_i32_67 = arith.constant 3 : i32
    %166 = arith.subi %c3_i32_67, %c3_i32_65 : i32
    %c8_i32_68 = arith.constant 8 : i32
    %167 = arith.muli %166, %c8_i32_68 : i32
    %168 = tpu.assume_multiple %167, 8 : i32
    %169 = arith.index_cast %165 : i32 to index
    %c0_69 = arith.constant 0 : index
    %170 = vector.load %arg16[%169, %c0_69] : memref<32x512xf32, #tpu.memory_space<vmem>>, vector<8x512xf32>
    %c0_70 = arith.constant 0 : index
    %c0_71 = arith.constant 0 : index
    %171 = vector.load %arg8[%c0_70, %c0_71] : memref<128x512xf32, #tpu.memory_space<vmem>>, vector<128x512xf32>
    %cst_72 = arith.constant dense<0.000000e+00> : vector<8x512xf32>
    %172 = tpu.matmul %147, %171, %cst_72 {dimension_numbers = #tpu.dot_dimension_numbers<[1], [0], [0], [1], [0, 0, 1, 1], [], []>} : vector<8x128xf32>, vector<128x512xf32>, vector<8x512xf32> -> vector<8x512xf32>
    %173 = arith.addf %170, %172 : vector<8x512xf32>
    %174 = arith.index_cast %168 : i32 to index
    %c0_73 = arith.constant 0 : index
    %175 = vector.load %arg17[%174, %c0_73] : memref<32x512xf32, #tpu.memory_space<vmem>>, vector<8x512xf32>
    %c0_74 = arith.constant 0 : index
    %c0_75 = arith.constant 0 : index
    %176 = vector.load %arg9[%c0_74, %c0_75] : memref<128x512xf32, #tpu.memory_space<vmem>>, vector<128x512xf32>
    %cst_76 = arith.constant dense<0.000000e+00> : vector<8x512xf32>
    %177 = tpu.matmul %163, %176, %cst_76 {dimension_numbers = #tpu.dot_dimension_numbers<[1], [0], [0], [1], [0, 0, 1, 1], [], []>} : vector<8x128xf32>, vector<128x512xf32>, vector<8x512xf32> -> vector<8x512xf32>
    %178 = arith.addf %175, %177 : vector<8x512xf32>
    %179 = vector.extract_strided_slice %173 {offsets = [0, 0], sizes = [8, 384], strides = [1, 1]} : vector<8x512xf32> to vector<8x384xf32>
    %180 = arith.negf %179 : vector<8x384xf32>
    %181 = math.exp %180 : vector<8x384xf32>
    %cst_77 = arith.constant 1.000000e+00 : f32
    %182 = vector.broadcast %cst_77 : f32 to vector<8x384xf32>
    %183 = arith.addf %182, %181 : vector<8x384xf32>
    %184 = arith.divf %182, %183 : vector<8x384xf32>
    %185 = vector.extract_strided_slice %173 {offsets = [0, 384], sizes = [8, 128], strides = [1, 1]} : vector<8x512xf32> to vector<8x128xf32>
    %186 = math.tanh %185 : vector<8x128xf32>
    %187 = vector.extract_strided_slice %184 {offsets = [0, 0], sizes = [8, 128], strides = [1, 1]} : vector<8x384xf32> to vector<8x128xf32>
    %188 = vector.extract_strided_slice %184 {offsets = [0, 128], sizes = [8, 128], strides = [1, 1]} : vector<8x384xf32> to vector<8x128xf32>
    %189 = vector.extract_strided_slice %184 {offsets = [0, 256], sizes = [8, 128], strides = [1, 1]} : vector<8x384xf32> to vector<8x128xf32>
    %190 = arith.mulf %188, %145 : vector<8x128xf32>
    %191 = arith.mulf %187, %186 : vector<8x128xf32>
    %192 = arith.addf %190, %191 : vector<8x128xf32>
    %193 = math.tanh %192 : vector<8x128xf32>
    %194 = arith.mulf %189, %193 : vector<8x128xf32>
    %195 = vector.extract_strided_slice %178 {offsets = [0, 0], sizes = [8, 384], strides = [1, 1]} : vector<8x512xf32> to vector<8x384xf32>
    %196 = arith.negf %195 : vector<8x384xf32>
    %197 = math.exp %196 : vector<8x384xf32>
    %cst_78 = arith.constant 1.000000e+00 : f32
    %198 = vector.broadcast %cst_78 : f32 to vector<8x384xf32>
    %199 = arith.addf %198, %197 : vector<8x384xf32>
    %200 = arith.divf %198, %199 : vector<8x384xf32>
    %201 = vector.extract_strided_slice %178 {offsets = [0, 384], sizes = [8, 128], strides = [1, 1]} : vector<8x512xf32> to vector<8x128xf32>
    %202 = math.tanh %201 : vector<8x128xf32>
    %203 = vector.extract_strided_slice %200 {offsets = [0, 0], sizes = [8, 128], strides = [1, 1]} : vector<8x384xf32> to vector<8x128xf32>
    %204 = vector.extract_strided_slice %200 {offsets = [0, 128], sizes = [8, 128], strides = [1, 1]} : vector<8x384xf32> to vector<8x128xf32>
    %205 = vector.extract_strided_slice %200 {offsets = [0, 256], sizes = [8, 128], strides = [1, 1]} : vector<8x384xf32> to vector<8x128xf32>
    %206 = arith.mulf %204, %161 : vector<8x128xf32>
    %207 = arith.mulf %203, %202 : vector<8x128xf32>
    %208 = arith.addf %206, %207 : vector<8x128xf32>
    %209 = math.tanh %208 : vector<8x128xf32>
    %210 = arith.mulf %205, %209 : vector<8x128xf32>
    %c4_i32 = arith.constant 4 : i32
    %c0_79 = arith.constant 0 : index
    %c0_80 = arith.constant 0 : index
    %211 = vector.load %arg18[%c0_79, %c0_80] : memref<8x128xf32, #tpu.memory_space<vmem>>, vector<8x128xf32>
    tpu.vector_store %arg18[%c0_79, %c0_80], %194 {strides = array<i32>} : memref<8x128xf32, #tpu.memory_space<vmem>>, vector<8x128xf32>,
    %c0_81 = arith.constant 0 : index
    %c0_82 = arith.constant 0 : index
    %212 = vector.load %arg19[%c0_81, %c0_82] : memref<8x128xf32, #tpu.memory_space<vmem>>, vector<8x128xf32>
    tpu.vector_store %arg19[%c0_81, %c0_82], %192 {strides = array<i32>} : memref<8x128xf32, #tpu.memory_space<vmem>>, vector<8x128xf32>,
    %c0_83 = arith.constant 0 : index
    %c0_84 = arith.constant 0 : index
    %213 = vector.load %arg20[%c0_83, %c0_84] : memref<8x128xf32, #tpu.memory_space<vmem>>, vector<8x128xf32>
    tpu.vector_store %arg20[%c0_83, %c0_84], %210 {strides = array<i32>} : memref<8x128xf32, #tpu.memory_space<vmem>>, vector<8x128xf32>,
    %c0_85 = arith.constant 0 : index
    %c0_86 = arith.constant 0 : index
    %214 = vector.load %arg21[%c0_85, %c0_86] : memref<8x128xf32, #tpu.memory_space<vmem>>, vector<8x128xf32>
    tpu.vector_store %arg21[%c0_85, %c0_86], %208 {strides = array<i32>} : memref<8x128xf32, #tpu.memory_space<vmem>>, vector<8x128xf32>,
    %c1_i32_87 = arith.constant 1 : i32
    %215 = arith.cmpi eq, %arg1, %c1_i32_87 : i32
    %216 = arith.extui %215 : i1 to i32
    %c0_i32_88 = arith.constant 0 : i32
    %217 = arith.cmpi ne, %216, %c0_i32_88 : i32
    scf.if %217 {
      %c0_89 = arith.constant 0 : index
      %c0_90 = arith.constant 0 : index
      %218 = vector.load %arg10[%c0_89, %c0_90] : memref<128x256xf32, #tpu.memory_space<vmem>>, vector<128x256xf32>
      %cst_91 = arith.constant dense<0.000000e+00> : vector<8x256xf32>
      %219 = tpu.matmul %194, %218, %cst_91 {dimension_numbers = #tpu.dot_dimension_numbers<[1], [0], [0], [1], [0, 0, 1, 1], [], []>} : vector<8x128xf32>, vector<128x256xf32>, vector<8x256xf32> -> vector<8x256xf32>
      %c0_92 = arith.constant 0 : index
      %c0_93 = arith.constant 0 : index
      %220 = vector.load %arg11[%c0_92, %c0_93] : memref<128x256xf32, #tpu.memory_space<vmem>>, vector<128x256xf32>
      %cst_94 = arith.constant dense<0.000000e+00> : vector<8x256xf32>
      %221 = tpu.matmul %210, %220, %cst_94 {dimension_numbers = #tpu.dot_dimension_numbers<[1], [0], [0], [1], [0, 0, 1, 1], [], []>} : vector<8x128xf32>, vector<128x256xf32>, vector<8x256xf32> -> vector<8x256xf32>
      %222 = arith.addf %219, %221 : vector<8x256xf32>
      %c0_95 = arith.constant 0 : index
      %c0_96 = arith.constant 0 : index
      %223 = vector.load %arg12[%c0_95, %c0_96] : memref<1x256xf32, #tpu.memory_space<vmem>>, vector<1x256xf32>
      %224 = vector.broadcast %223 : vector<1x256xf32> to vector<8x256xf32>
      %225 = arith.addf %222, %224 : vector<8x256xf32>
      %cst_97 = arith.constant 0.000000e+00 : f32
      %226 = vector.broadcast %cst_97 : f32 to vector<8x256xf32>
      %227 = arith.maximumf %225, %226 : vector<8x256xf32>
      %c0_98 = arith.constant 0 : index
      %c0_99 = arith.constant 0 : index
      %228 = vector.load %arg13[%c0_98, %c0_99] : memref<256x1xf32, #tpu.memory_space<vmem>>, vector<256x1xf32>
      %cst_100 = arith.constant dense<0.000000e+00> : vector<8x1xf32>
      %229 = tpu.matmul %227, %228, %cst_100 {dimension_numbers = #tpu.dot_dimension_numbers<[1], [0], [0], [1], [0, 0, 1, 1], [], []>} : vector<8x256xf32>, vector<256x1xf32>, vector<8x1xf32> -> vector<8x1xf32>
      %c0_101 = arith.constant 0 : index
      %c0_102 = arith.constant 0 : index
      %230 = vector.load %arg14[%c0_101, %c0_102] : memref<1x1xf32, #tpu.memory_space<vmem>>, vector<1x1xf32>
      %231 = vector.broadcast %230 : vector<1x1xf32> to vector<8x1xf32>
      %232 = arith.addf %229, %231 : vector<8x1xf32>
      %233 = arith.negf %232 : vector<8x1xf32>
      %234 = math.exp %233 : vector<8x1xf32>
      %cst_103 = arith.constant 1.000000e+00 : f32
      %235 = vector.broadcast %cst_103 : f32 to vector<8x1xf32>
      %236 = arith.addf %235, %234 : vector<8x1xf32>
      %237 = arith.divf %235, %236 : vector<8x1xf32>
      %c0_104 = arith.constant 0 : index
      %c0_105 = arith.constant 0 : index
      %238 = vector.load %arg15[%c0_104, %c0_105] : memref<8x1xf32, #tpu.memory_space<vmem>>, vector<8x1xf32>
      tpu.vector_store %arg15[%c0_104, %c0_105], %237 {strides = array<i32>} : memref<8x1xf32, #tpu.memory_space<vmem>>, vector<8x1xf32>,
    } else {
    }
    return
  }
  func.func @transform_0(%arg0: i32, %arg1: i32) -> (i32, i32, i32) {
    %c0_i32 = arith.constant 0 : i32
    %c0_i32_0 = arith.constant 0 : i32
    return %arg0, %arg1, %c0_i32 : i32, i32, i32
  }
  func.func @transform_1(%arg0: i32, %arg1: i32) -> (i32, i32, i32) {
    %c1_i32 = arith.constant 1 : i32
    %0 = arith.subi %c1_i32, %arg1 : i32
    %c0_i32 = arith.constant 0 : i32
    %c0_i32_0 = arith.constant 0 : i32
    return %arg0, %0, %c0_i32 : i32, i32, i32
  }
  func.func @transform_2(%arg0: i32, %arg1: i32) -> (i32, i32) {
    %c0_i32 = arith.constant 0 : i32
    %c0_i32_0 = arith.constant 0 : i32
    %c0_i32_1 = arith.constant 0 : i32
    return %c0_i32, %c0_i32_0 : i32, i32
  }
  func.func @transform_3(%arg0: i32, %arg1: i32) -> (i32, i32) {
    %c0_i32 = arith.constant 0 : i32
    %c0_i32_0 = arith.constant 0 : i32
    %c0_i32_1 = arith.constant 0 : i32
    return %c0_i32, %c0_i32_0 : i32, i32
  }
  func.func @transform_4(%arg0: i32, %arg1: i32) -> (i32, i32) {
    %c0_i32 = arith.constant 0 : i32
    %c0_i32_0 = arith.constant 0 : i32
    %c0_i32_1 = arith.constant 0 : i32
    return %c0_i32, %c0_i32_0 : i32, i32
  }
  func.func @transform_5(%arg0: i32, %arg1: i32) -> (i32, i32) {
    %c0_i32 = arith.constant 0 : i32
    %c0_i32_0 = arith.constant 0 : i32
    %c0_i32_1 = arith.constant 0 : i32
    return %c0_i32, %c0_i32_0 : i32, i32
  }
  func.func @transform_6(%arg0: i32, %arg1: i32) -> (i32, i32) {
    %c0_i32 = arith.constant 0 : i32
    %c0_i32_0 = arith.constant 0 : i32
    %c0_i32_1 = arith.constant 0 : i32
    return %c0_i32, %c0_i32_0 : i32, i32
  }
  func.func @transform_7(%arg0: i32, %arg1: i32) -> (i32, i32) {
    %c0_i32 = arith.constant 0 : i32
    %c0_i32_0 = arith.constant 0 : i32
    %c0_i32_1 = arith.constant 0 : i32
    return %c0_i32, %c0_i32_0 : i32, i32
  }
  func.func @transform_8(%arg0: i32, %arg1: i32) -> (i32, i32) {
    %c0_i32 = arith.constant 0 : i32
    %c0_i32_0 = arith.constant 0 : i32
    %c0_i32_1 = arith.constant 0 : i32
    return %c0_i32, %c0_i32_0 : i32, i32
  }
  func.func @transform_9(%arg0: i32, %arg1: i32) -> (i32, i32) {
    %c0_i32 = arith.constant 0 : i32
    %c0_i32_0 = arith.constant 0 : i32
    %c0_i32_1 = arith.constant 0 : i32
    return %c0_i32, %c0_i32_0 : i32, i32
  }
  func.func @transform_10(%arg0: i32, %arg1: i32) -> (i32, i32) {
    %c0_i32 = arith.constant 0 : i32
    %c0_i32_0 = arith.constant 0 : i32
    %c0_i32_1 = arith.constant 0 : i32
    return %c0_i32, %c0_i32_0 : i32, i32
  }
  func.func @transform_11(%arg0: i32, %arg1: i32) -> (i32, i32) {
    %c0_i32 = arith.constant 0 : i32
    %c0_i32_0 = arith.constant 0 : i32
    %c0_i32_1 = arith.constant 0 : i32
    return %c0_i32, %c0_i32_0 : i32, i32
  }
  func.func @transform_12(%arg0: i32, %arg1: i32) -> (i32, i32) {
    %c0_i32 = arith.constant 0 : i32
    %c0_i32_0 = arith.constant 0 : i32
    %c0_i32_1 = arith.constant 0 : i32
    return %c0_i32, %c0_i32_0 : i32, i32
  }
  func.func @transform_13(%arg0: i32, %arg1: i32) -> (i32, i32) {
    %c0_i32 = arith.constant 0 : i32
    %c0_i32_0 = arith.constant 0 : i32
    return %arg0, %c0_i32 : i32, i32
  }
}

</mosaic_0001>

<llo_original>
// kernel: lstm_discriminator.1
$region0: #{lstm_discriminator.1}
  #allocation0 [shape = 'u32[]', space=smem, size = 0x4, offset = 0x4, fixed_abs, tag = 'smem constant byte address 0x4 - core index']
  #allocation1 [shape = 'u32[144,128]{1,0:T(1,128)}', space=vmem, size = 0x12000, scoped, tag = 'internal scratch']
  #allocation2 [shape = 'f32[32,512]{1,0:T(8,128)}', space=vmem, size = 0x10000, scoped, tag = 'scratch operand']
  #allocation3 [shape = 'f32[32,512]{1,0:T(8,128)}', space=vmem, size = 0x10000, scoped, tag = 'scratch operand']
  #allocation4 [shape = 'f32[8,128]{1,0:T(8,128)}', space=vmem, size = 0x1000, scoped, tag = 'scratch operand']
  #allocation5 [shape = 'f32[8,128]{1,0:T(8,128)}', space=vmem, size = 0x1000, scoped, tag = 'scratch operand']
  #allocation6 [shape = 'f32[8,128]{1,0:T(8,128)}', space=vmem, size = 0x1000, scoped, tag = 'scratch operand']
  #allocation7 [shape = 'f32[8,128]{1,0:T(8,128)}', space=vmem, size = 0x1000, scoped, tag = 'scratch operand']
  #allocation8 [shape = 'f32[1,1]{1,0:T(1,128)S(1)}', space=vmem, size = 0x200, scoped, tag = 'scoped memory for lstm_discriminator.1']
  %s0 = inlined_call_operand.vmem [shape: f32[1,64,8], index: 0, kind: input, shape index: {}, may-alias: {0,1}]
  %s1 = inlined_call_operand.vmem [shape: f32[1,64,8], index: 1, kind: input, shape index: {}, may-alias: {0,1}]
  %s2 = inlined_call_operand.vmem [shape: f32[8,512], index: 2, kind: input, shape index: {}]
  %s3 = inlined_call_operand.vmem [shape: f32[8,512], index: 3, kind: input, shape index: {}]
  %s4 = inlined_call_operand.vmem [shape: f32[1,512], index: 4, kind: input, shape index: {}]
  %s5 = inlined_call_operand.vmem [shape: f32[1,512], index: 5, kind: input, shape index: {}]
  %s6 = inlined_call_operand.vmem [shape: f32[128,512], index: 6, kind: input, shape index: {}]
  %s7 = inlined_call_operand.vmem [shape: f32[128,512], index: 7, kind: input, shape index: {}]
  %s8 = inlined_call_operand.vmem [shape: f32[128,256], index: 8, kind: input, shape index: {}]
  %s9 = inlined_call_operand.vmem [shape: f32[128,256], index: 9, kind: input, shape index: {}]
  %s10 = inlined_call_operand.vmem [shape: f32[1,256], index: 10, kind: input, shape index: {}]
  %s11 = inlined_call_operand.vmem [shape: f32[256,1], index: 11, kind: input, shape index: {}]
  %s12 = inlined_call_operand.<no memory space> [shape: f32[1,1], index: 12, kind: input, shape index: {}]
  %s13 = inlined_call_operand.vmem [shape: f32[8,1], index: 13, kind: output, shape index: {}]
  %s14 = sld [smem:[#allocation0]]
  $region93: #{lstm_discriminator.1} parent=0
    _
  %s16 = ssub.s32 1, %s14
  %s17 = scalar_select 0, %s16, %s14
  %v18 = vstv %s12
  %19 = vst [vmem:[#allocation8] sm:$0x1] %v18
  loop: start=0, step=1, limit=4
  $region2: #{lstm_discriminator.1} parent=0 // loop_pre_header
    _
  $region3: #{lstm_discriminator.1} parent=0 // loop_header
    %s21 = sphi 0, %s25
    %p22 = scmp.ge.s32.totalorder %s21, 4
    %s28 = sphi 0, %s40
    %s29 = sphi 0, %s36
    %s30 = sphi 0, %s28
    %s31 = sphi 0, %s29
    %s32 = sphi 0, %s30
    %s33 = sphi 0, %s31
    %s45 = sphi 0, %s47
    %s48 = sphi 0, %s45
    %s49 = sphi 0, %s48
    %s65 = sphi 0, %s49
    %s75 = sphi 0, %s77
    %s78 = sphi 0, %s75
    %s79 = sphi 0, %s78
    %s95 = sphi 0, %s79
    %s99 = sphi 0, %s99
    %s101 = sphi 0, %s99
    %s102 = sphi 0, %s101
    %s116 = sphi 0, %s102
    %s120 = sphi 0, %s120
    %s122 = sphi 0, %s120
    %s123 = sphi 0, %s122
    %s137 = sphi 0, %s123
    %s141 = sphi 0, %s141
    %s143 = sphi 0, %s141
    %s144 = sphi 0, %s143
    %s158 = sphi 0, %s144
    %s162 = sphi 0, %s162
    %s164 = sphi 0, %s162
    %s165 = sphi 0, %s164
    %s179 = sphi 0, %s165
    %s183 = sphi 0, %s183
    %s185 = sphi 0, %s183
    %s186 = sphi 0, %s185
    %s200 = sphi 0, %s186
    %s204 = sphi 0, %s204
    %s206 = sphi 0, %s204
    %s207 = sphi 0, %s206
    %s221 = sphi 0, %s207
    %s225 = sphi 0, %s225
    %s227 = sphi 0, %s225
    %s228 = sphi 0, %s227
    %s242 = sphi 0, %s228
    %s246 = sphi 0, %s246
    %s248 = sphi 0, %s246
    %s249 = sphi 0, %s248
    %s263 = sphi 0, %s249
    %s267 = sphi 0, %s267
    %s269 = sphi 0, %s267
    %s270 = sphi 0, %s269
    %s284 = sphi 0, %s270
    %s288 = sphi 0, %s288
    %s290 = sphi 0, %s288
    %s291 = sphi 0, %s290
    %s305 = sphi 0, %s291
    %s309 = sphi 0, %s309
    %s311 = sphi 0, %s309
    %s312 = sphi 0, %s311
    %s326 = sphi 0, %s312
    %s332 = sphi 0, %s334
    %s335 = sphi 0, %s332
    %s336 = sphi 0, %s335
    %s352 = sphi 0, %s336
  $region4: #{lstm_discriminator.1} parent=0 // loop_header_branch
    %24 = sbr.rel (%p22) target = $region8
  $region5: #{lstm_discriminator.1} parent=0 // loop_body
    %s26 = ssub.s32 %s21, 1
    %s27 = ssub.s32 %s21, 2
    %s34 = sadd.s32 1, %s29
    %p35 = scmp.ge.s32.totalorder %s34, 2
    %s36 = scalar_select %p35, 0, %s34
    %s37 = sadd.s32 1, %s28
    %s38 = scalar_select %p35, %s37, %s28
    %p39 = scmp.ge.s32.totalorder %s38, 1
    %s40 = scalar_select %p39, 0, %s38
    %s41 = ssub.s32 %s28, %s40
    %s42 = ssub.s32 %s29, %s36
    %s43 = sor.u32 %s41, %s42
    %p44 = scmp.eq.s32.totalorder %s43, 0
    %s46 = sadd.s32 %s45, 1
    %s47 = scalar_select %p44, %s45, %s46
    %p50 = pneg %p44
    %p51 = scmp.eq.s32.totalorder %s21, 1
    %p52 = por %p50, %p51
    %p53 = scmp.ne.s32.totalorder %s45, %s48
    %p54 = scmp.eq.s32.totalorder %s21, 0
    %p55 = por %p53, %p54
    %p56 = scmp.ne.s32.totalorder %s45, %s48
    %p57 = scmp.eq.s32.totalorder %s26, 1
    %p58 = por %p56, %p57
    %p59 = scmp.ne.s32.totalorder %s48, %s49
    %p60 = scmp.eq.s32.totalorder %s26, 0
    %p61 = por %p59, %p60
    %p62 = scmp.ne.s32.totalorder %s48, %s49
    %p63 = scmp.eq.s32.totalorder %s27, 1
    %p64 = por %p62, %p63
    %p66 = scmp.ne.s32.totalorder %s49, %s65
    %p67 = scmp.eq.s32.totalorder %s27, 0
    %p68 = por %p66, %p67
    %s69 = ssub.s32 1, %s29
    %s70 = ssub.s32 1, %s36
    %s71 = ssub.s32 %s28, %s40
    %s72 = ssub.s32 %s69, %s70
    %s73 = sor.u32 %s71, %s72
    %p74 = scmp.eq.s32.totalorder %s73, 0
    %s76 = sadd.s32 %s75, 1
    %s77 = scalar_select %p74, %s75, %s76
    %p80 = pneg %p74
    %p81 = scmp.eq.s32.totalorder %s21, 1
    %p82 = por %p80, %p81
    %p83 = scmp.ne.s32.totalorder %s75, %s78
    %p84 = scmp.eq.s32.totalorder %s21, 0
    %p85 = por %p83, %p84
    %p86 = scmp.ne.s32.totalorder %s75, %s78
    %p87 = scmp.eq.s32.totalorder %s26, 1
    %p88 = por %p86, %p87
    %p89 = scmp.ne.s32.totalorder %s78, %s79
    %p90 = scmp.eq.s32.totalorder %s26, 0
    %p91 = por %p89, %p90
    %p92 = scmp.ne.s32.totalorder %s78, %s79
    %p93 = scmp.eq.s32.totalorder %s27, 1
    %p94 = por %p92, %p93
    %p96 = scmp.ne.s32.totalorder %s79, %s95
    %p97 = scmp.eq.s32.totalorder %s27, 0
    %p98 = por %p96, %p97
    %s100 = sadd.s32 %s99, 1
    %p103 = scmp.eq.s32.totalorder %s21, 1
    %p104 = scmp.ne.s32.totalorder %s99, %s101
    %p105 = scmp.eq.s32.totalorder %s21, 0
    %p106 = por %p104, %p105
    %p107 = scmp.ne.s32.totalorder %s99, %s101
    %p108 = scmp.eq.s32.totalorder %s26, 1
    %p109 = por %p107, %p108
    %p110 = scmp.ne.s32.totalorder %s101, %s102
    %p111 = scmp.eq.s32.totalorder %s26, 0
    %p112 = por %p110, %p111
    %p113 = scmp.ne.s32.totalorder %s101, %s102
    %p114 = scmp.eq.s32.totalorder %s27, 1
    %p115 = por %p113, %p114
    %p117 = scmp.ne.s32.totalorder %s102, %s116
    %p118 = scmp.eq.s32.totalorder %s27, 0
    %p119 = por %p117, %p118
    %s121 = sadd.s32 %s120, 1
    %p124 = scmp.eq.s32.totalorder %s21, 1
    %p125 = scmp.ne.s32.totalorder %s120, %s122
    %p126 = scmp.eq.s32.totalorder %s21, 0
    %p127 = por %p125, %p126
    %p128 = scmp.ne.s32.totalorder %s120, %s122
    %p129 = scmp.eq.s32.totalorder %s26, 1
    %p130 = por %p128, %p129
    %p131 = scmp.ne.s32.totalorder %s122, %s123
    %p132 = scmp.eq.s32.totalorder %s26, 0
    %p133 = por %p131, %p132
    %p134 = scmp.ne.s32.totalorder %s122, %s123
    %p135 = scmp.eq.s32.totalorder %s27, 1
    %p136 = por %p134, %p135
    %p138 = scmp.ne.s32.totalorder %s123, %s137
    %p139 = scmp.eq.s32.totalorder %s27, 0
    %p140 = por %p138, %p139
    %s142 = sadd.s32 %s141, 1
    %p145 = scmp.eq.s32.totalorder %s21, 1
    %p146 = scmp.ne.s32.totalorder %s141, %s143
    %p147 = scmp.eq.s32.totalorder %s21, 0
    %p148 = por %p146, %p147
    %p149 = scmp.ne.s32.totalorder %s141, %s143
    %p150 = scmp.eq.s32.totalorder %s26, 1
    %p151 = por %p149, %p150
    %p152 = scmp.ne.s32.totalorder %s143, %s144
    %p153 = scmp.eq.s32.totalorder %s26, 0
    %p154 = por %p152, %p153
    %p155 = scmp.ne.s32.totalorder %s143, %s144
    %p156 = scmp.eq.s32.totalorder %s27, 1
    %p157 = por %p155, %p156
    %p159 = scmp.ne.s32.totalorder %s144, %s158
    %p160 = scmp.eq.s32.totalorder %s27, 0
    %p161 = por %p159, %p160
    %s163 = sadd.s32 %s162, 1
    %p166 = scmp.eq.s32.totalorder %s21, 1
    %p167 = scmp.ne.s32.totalorder %s162, %s164
    %p168 = scmp.eq.s32.totalorder %s21, 0
    %p169 = por %p167, %p168
    %p170 = scmp.ne.s32.totalorder %s162, %s164
    %p171 = scmp.eq.s32.totalorder %s26, 1
    %p172 = por %p170, %p171
    %p173 = scmp.ne.s32.totalorder %s164, %s165
    %p174 = scmp.eq.s32.totalorder %s26, 0
    %p175 = por %p173, %p174
    %p176 = scmp.ne.s32.totalorder %s164, %s165
    %p177 = scmp.eq.s32.totalorder %s27, 1
    %p178 = por %p176, %p177
    %p180 = scmp.ne.s32.totalorder %s165, %s179
    %p181 = scmp.eq.s32.totalorder %s27, 0
    %p182 = por %p180, %p181
    %s184 = sadd.s32 %s183, 1
    %p187 = scmp.eq.s32.totalorder %s21, 1
    %p188 = scmp.ne.s32.totalorder %s183, %s185
    %p189 = scmp.eq.s32.totalorder %s21, 0
    %p190 = por %p188, %p189
    %p191 = scmp.ne.s32.totalorder %s183, %s185
    %p192 = scmp.eq.s32.totalorder %s26, 1
    %p193 = por %p191, %p192
    %p194 = scmp.ne.s32.totalorder %s185, %s186
    %p195 = scmp.eq.s32.totalorder %s26, 0
    %p196 = por %p194, %p195
    %p197 = scmp.ne.s32.totalorder %s185, %s186
    %p198 = scmp.eq.s32.totalorder %s27, 1
    %p199 = por %p197, %p198
    %p201 = scmp.ne.s32.totalorder %s186, %s200
    %p202 = scmp.eq.s32.totalorder %s27, 0
    %p203 = por %p201, %p202
    %s205 = sadd.s32 %s204, 1
    %p208 = scmp.eq.s32.totalorder %s21, 1
    %p209 = scmp.ne.s32.totalorder %s204, %s206
    %p210 = scmp.eq.s32.totalorder %s21, 0
    %p211 = por %p209, %p210
    %p212 = scmp.ne.s32.totalorder %s204, %s206
    %p213 = scmp.eq.s32.totalorder %s26, 1
    %p214 = por %p212, %p213
    %p215 = scmp.ne.s32.totalorder %s206, %s207
    %p216 = scmp.eq.s32.totalorder %s26, 0
    %p217 = por %p215, %p216
    %p218 = scmp.ne.s32.totalorder %s206, %s207
    %p219 = scmp.eq.s32.totalorder %s27, 1
    %p220 = por %p218, %p219
    %p222 = scmp.ne.s32.totalorder %s207, %s221
    %p223 = scmp.eq.s32.totalorder %s27, 0
    %p224 = por %p222, %p223
    %s226 = sadd.s32 %s225, 1
    %p229 = scmp.eq.s32.totalorder %s21, 1
    %p230 = scmp.ne.s32.totalorder %s225, %s227
    %p231 = scmp.eq.s32.totalorder %s21, 0
    %p232 = por %p230, %p231
    %p233 = scmp.ne.s32.totalorder %s225, %s227
    %p234 = scmp.eq.s32.totalorder %s26, 1
    %p235 = por %p233, %p234
    %p236 = scmp.ne.s32.totalorder %s227, %s228
    %p237 = scmp.eq.s32.totalorder %s26, 0
    %p238 = por %p236, %p237
    %p239 = scmp.ne.s32.totalorder %s227, %s228
    %p240 = scmp.eq.s32.totalorder %s27, 1
    %p241 = por %p239, %p240
    %p243 = scmp.ne.s32.totalorder %s228, %s242
    %p244 = scmp.eq.s32.totalorder %s27, 0
    %p245 = por %p243, %p244
    %s247 = sadd.s32 %s246, 1
    %p250 = scmp.eq.s32.totalorder %s21, 1
    %p251 = scmp.ne.s32.totalorder %s246, %s248
    %p252 = scmp.eq.s32.totalorder %s21, 0
    %p253 = por %p251, %p252
    %p254 = scmp.ne.s32.totalorder %s246, %s248
    %p255 = scmp.eq.s32.totalorder %s26, 1
    %p256 = por %p254, %p255
    %p257 = scmp.ne.s32.totalorder %s248, %s249
    %p258 = scmp.eq.s32.totalorder %s26, 0
    %p259 = por %p257, %p258
    %p260 = scmp.ne.s32.totalorder %s248, %s249
    %p261 = scmp.eq.s32.totalorder %s27, 1
    %p262 = por %p260, %p261
    %p264 = scmp.ne.s32.totalorder %s249, %s263
    %p265 = scmp.eq.s32.totalorder %s27, 0
    %p266 = por %p264, %p265
    %s268 = sadd.s32 %s267, 1
    %p271 = scmp.eq.s32.totalorder %s21, 1
    %p272 = scmp.ne.s32.totalorder %s267, %s269
    %p273 = scmp.eq.s32.totalorder %s21, 0
    %p274 = por %p272, %p273
    %p275 = scmp.ne.s32.totalorder %s267, %s269
    %p276 = scmp.eq.s32.totalorder %s26, 1
    %p277 = por %p275, %p276
    %p278 = scmp.ne.s32.totalorder %s269, %s270
    %p279 = scmp.eq.s32.totalorder %s26, 0
    %p280 = por %p278, %p279
    %p281 = scmp.ne.s32.totalorder %s269, %s270
    %p282 = scmp.eq.s32.totalorder %s27, 1
    %p283 = por %p281, %p282
    %p285 = scmp.ne.s32.totalorder %s270, %s284
    %p286 = scmp.eq.s32.totalorder %s27, 0
    %p287 = por %p285, %p286
    %s289 = sadd.s32 %s288, 1
    %p292 = scmp.eq.s32.totalorder %s21, 1
    %p293 = scmp.ne.s32.totalorder %s288, %s290
    %p294 = scmp.eq.s32.totalorder %s21, 0
    %p295 = por %p293, %p294
    %p296 = scmp.ne.s32.totalorder %s288, %s290
    %p297 = scmp.eq.s32.totalorder %s26, 1
    %p298 = por %p296, %p297
    %p299 = scmp.ne.s32.totalorder %s290, %s291
    %p300 = scmp.eq.s32.totalorder %s26, 0
    %p301 = por %p299, %p300
    %p302 = scmp.ne.s32.totalorder %s290, %s291
    %p303 = scmp.eq.s32.totalorder %s27, 1
    %p304 = por %p302, %p303
    %p306 = scmp.ne.s32.totalorder %s291, %s305
    %p307 = scmp.eq.s32.totalorder %s27, 0
    %p308 = por %p306, %p307
    %s310 = sadd.s32 %s309, 1
    %p313 = scmp.eq.s32.totalorder %s21, 1
    %p314 = scmp.ne.s32.totalorder %s309, %s311
    %p315 = scmp.eq.s32.totalorder %s21, 0
    %p316 = por %p314, %p315
    %p317 = scmp.ne.s32.totalorder %s309, %s311
    %p318 = scmp.eq.s32.totalorder %s26, 1
    %p319 = por %p317, %p318
    %p320 = scmp.ne.s32.totalorder %s311, %s312
    %p321 = scmp.eq.s32.totalorder %s26, 0
    %p322 = por %p320, %p321
    %p323 = scmp.ne.s32.totalorder %s311, %s312
    %p324 = scmp.eq.s32.totalorder %s27, 1
    %p325 = por %p323, %p324
    %p327 = scmp.ne.s32.totalorder %s312, %s326
    %p328 = scmp.eq.s32.totalorder %s27, 0
    %p329 = por %p327, %p328
    %s330 = ssub.s32 %s28, %s40
    %p331 = scmp.eq.s32.totalorder %s330, 0
    %s333 = sadd.s32 %s332, 1
    %s334 = scalar_select %p331, %s332, %s333
    %p337 = pneg %p331
    %p338 = scmp.eq.s32.totalorder %s21, 1
    %p339 = por %p337, %p338
    %p340 = scmp.ne.s32.totalorder %s332, %s335
    %p341 = scmp.eq.s32.totalorder %s21, 0
    %p342 = por %p340, %p341
    %p343 = scmp.ne.s32.totalorder %s332, %s335
    %p344 = scmp.eq.s32.totalorder %s26, 1
    %p345 = por %p343, %p344
    %p346 = scmp.ne.s32.totalorder %s335, %s336
    %p347 = scmp.eq.s32.totalorder %s26, 0
    %p348 = por %p346, %p347
    %p349 = scmp.ne.s32.totalorder %s335, %s336
    %p350 = scmp.eq.s32.totalorder %s27, 1
    %p351 = por %p349, %p350
    %p353 = scmp.ne.s32.totalorder %s336, %s352
    %p354 = scmp.eq.s32.totalorder %s27, 0
    %p355 = por %p353, %p354
    %p356 = scmp.le.s32.totalorder 1, %s21
    %p357 = scmp.lt.s32.totalorder %s21, 3
    %p358 = pnand %p356, %p357
    %p359 = pneg %p358
    // Predicated region
    $region9: #{lstm_discriminator.1} parent=5 // pred_check
      _
    $region10: #{lstm_discriminator.1} parent=5 // pred_check_branch
      %361 = sbr.rel (%p358) target = $region12
    $region11: #{lstm_discriminator.1} parent=5 // pred_region
      %s362 = ssub.s32 %s21, 1
      // Predicated region
      $region13: #{lstm_discriminator.1} parent=11 // pred_check
        %p363 = pneg %p112
      $region14: #{lstm_discriminator.1} parent=11 // pred_check_branch
        %365 = sbr.rel (%p363) target = $region16
      $region15: #{lstm_discriminator.1} parent=11 // pred_region
        _
      $region16: #{lstm_discriminator.1} parent=11 // pred_fallthru
        _
      // Predicated region
      $region17: #{lstm_discriminator.1} parent=11 // pred_check
        %p366 = pneg %p133
      $region18: #{lstm_discriminator.1} parent=11 // pred_check_branch
        %368 = sbr.rel (%p366) target = $region20
      $region19: #{lstm_discriminator.1} parent=11 // pred_region
        _
      $region20: #{lstm_discriminator.1} parent=11 // pred_fallthru
        _
      // Predicated region
      $region21: #{lstm_discriminator.1} parent=11 // pred_check
        %p369 = pneg %p154
      $region22: #{lstm_discriminator.1} parent=11 // pred_check_branch
        %371 = sbr.rel (%p369) target = $region24
      $region23: #{lstm_discriminator.1} parent=11 // pred_region
        _
      $region24: #{lstm_discriminator.1} parent=11 // pred_fallthru
        _
      // Predicated region
      $region25: #{lstm_discriminator.1} parent=11 // pred_check
        %p372 = pneg %p175
      $region26: #{lstm_discriminator.1} parent=11 // pred_check_branch
        %374 = sbr.rel (%p372) target = $region28
      $region27: #{lstm_discriminator.1} parent=11 // pred_region
        _
      $region28: #{lstm_discriminator.1} parent=11 // pred_fallthru
        _
      // Predicated region
      $region29: #{lstm_discriminator.1} parent=11 // pred_check
        %p375 = pneg %p196
      $region30: #{lstm_discriminator.1} parent=11 // pred_check_branch
        %377 = sbr.rel (%p375) target = $region32
      $region31: #{lstm_discriminator.1} parent=11 // pred_region
        _
      $region32: #{lstm_discriminator.1} parent=11 // pred_fallthru
        _
      // Predicated region
      $region33: #{lstm_discriminator.1} parent=11 // pred_check
        %p378 = pneg %p217
      $region34: #{lstm_discriminator.1} parent=11 // pred_check_branch
        %380 = sbr.rel (%p378) target = $region36
      $region35: #{lstm_discriminator.1} parent=11 // pred_region
        _
      $region36: #{lstm_discriminator.1} parent=11 // pred_fallthru
        _
      // Predicated region
      $region37: #{lstm_discriminator.1} parent=11 // pred_check
        %p381 = pneg %p238
      $region38: #{lstm_discriminator.1} parent=11 // pred_check_branch
        %383 = sbr.rel (%p381) target = $region40
      $region39: #{lstm_discriminator.1} parent=11 // pred_region
        _
      $region40: #{lstm_discriminator.1} parent=11 // pred_fallthru
        _
      // Predicated region
      $region41: #{lstm_discriminator.1} parent=11 // pred_check
        %p384 = pneg %p259
      $region42: #{lstm_discriminator.1} parent=11 // pred_check_branch
        %386 = sbr.rel (%p384) target = $region44
      $region43: #{lstm_discriminator.1} parent=11 // pred_region
        _
      $region44: #{lstm_discriminator.1} parent=11 // pred_fallthru
        _
      // Predicated region
      $region45: #{lstm_discriminator.1} parent=11 // pred_check
        %p387 = pneg %p280
      $region46: #{lstm_discriminator.1} parent=11 // pred_check_branch
        %389 = sbr.rel (%p387) target = $region48
      $region47: #{lstm_discriminator.1} parent=11 // pred_region
        _
      $region48: #{lstm_discriminator.1} parent=11 // pred_fallthru
        _
      // Predicated region
      $region49: #{lstm_discriminator.1} parent=11 // pred_check
        %p390 = pneg %p301
      $region50: #{lstm_discriminator.1} parent=11 // pred_check_branch
        %392 = sbr.rel (%p390) target = $region52
      $region51: #{lstm_discriminator.1} parent=11 // pred_region
        _
      $region52: #{lstm_discriminator.1} parent=11 // pred_fallthru
        _
      // Predicated region
      $region53: #{lstm_discriminator.1} parent=11 // pred_check
        %p393 = pneg %p322
      $region54: #{lstm_discriminator.1} parent=11 // pred_check_branch
        %395 = sbr.rel (%p393) target = $region56
      $region55: #{lstm_discriminator.1} parent=11 // pred_region
        _
      $region56: #{lstm_discriminator.1} parent=11 // pred_fallthru
        _
    $region12: #{lstm_discriminator.1} parent=5 // pred_fallthru
      _
    %p396 = scmp.lt.s32.totalorder %s21, 2
    // Predicated region
    $region57: #{lstm_discriminator.1} parent=5 // pred_check
      %p397 = pneg %p396
    $region58: #{lstm_discriminator.1} parent=5 // pred_check_branch
      %399 = sbr.rel (%p397) target = $region60
    $region59: #{lstm_discriminator.1} parent=5 // pred_region
      // Predicated region
      $region61: #{lstm_discriminator.1} parent=59 // pred_check
        %p400 = pneg %p55
      $region62: #{lstm_discriminator.1} parent=59 // pred_check_branch
        %402 = sbr.rel (%p400) target = $region64
      $region63: #{lstm_discriminator.1} parent=59 // pred_region
        %s403 = smul.u32 4, %s29
        %p404 = scmp.lt.s32.totalorder %s28, 0
        %s405 = scalar_select %p404, %s28, 0
        %p406 = scmp.lt.s32.totalorder %s403, 7
        %s407 = scalar_select %p406, %s403, 7
        %s408 = smul.addr %s405, 8
        %s409 = sadd.s32 %s407, %s408
        %s410 = smul.addr %s409, 8
        %s411 = scalar_lea.vmem %s0, %s410
        %s412 = smul.u32 4, %s29
      $region64: #{lstm_discriminator.1} parent=59 // pred_fallthru
        _
      // Predicated region
      $region65: #{lstm_discriminator.1} parent=59 // pred_check
        %p413 = pneg %p85
      $region66: #{lstm_discriminator.1} parent=59 // pred_check_branch
        %415 = sbr.rel (%p413) target = $region68
      $region67: #{lstm_discriminator.1} parent=59 // pred_region
        %s416 = ssub.s32 1, %s29
        %s417 = smul.u32 4, %s416
        %p418 = scmp.lt.s32.totalorder %s28, 0
        %s419 = scalar_select %p418, %s28, 0
        %p420 = scmp.lt.s32.totalorder %s417, 7
        %s421 = scalar_select %p420, %s417, 7
        %s422 = smul.addr %s419, 8
        %s423 = sadd.s32 %s421, %s422
        %s424 = smul.addr %s423, 8
        %s425 = scalar_lea.vmem %s1, %s424
        %s426 = ssub.s32 1, %s29
        %s427 = smul.u32 4, %s426
      $region68: #{lstm_discriminator.1} parent=59 // pred_fallthru
        _
    $region60: #{lstm_discriminator.1} parent=5 // pred_fallthru
      _
    %p428 = scmp.le.s32.totalorder 1, %s21
    %p429 = scmp.lt.s32.totalorder %s21, 3
    %p430 = pnand %p428, %p429
    %p431 = pneg %p430
    // Predicated region
    $region69: #{lstm_discriminator.1} parent=5 // pred_check
      _
    $region70: #{lstm_discriminator.1} parent=5 // pred_check_branch
      %433 = sbr.rel (%p430) target = $region72
    $region71: #{lstm_discriminator.1} parent=5 // pred_region
      %s434 = ssub.s32 %s21, 1
      %s435 = smul.u32 4, %s31
      %p436 = scmp.lt.s32.totalorder %s30, 0
      %s437 = scalar_select %p436, %s30, 0
      %p438 = scmp.lt.s32.totalorder %s435, 7
      %s439 = scalar_select %p438, %s435, 7
      %s440 = smul.addr %s437, 8
      %s441 = sadd.s32 %s439, %s440
      %s442 = smul.addr %s441, 8
      %s443 = scalar_lea.vmem %s0, %s442
      %p444 = pneg %p61
      %p445 = pneg %p58
      %s446 = ssub.s32 1, %s31
      %s447 = smul.u32 4, %s446
      %p448 = scmp.lt.s32.totalorder %s30, 0
      %s449 = scalar_select %p448, %s30, 0
      %p450 = scmp.lt.s32.totalorder %s447, 7
      %s451 = scalar_select %p450, %s447, 7
      %s452 = smul.addr %s449, 8
      %s453 = sadd.s32 %s451, %s452
      %s454 = smul.addr %s453, 8
      %s455 = scalar_lea.vmem %s1, %s454
      %p456 = pneg %p91
      %p457 = pneg %p88
      %p458 = pneg %p112
      %p459 = pneg %p109
      %p460 = pneg %p133
      %p461 = pneg %p130
      %p462 = pneg %p154
      %p463 = pneg %p151
      %p464 = pneg %p175
      %p465 = pneg %p172
      %p466 = pneg %p196
      %p467 = pneg %p193
      %p468 = pneg %p217
      %p469 = pneg %p214
      %p470 = pneg %p238
      %p471 = pneg %p235
      %p472 = pneg %p259
      %p473 = pneg %p256
      %p474 = pneg %p280
      %p475 = pneg %p277
      %p476 = pneg %p301
      %p477 = pneg %p298
      %p478 = pneg %p322
      %p479 = pneg %p319
      %p480 = pneg %p348
      %p481 = pneg %p345
      %p482 = scmp.lt.s32.totalorder %s30, 0
      %s483 = scalar_select %p482, %s30, 0
      %s484 = smul.addr %s483, 8
      %s485 = scalar_lea.vmem %s13, %s484
      %s486 = smul.u32 4, %s31
      %p487 = scmp.lt.s32.totalorder %s30, 0
      %s488 = scalar_select %p487, %s30, 0
      %p489 = scmp.lt.s32.totalorder %s486, 7
      %s490 = scalar_select %p489, %s486, 7
      %s491 = smul.addr %s488, 8
      %s492 = sadd.s32 %s490, %s491
      %s493 = smul.addr %s492, 8
      %s494 = scalar_lea.vmem %s0, %s493
      %s495 = smul.u32 4, %s31
      %s496 = ssub.s32 1, %s31
      %s497 = smul.u32 4, %s496
      %p498 = scmp.lt.s32.totalorder %s30, 0
      %s499 = scalar_select %p498, %s30, 0
      %p500 = scmp.lt.s32.totalorder %s497, 7
      %s501 = scalar_select %p500, %s497, 7
      %s502 = smul.addr %s499, 8
      %s503 = sadd.s32 %s501, %s502
      %s504 = smul.addr %s503, 8
      %s505 = scalar_lea.vmem %s1, %s504
      %s506 = ssub.s32 1, %s31
      %s507 = smul.u32 4, %s506
      %p508 = scmp.lt.s32.totalorder %s30, 0
      %s509 = scalar_select %p508, %s30, 0
      %s510 = smul.addr %s509, 8
      %s511 = scalar_lea.vmem %s13, %s510
      %p512 = scmp.eq.s32.totalorder %s31, 0
      // Predicated region
      $region73: #{lstm_discriminator.1} parent=71 // pred_check
        %p513 = pneg %p512
      $region74: #{lstm_discriminator.1} parent=71 // pred_check_branch
        %515 = sbr.rel (%p513) target = $region76
      $region75: #{lstm_discriminator.1} parent=71 // pred_region
        %516 = vst [vmem:[#allocation4] sm:$0xff] 0.0
        %517 = vst [vmem:[#allocation5] sm:$0xff] 0.0
        %518 = vst [vmem:[#allocation6] sm:$0xff] 0.0
        %519 = vst [vmem:[#allocation7] sm:$0xff] 0.0
      $region76: #{lstm_discriminator.1} parent=71 // pred_fallthru
        _
      %v520 = vld [vmem:[%s494] sm:$0xff]
      %v521 = vld [vmem:[%s494 + $0x8] sm:$0xff]
      %v522 = vld [vmem:[%s494 + $0x10] sm:$0xff]
      %v523 = vld [vmem:[%s494 + $0x18] sm:$0xff]
      %v524 = vld [vmem:[%s505] sm:$0xff]
      %v525 = vld [vmem:[%s505 + $0x8] sm:$0xff]
      %v526 = vld [vmem:[%s505 + $0x10] sm:$0xff]
      %v527 = vld [vmem:[%s505 + $0x18] sm:$0xff]
      %v528 = vld [vmem:[%s2] sm:$0xff]
      %v529 = vld [vmem:[%s2 + $0x8] sm:$0xff]
      %v530 = vld [vmem:[%s2 + $0x10] sm:$0xff]
      %v531 = vld [vmem:[%s2 + $0x18] sm:$0xff]
      %v532 = vld [vmem:[%s4] sm:$0xf]
      %v534 = vlaneseq
      %v535 = vshrl.u32 %v534, 7
      %v536 = vsub.s32 0, %v535
      %v537 = vrot.slane %v532, %v536
      %v538 = vlaneseq
      %v539 = vshrl.u32 %v538, 7
      %v540 = vsub.s32 1, %v539
      %v541 = vrot.slane %v532, %v540
      %v542 = vlaneseq
      %v543 = vshrl.u32 %v542, 7
      %v544 = vsub.s32 2, %v543
      %v545 = vrot.slane %v532, %v544
      %v546 = vlaneseq
      %v547 = vshrl.u32 %v546, 7
      %v548 = vsub.s32 3, %v547
      %v549 = vrot.slane %v532, %v548
      %vm554 = vcmask 64512
      %v556 = vsel %vm554, %v520, 0
      %v559 = vsel %vm554, %v521, 0
      %v562 = vsel %vm554, %v522, 0
      %v565 = vsel %vm554, %v523, 0
      %567 = vmatprep.subr.mxu0 0.0
      %568 = vmatpush1.msra.mxu0 0.0
      %569 = vmatprep.subr.mxu0 0.0
      %570 = vmatpush1.msra.mxu0 0.0
      %571 = vmatprep.subr.mxu0 0.0
      %572 = vmatpush1.msra.mxu0 0.0
      %573 = vmatprep.subr.mxu0 0.0
      %574 = vmatpush1.msra.mxu0 0.0
      %575 = vmatprep.subr.mxu0 0.0
      %576 = vmatpush1.msra.mxu0 0.0
      %577 = vmatprep.subr.mxu0 0.0
      %578 = vmatpush1.msra.mxu0 0.0
      %579 = vmatprep.subr.mxu0 0.0
      %580 = vmatpush1.msra.mxu0 0.0
      %581 = vmatprep.subr.mxu0 0.0
      %582 = vmatpush1.msra.mxu0 0.0
      %583 = vmatprep.subr.mxu0 0.0
      %584 = vmatpush1.msra.mxu0 0.0
      %585 = vmatprep.subr.mxu0 0.0
      %586 = vmatpush1.msra.mxu0 0.0
      %587 = vmatprep.subr.mxu0 0.0
      %588 = vmatpush1.msra.mxu0 0.0
      %589 = vmatprep.subr.mxu0 0.0
      %590 = vmatpush1.msra.mxu0 0.0
      %591 = vmatprep.subr.mxu0 0.0
      %592 = vmatpush1.msra.mxu0 0.0
      %593 = vmatprep.subr.mxu0 0.0
      %594 = vmatpush1.msra.mxu0 0.0
      %595 = vmatprep.subr.mxu0 0.0
      %596 = vmatpush1.msra.mxu0 0.0
      %597 = vmatprep.subr.mxu0 %v529
      %598 = vmatpush1.msra.mxu0 %v528
      %599 = vmatprep.subr.mxu0 0.0
      %600 = vmatpush2.msra.mxu0 0.0
      %601 = vmatprep.subr.mxu0 0.0
      %602 = vmatpush2.msra.mxu0 0.0
      %603 = vmatprep.subr.mxu0 0.0
      %604 = vmatpush2.msra.mxu0 0.0
      %605 = vmatprep.subr.mxu0 0.0
      %606 = vmatpush2.msra.mxu0 0.0
      %607 = vmatprep.subr.mxu0 0.0
      %608 = vmatpush2.msra.mxu0 0.0
      %609 = vmatprep.subr.mxu0 0.0
      %610 = vmatpush2.msra.mxu0 0.0
      %611 = vmatprep.subr.mxu0 0.0
      %612 = vmatpush2.msra.mxu0 0.0
      %613 = vmatprep.subr.mxu0 0.0
      %614 = vmatpush2.msra.mxu0 0.0
      %615 = vmatprep.subr.mxu0 0.0
      %616 = vmatpush2.msra.mxu0 0.0
      %617 = vmatprep.subr.mxu0 0.0
      %618 = vmatpush2.msra.mxu0 0.0
      %619 = vmatprep.subr.mxu0 0.0
      %620 = vmatpush2.msra.mxu0 0.0
      %621 = vmatprep.subr.mxu0 0.0
      %622 = vmatpush2.msra.mxu0 0.0
      %623 = vmatprep.subr.mxu0 0.0
      %624 = vmatpush2.msra.mxu0 0.0
      %625 = vmatprep.subr.mxu0 0.0
      %626 = vmatpush2.msra.mxu0 0.0
      %627 = vmatprep.subr.mxu0 0.0
      %628 = vmatpush2.msra.mxu0 0.0
      %629 = vmatprep.subr.mxu0 0.0
      %630 = vmatpush2.msra.mxu0 0.0
      %631 = vmatprep.mubr.f32.mxu0 0.0
      %632 = vmatmul.mubr.f32.gmra.mxu0 %v556
      %v633 = vpop.f32.mrf.mxu0
      %v634 = vadd.f32 %v537, %v633
      %v635 = vpop.f32.mrf.mxu0
      %v636 = vadd.f32 %v541, %v635
      %637 = vmatprep.mubr.f32.mxu0 0.0
      %638 = vmatmul.mubr.f32.gmra.mxu0 %v559
      %v639 = vpop.f32.mrf.mxu0
      %v640 = vadd.f32 %v537, %v639
      %v641 = vpop.f32.mrf.mxu0
      %v642 = vadd.f32 %v541, %v641
      %643 = vmatprep.mubr.f32.mxu0 0.0
      %644 = vmatmul.mubr.f32.gmra.mxu0 %v562
      %v645 = vpop.f32.mrf.mxu0
      %v646 = vadd.f32 %v537, %v645
      %v647 = vpop.f32.mrf.mxu0
      %v648 = vadd.f32 %v541, %v647
      %649 = vmatprep.mubr.f32.mxu0 0.0
      %650 = vmatmul.mubr.f32.gmra.mxu0 %v565
      %v651 = vpop.f32.mrf.mxu0
      %v652 = vadd.f32 %v537, %v651
      %v653 = vpop.f32.mrf.mxu0
      %v654 = vadd.f32 %v541, %v653
      %655 = vdwg.mxu0
      %656 = vmatprep.subr.mxu0 0.0
      %657 = vmatpush1.msra.mxu0 0.0
      %658 = vmatprep.subr.mxu0 0.0
      %659 = vmatpush1.msra.mxu0 0.0
      %660 = vmatprep.subr.mxu0 0.0
      %661 = vmatpush1.msra.mxu0 0.0
      %662 = vmatprep.subr.mxu0 0.0
      %663 = vmatpush1.msra.mxu0 0.0
      %664 = vmatprep.subr.mxu0 0.0
      %665 = vmatpush1.msra.mxu0 0.0
      %666 = vmatprep.subr.mxu0 0.0
      %667 = vmatpush1.msra.mxu0 0.0
      %668 = vmatprep.subr.mxu0 0.0
      %669 = vmatpush1.msra.mxu0 0.0
      %670 = vmatprep.subr.mxu0 0.0
      %671 = vmatpush1.msra.mxu0 0.0
      %672 = vmatprep.subr.mxu0 0.0
      %673 = vmatpush1.msra.mxu0 0.0
      %674 = vmatprep.subr.mxu0 0.0
      %675 = vmatpush1.msra.mxu0 0.0
      %676 = vmatprep.subr.mxu0 0.0
      %677 = vmatpush1.msra.mxu0 0.0
      %678 = vmatprep.subr.mxu0 0.0
      %679 = vmatpush1.msra.mxu0 0.0
      %680 = vmatprep.subr.mxu0 0.0
      %681 = vmatpush1.msra.mxu0 0.0
      %682 = vmatprep.subr.mxu0 0.0
      %683 = vmatpush1.msra.mxu0 0.0
      %684 = vmatprep.subr.mxu0 0.0
      %685 = vmatpush1.msra.mxu0 0.0
      %686 = vmatprep.subr.mxu0 %v531
      %687 = vmatpush1.msra.mxu0 %v530
      %688 = vmatprep.subr.mxu0 0.0
      %689 = vmatpush2.msra.mxu0 0.0
      %690 = vmatprep.subr.mxu0 0.0
      %691 = vmatpush2.msra.mxu0 0.0
      %692 = vmatprep.subr.mxu0 0.0
      %693 = vmatpush2.msra.mxu0 0.0
      %694 = vmatprep.subr.mxu0 0.0
      %695 = vmatpush2.msra.mxu0 0.0
      %696 = vmatprep.subr.mxu0 0.0
      %697 = vmatpush2.msra.mxu0 0.0
      %698 = vmatprep.subr.mxu0 0.0
      %699 = vmatpush2.msra.mxu0 0.0
      %700 = vmatprep.subr.mxu0 0.0
      %701 = vmatpush2.msra.mxu0 0.0
      %702 = vmatprep.subr.mxu0 0.0
      %703 = vmatpush2.msra.mxu0 0.0
      %704 = vmatprep.subr.mxu0 0.0
      %705 = vmatpush2.msra.mxu0 0.0
      %706 = vmatprep.subr.mxu0 0.0
      %707 = vmatpush2.msra.mxu0 0.0
      %708 = vmatprep.subr.mxu0 0.0
      %709 = vmatpush2.msra.mxu0 0.0
      %710 = vmatprep.subr.mxu0 0.0
      %711 = vmatpush2.msra.mxu0 0.0
      %712 = vmatprep.subr.mxu0 0.0
      %713 = vmatpush2.msra.mxu0 0.0
      %714 = vmatprep.subr.mxu0 0.0
      %715 = vmatpush2.msra.mxu0 0.0
      %716 = vmatprep.subr.mxu0 0.0
      %717 = vmatpush2.msra.mxu0 0.0
      %718 = vmatprep.subr.mxu0 0.0
      %719 = vmatpush2.msra.mxu0 0.0
      %720 = vmatprep.mubr.f32.mxu0 0.0
      %721 = vmatmul.mubr.f32.gmra.mxu0 %v556
      %v722 = vpop.f32.mrf.mxu0
      %v723 = vadd.f32 %v545, %v722
      %v724 = vpop.f32.mrf.mxu0
      %v725 = vadd.f32 %v549, %v724
      %726 = vmatprep.mubr.f32.mxu0 0.0
      %727 = vmatmul.mubr.f32.gmra.mxu0 %v559
      %v728 = vpop.f32.mrf.mxu0
      %v729 = vadd.f32 %v545, %v728
      %v730 = vpop.f32.mrf.mxu0
      %v731 = vadd.f32 %v549, %v730
      %732 = vmatprep.mubr.f32.mxu0 0.0
      %733 = vmatmul.mubr.f32.gmra.mxu0 %v562
      %v734 = vpop.f32.mrf.mxu0
      %v735 = vadd.f32 %v545, %v734
      %v736 = vpop.f32.mrf.mxu0
      %v737 = vadd.f32 %v549, %v736
      %738 = vmatprep.mubr.f32.mxu0 0.0
      %739 = vmatmul.mubr.f32.gmra.mxu0 %v565
      %v740 = vpop.f32.mrf.mxu0
      %v741 = vadd.f32 %v545, %v740
      %v742 = vpop.f32.mrf.mxu0
      %v743 = vadd.f32 %v549, %v742
      %744 = vdwg.mxu0
      %745 = vst [vmem:[#allocation2] sm:$0xff] %v634
      %746 = vst [vmem:[#allocation2 + $0x8] sm:$0xff] %v636
      %747 = vst [vmem:[#allocation2 + $0x10] sm:$0xff] %v723
      %748 = vst [vmem:[#allocation2 + $0x18] sm:$0xff] %v725
      %749 = vst [vmem:[#allocation2 + $0x20] sm:$0xff] %v640
      %750 = vst [vmem:[#allocation2 + $0x28] sm:$0xff] %v642
      %751 = vst [vmem:[#allocation2 + $0x30] sm:$0xff] %v729
      %752 = vst [vmem:[#allocation2 + $0x38] sm:$0xff] %v731
      %753 = vst [vmem:[#allocation2 + $0x40] sm:$0xff] %v646
      %754 = vst [vmem:[#allocation2 + $0x48] sm:$0xff] %v648
      %755 = vst [vmem:[#allocation2 + $0x50] sm:$0xff] %v735
      %756 = vst [vmem:[#allocation2 + $0x58] sm:$0xff] %v737
      %757 = vst [vmem:[#allocation2 + $0x60] sm:$0xff] %v652
      %758 = vst [vmem:[#allocation2 + $0x68] sm:$0xff] %v654
      %759 = vst [vmem:[#allocation2 + $0x70] sm:$0xff] %v741
      %760 = vst [vmem:[#allocation2 + $0x78] sm:$0xff] %v743
      %v761 = vld [vmem:[%s3] sm:$0xff]
      %v762 = vld [vmem:[%s3 + $0x8] sm:$0xff]
      %v763 = vld [vmem:[%s3 + $0x10] sm:$0xff]
      %v764 = vld [vmem:[%s3 + $0x18] sm:$0xff]
      %v765 = vld [vmem:[%s5] sm:$0xf]
      %v767 = vlaneseq
      %v768 = vshrl.u32 %v767, 7
      %v769 = vsub.s32 0, %v768
      %v770 = vrot.slane %v765, %v769
      %v771 = vlaneseq
      %v772 = vshrl.u32 %v771, 7
      %v773 = vsub.s32 1, %v772
      %v774 = vrot.slane %v765, %v773
      %v775 = vlaneseq
      %v776 = vshrl.u32 %v775, 7
      %v777 = vsub.s32 2, %v776
      %v778 = vrot.slane %v765, %v777
      %v779 = vlaneseq
      %v780 = vshrl.u32 %v779, 7
      %v781 = vsub.s32 3, %v780
      %v782 = vrot.slane %v765, %v781
      %v788 = vsel %vm554, %v524, 0
      %v791 = vsel %vm554, %v525, 0
      %v794 = vsel %vm554, %v526, 0
      %v797 = vsel %vm554, %v527, 0
      %799 = vmatprep.subr.mxu0 0.0
      %800 = vmatpush1.msra.mxu0 0.0
      %801 = vmatprep.subr.mxu0 0.0
      %802 = vmatpush1.msra.mxu0 0.0
      %803 = vmatprep.subr.mxu0 0.0
      %804 = vmatpush1.msra.mxu0 0.0
      %805 = vmatprep.subr.mxu0 0.0
      %806 = vmatpush1.msra.mxu0 0.0
      %807 = vmatprep.subr.mxu0 0.0
      %808 = vmatpush1.msra.mxu0 0.0
      %809 = vmatprep.subr.mxu0 0.0
      %810 = vmatpush1.msra.mxu0 0.0
      %811 = vmatprep.subr.mxu0 0.0
      %812 = vmatpush1.msra.mxu0 0.0
      %813 = vmatprep.subr.mxu0 0.0
      %814 = vmatpush1.msra.mxu0 0.0
      %815 = vmatprep.subr.mxu0 0.0
      %816 = vmatpush1.msra.mxu0 0.0
      %817 = vmatprep.subr.mxu0 0.0
      %818 = vmatpush1.msra.mxu0 0.0
      %819 = vmatprep.subr.mxu0 0.0
      %820 = vmatpush1.msra.mxu0 0.0
      %821 = vmatprep.subr.mxu0 0.0
      %822 = vmatpush1.msra.mxu0 0.0
      %823 = vmatprep.subr.mxu0 0.0
      %824 = vmatpush1.msra.mxu0 0.0
      %825 = vmatprep.subr.mxu0 0.0
      %826 = vmatpush1.msra.mxu0 0.0
      %827 = vmatprep.subr.mxu0 0.0
      %828 = vmatpush1.msra.mxu0 0.0
      %829 = vmatprep.subr.mxu0 %v762
      %830 = vmatpush1.msra.mxu0 %v761
      %831 = vmatprep.subr.mxu0 0.0
      %832 = vmatpush2.msra.mxu0 0.0
      %833 = vmatprep.subr.mxu0 0.0
      %834 = vmatpush2.msra.mxu0 0.0
      %835 = vmatprep.subr.mxu0 0.0
      %836 = vmatpush2.msra.mxu0 0.0
      %837 = vmatprep.subr.mxu0 0.0
      %838 = vmatpush2.msra.mxu0 0.0
      %839 = vmatprep.subr.mxu0 0.0
      %840 = vmatpush2.msra.mxu0 0.0
      %841 = vmatprep.subr.mxu0 0.0
      %842 = vmatpush2.msra.mxu0 0.0
      %843 = vmatprep.subr.mxu0 0.0
      %844 = vmatpush2.msra.mxu0 0.0
      %845 = vmatprep.subr.mxu0 0.0
      %846 = vmatpush2.msra.mxu0 0.0
      %847 = vmatprep.subr.mxu0 0.0
      %848 = vmatpush2.msra.mxu0 0.0
      %849 = vmatprep.subr.mxu0 0.0
      %850 = vmatpush2.msra.mxu0 0.0
      %851 = vmatprep.subr.mxu0 0.0
      %852 = vmatpush2.msra.mxu0 0.0
      %853 = vmatprep.subr.mxu0 0.0
      %854 = vmatpush2.msra.mxu0 0.0
      %855 = vmatprep.subr.mxu0 0.0
      %856 = vmatpush2.msra.mxu0 0.0
      %857 = vmatprep.subr.mxu0 0.0
      %858 = vmatpush2.msra.mxu0 0.0
      %859 = vmatprep.subr.mxu0 0.0
      %860 = vmatpush2.msra.mxu0 0.0
      %861 = vmatprep.subr.mxu0 0.0
      %862 = vmatpush2.msra.mxu0 0.0
      %863 = vmatprep.mubr.f32.mxu0 0.0
      %864 = vmatmul.mubr.f32.gmra.mxu0 %v788
      %v865 = vpop.f32.mrf.mxu0
      %v866 = vadd.f32 %v770, %v865
      %v867 = vpop.f32.mrf.mxu0
      %v868 = vadd.f32 %v774, %v867
      %869 = vmatprep.mubr.f32.mxu0 0.0
      %870 = vmatmul.mubr.f32.gmra.mxu0 %v791
      %v871 = vpop.f32.mrf.mxu0
      %v872 = vadd.f32 %v770, %v871
      %v873 = vpop.f32.mrf.mxu0
      %v874 = vadd.f32 %v774, %v873
      %875 = vmatprep.mubr.f32.mxu0 0.0
      %876 = vmatmul.mubr.f32.gmra.mxu0 %v794
      %v877 = vpop.f32.mrf.mxu0
      %v878 = vadd.f32 %v770, %v877
      %v879 = vpop.f32.mrf.mxu0
      %v880 = vadd.f32 %v774, %v879
      %881 = vmatprep.mubr.f32.mxu0 0.0
      %882 = vmatmul.mubr.f32.gmra.mxu0 %v797
      %v883 = vpop.f32.mrf.mxu0
      %v884 = vadd.f32 %v770, %v883
      %v885 = vpop.f32.mrf.mxu0
      %v886 = vadd.f32 %v774, %v885
      %887 = vdwg.mxu0
      %888 = vmatprep.subr.mxu0 0.0
      %889 = vmatpush1.msra.mxu0 0.0
      %890 = vmatprep.subr.mxu0 0.0
      %891 = vmatpush1.msra.mxu0 0.0
      %892 = vmatprep.subr.mxu0 0.0
      %893 = vmatpush1.msra.mxu0 0.0
      %894 = vmatprep.subr.mxu0 0.0
      %895 = vmatpush1.msra.mxu0 0.0
      %896 = vmatprep.subr.mxu0 0.0
      %897 = vmatpush1.msra.mxu0 0.0
      %898 = vmatprep.subr.mxu0 0.0
      %899 = vmatpush1.msra.mxu0 0.0
      %900 = vmatprep.subr.mxu0 0.0
      %901 = vmatpush1.msra.mxu0 0.0
      %902 = vmatprep.subr.mxu0 0.0
      %903 = vmatpush1.msra.mxu0 0.0
      %904 = vmatprep.subr.mxu0 0.0
      %905 = vmatpush1.msra.mxu0 0.0
      %906 = vmatprep.subr.mxu0 0.0
      %907 = vmatpush1.msra.mxu0 0.0
      %908 = vmatprep.subr.mxu0 0.0
      %909 = vmatpush1.msra.mxu0 0.0
      %910 = vmatprep.subr.mxu0 0.0
      %911 = vmatpush1.msra.mxu0 0.0
      %912 = vmatprep.subr.mxu0 0.0
      %913 = vmatpush1.msra.mxu0 0.0
      %914 = vmatprep.subr.mxu0 0.0
      %915 = vmatpush1.msra.mxu0 0.0
      %916 = vmatprep.subr.mxu0 0.0
      %917 = vmatpush1.msra.mxu0 0.0
      %918 = vmatprep.subr.mxu0 %v764
      %919 = vmatpush1.msra.mxu0 %v763
      %920 = vmatprep.subr.mxu0 0.0
      %921 = vmatpush2.msra.mxu0 0.0
      %922 = vmatprep.subr.mxu0 0.0
      %923 = vmatpush2.msra.mxu0 0.0
      %924 = vmatprep.subr.mxu0 0.0
      %925 = vmatpush2.msra.mxu0 0.0
      %926 = vmatprep.subr.mxu0 0.0
      %927 = vmatpush2.msra.mxu0 0.0
      %928 = vmatprep.subr.mxu0 0.0
      %929 = vmatpush2.msra.mxu0 0.0
      %930 = vmatprep.subr.mxu0 0.0
      %931 = vmatpush2.msra.mxu0 0.0
      %932 = vmatprep.subr.mxu0 0.0
      %933 = vmatpush2.msra.mxu0 0.0
      %934 = vmatprep.subr.mxu0 0.0
      %935 = vmatpush2.msra.mxu0 0.0
      %936 = vmatprep.subr.mxu0 0.0
      %937 = vmatpush2.msra.mxu0 0.0
      %938 = vmatprep.subr.mxu0 0.0
      %939 = vmatpush2.msra.mxu0 0.0
      %940 = vmatprep.subr.mxu0 0.0
      %941 = vmatpush2.msra.mxu0 0.0
      %942 = vmatprep.subr.mxu0 0.0
      %943 = vmatpush2.msra.mxu0 0.0
      %944 = vmatprep.subr.mxu0 0.0
      %945 = vmatpush2.msra.mxu0 0.0
      %946 = vmatprep.subr.mxu0 0.0
      %947 = vmatpush2.msra.mxu0 0.0
      %948 = vmatprep.subr.mxu0 0.0
      %949 = vmatpush2.msra.mxu0 0.0
      %950 = vmatprep.subr.mxu0 0.0
      %951 = vmatpush2.msra.mxu0 0.0
      %952 = vmatprep.mubr.f32.mxu0 0.0
      %953 = vmatmul.mubr.f32.gmra.mxu0 %v788
      %v954 = vpop.f32.mrf.mxu0
      %v955 = vadd.f32 %v778, %v954
      %v956 = vpop.f32.mrf.mxu0
      %v957 = vadd.f32 %v782, %v956
      %958 = vmatprep.mubr.f32.mxu0 0.0
      %959 = vmatmul.mubr.f32.gmra.mxu0 %v791
      %v960 = vpop.f32.mrf.mxu0
      %v961 = vadd.f32 %v778, %v960
      %v962 = vpop.f32.mrf.mxu0
      %v963 = vadd.f32 %v782, %v962
      %964 = vmatprep.mubr.f32.mxu0 0.0
      %965 = vmatmul.mubr.f32.gmra.mxu0 %v794
      %v966 = vpop.f32.mrf.mxu0
      %v967 = vadd.f32 %v778, %v966
      %v968 = vpop.f32.mrf.mxu0
      %v969 = vadd.f32 %v782, %v968
      %970 = vmatprep.mubr.f32.mxu0 0.0
      %971 = vmatmul.mubr.f32.gmra.mxu0 %v797
      %v972 = vpop.f32.mrf.mxu0
      %v973 = vadd.f32 %v778, %v972
      %v974 = vpop.f32.mrf.mxu0
      %v975 = vadd.f32 %v782, %v974
      %976 = vdwg.mxu0
      %977 = vst [vmem:[#allocation3] sm:$0xff] %v866
      %978 = vst [vmem:[#allocation3 + $0x8] sm:$0xff] %v868
      %979 = vst [vmem:[#allocation3 + $0x10] sm:$0xff] %v955
      %980 = vst [vmem:[#allocation3 + $0x18] sm:$0xff] %v957
      %981 = vst [vmem:[#allocation3 + $0x20] sm:$0xff] %v872
      %982 = vst [vmem:[#allocation3 + $0x28] sm:$0xff] %v874
      %983 = vst [vmem:[#allocation3 + $0x30] sm:$0xff] %v961
      %984 = vst [vmem:[#allocation3 + $0x38] sm:$0xff] %v963
      %985 = vst [vmem:[#allocation3 + $0x40] sm:$0xff] %v878
      %986 = vst [vmem:[#allocation3 + $0x48] sm:$0xff] %v880
      %987 = vst [vmem:[#allocation3 + $0x50] sm:$0xff] %v967
      %988 = vst [vmem:[#allocation3 + $0x58] sm:$0xff] %v969
      %989 = vst [vmem:[#allocation3 + $0x60] sm:$0xff] %v884
      %990 = vst [vmem:[#allocation3 + $0x68] sm:$0xff] %v886
      %991 = vst [vmem:[#allocation3 + $0x70] sm:$0xff] %v973
      %992 = vst [vmem:[#allocation3 + $0x78] sm:$0xff] %v975
      %v993 = vld [vmem:[#allocation4] sm:$0xff]
      %v994 = vld [vmem:[#allocation5] sm:$0xff]
      %v995 = vld [vmem:[#allocation6] sm:$0xff]
      %v996 = vld [vmem:[#allocation7] sm:$0xff]
      %s997 = smul.u32 0, 4
      %s998 = smul.addr %s997, 8
      %s999 = scalar_lea.vmem [#allocation2], %s998
      %v1000 = vld [vmem:[%s999] sm:$0xff]
      %v1001 = vld [vmem:[%s999 + $0x8] sm:$0xff]
      %v1002 = vld [vmem:[%s999 + $0x10] sm:$0xff]
      %v1003 = vld [vmem:[%s999 + $0x18] sm:$0xff]
      %v1004 = vld [vmem:[%s6] sm:$0xff]
      %v1005 = vld [vmem:[%s6 + $0x8] sm:$0xff]
      %v1006 = vld [vmem:[%s6 + $0x10] sm:$0xff]
      %v1007 = vld [vmem:[%s6 + $0x18] sm:$0xff]
      %v1008 = vld [vmem:[%s6 + $0x20] sm:$0xff]
      %v1009 = vld [vmem:[%s6 + $0x28] sm:$0xff]
      %v1010 = vld [vmem:[%s6 + $0x30] sm:$0xff]
      %v1011 = vld [vmem:[%s6 + $0x38] sm:$0xff]
      %v1012 = vld [vmem:[%s6 + $0x40] sm:$0xff]
      %v1013 = vld [vmem:[%s6 + $0x48] sm:$0xff]
      %v1014 = vld [vmem:[%s6 + $0x50] sm:$0xff]
      %v1015 = vld [vmem:[%s6 + $0x58] sm:$0xff]
      %v1016 = vld [vmem:[%s6 + $0x60] sm:$0xff]
      %v1017 = vld [vmem:[%s6 + $0x68] sm:$0xff]
      %v1018 = vld [vmem:[%s6 + $0x70] sm:$0xff]
      %v1019 = vld [vmem:[%s6 + $0x78] sm:$0xff]
      %v1020 = vld [vmem:[%s6 + $0x80] sm:$0xff]
      %v1021 = vld [vmem:[%s6 + $0x88] sm:$0xff]
      %v1022 = vld [vmem:[%s6 + $0x90] sm:$0xff]
      %v1023 = vld [vmem:[%s6 + $0x98] sm:$0xff]
      %v1024 = vld [vmem:[%s6 + $0xa0] sm:$0xff]
      %v1025 = vld [vmem:[%s6 + $0xa8] sm:$0xff]
      %v1026 = vld [vmem:[%s6 + $0xb0] sm:$0xff]
      %v1027 = vld [vmem:[%s6 + $0xb8] sm:$0xff]
      %v1028 = vld [vmem:[%s6 + $0xc0] sm:$0xff]
      %v1029 = vld [vmem:[%s6 + $0xc8] sm:$0xff]
      %v1030 = vld [vmem:[%s6 + $0xd0] sm:$0xff]
      %v1031 = vld [vmem:[%s6 + $0xd8] sm:$0xff]
      %v1032 = vld [vmem:[%s6 + $0xe0] sm:$0xff]
      %v1033 = vld [vmem:[%s6 + $0xe8] sm:$0xff]
      %v1034 = vld [vmem:[%s6 + $0xf0] sm:$0xff]
      %v1035 = vld [vmem:[%s6 + $0xf8] sm:$0xff]
      %v1036 = vld [vmem:[%s6 + $0x100] sm:$0xff]
      %v1037 = vld [vmem:[%s6 + $0x108] sm:$0xff]
      %v1038 = vld [vmem:[%s6 + $0x110] sm:$0xff]
      %v1039 = vld [vmem:[%s6 + $0x118] sm:$0xff]
      %v1040 = vld [vmem:[%s6 + $0x120] sm:$0xff]
      %v1041 = vld [vmem:[%s6 + $0x128] sm:$0xff]
      %v1042 = vld [vmem:[%s6 + $0x130] sm:$0xff]
      %v1043 = vld [vmem:[%s6 + $0x138] sm:$0xff]
      %v1044 = vld [vmem:[%s6 + $0x140] sm:$0xff]
      %v1045 = vld [vmem:[%s6 + $0x148] sm:$0xff]
      %v1046 = vld [vmem:[%s6 + $0x150] sm:$0xff]
      %v1047 = vld [vmem:[%s6 + $0x158] sm:$0xff]
      %v1048 = vld [vmem:[%s6 + $0x160] sm:$0xff]
      %v1049 = vld [vmem:[%s6 + $0x168] sm:$0xff]
      %v1050 = vld [vmem:[%s6 + $0x170] sm:$0xff]
      %v1051 = vld [vmem:[%s6 + $0x178] sm:$0xff]
      %v1052 = vld [vmem:[%s6 + $0x180] sm:$0xff]
      %v1053 = vld [vmem:[%s6 + $0x188] sm:$0xff]
      %v1054 = vld [vmem:[%s6 + $0x190] sm:$0xff]
      %v1055 = vld [vmem:[%s6 + $0x198] sm:$0xff]
      %v1056 = vld [vmem:[%s6 + $0x1a0] sm:$0xff]
      %v1057 = vld [vmem:[%s6 + $0x1a8] sm:$0xff]
      %v1058 = vld [vmem:[%s6 + $0x1b0] sm:$0xff]
      %v1059 = vld [vmem:[%s6 + $0x1b8] sm:$0xff]
      %v1060 = vld [vmem:[%s6 + $0x1c0] sm:$0xff]
      %v1061 = vld [vmem:[%s6 + $0x1c8] sm:$0xff]
      %v1062 = vld [vmem:[%s6 + $0x1d0] sm:$0xff]
      %v1063 = vld [vmem:[%s6 + $0x1d8] sm:$0xff]
      %v1064 = vld [vmem:[%s6 + $0x1e0] sm:$0xff]
      %v1065 = vld [vmem:[%s6 + $0x1e8] sm:$0xff]
      %v1066 = vld [vmem:[%s6 + $0x1f0] sm:$0xff]
      %v1067 = vld [vmem:[%s6 + $0x1f8] sm:$0xff]
      %1068 = vmatprep.subr.mxu0 %v1065
      %1069 = vmatpush1.msra.mxu0 %v1064
      %1070 = vmatprep.subr.mxu0 %v1061
      %1071 = vmatpush1.msra.mxu0 %v1060
      %1072 = vmatprep.subr.mxu0 %v1057
      %1073 = vmatpush1.msra.mxu0 %v1056
      %1074 = vmatprep.subr.mxu0 %v1053
      %1075 = vmatpush1.msra.mxu0 %v1052
      %1076 = vmatprep.subr.mxu0 %v1049
      %1077 = vmatpush1.msra.mxu0 %v1048
      %1078 = vmatprep.subr.mxu0 %v1045
      %1079 = vmatpush1.msra.mxu0 %v1044
      %1080 = vmatprep.subr.mxu0 %v1041
      %1081 = vmatpush1.msra.mxu0 %v1040
      %1082 = vmatprep.subr.mxu0 %v1037
      %1083 = vmatpush1.msra.mxu0 %v1036
      %1084 = vmatprep.subr.mxu0 %v1033
      %1085 = vmatpush1.msra.mxu0 %v1032
      %1086 = vmatprep.subr.mxu0 %v1029
      %1087 = vmatpush1.msra.mxu0 %v1028
      %1088 = vmatprep.subr.mxu0 %v1025
      %1089 = vmatpush1.msra.mxu0 %v1024
      %1090 = vmatprep.subr.mxu0 %v1021
      %1091 = vmatpush1.msra.mxu0 %v1020
      %1092 = vmatprep.subr.mxu0 %v1017
      %1093 = vmatpush1.msra.mxu0 %v1016
      %1094 = vmatprep.subr.mxu0 %v1013
      %1095 = vmatpush1.msra.mxu0 %v1012
      %1096 = vmatprep.subr.mxu0 %v1009
      %1097 = vmatpush1.msra.mxu0 %v1008
      %1098 = vmatprep.subr.mxu0 %v1005
      %1099 = vmatpush1.msra.mxu0 %v1004
      %1100 = vmatprep.subr.mxu0 0.0
      %1101 = vmatpush2.msra.mxu0 0.0
      %1102 = vmatprep.subr.mxu0 0.0
      %1103 = vmatpush2.msra.mxu0 0.0
      %1104 = vmatprep.subr.mxu0 0.0
      %1105 = vmatpush2.msra.mxu0 0.0
      %1106 = vmatprep.subr.mxu0 0.0
      %1107 = vmatpush2.msra.mxu0 0.0
      %1108 = vmatprep.subr.mxu0 0.0
      %1109 = vmatpush2.msra.mxu0 0.0
      %1110 = vmatprep.subr.mxu0 0.0
      %1111 = vmatpush2.msra.mxu0 0.0
      %1112 = vmatprep.subr.mxu0 0.0
      %1113 = vmatpush2.msra.mxu0 0.0
      %1114 = vmatprep.subr.mxu0 0.0
      %1115 = vmatpush2.msra.mxu0 0.0
      %1116 = vmatprep.subr.mxu0 0.0
      %1117 = vmatpush2.msra.mxu0 0.0
      %1118 = vmatprep.subr.mxu0 0.0
      %1119 = vmatpush2.msra.mxu0 0.0
      %1120 = vmatprep.subr.mxu0 0.0
      %1121 = vmatpush2.msra.mxu0 0.0
      %1122 = vmatprep.subr.mxu0 0.0
      %1123 = vmatpush2.msra.mxu0 0.0
      %1124 = vmatprep.subr.mxu0 0.0
      %1125 = vmatpush2.msra.mxu0 0.0
      %1126 = vmatprep.subr.mxu0 0.0
      %1127 = vmatpush2.msra.mxu0 0.0
      %1128 = vmatprep.subr.mxu0 0.0
      %1129 = vmatpush2.msra.mxu0 0.0
      %1130 = vmatprep.subr.mxu0 0.0
      %1131 = vmatpush2.msra.mxu0 0.0
      %1132 = vmatprep.mubr.f32.mxu0 0.0
      %1133 = vmatmul.mubr.f32.gmra.mxu0 %v993
      %v1134 = vpop.f32.mrf.mxu0
      %v1135 = vadd.f32 0.0, %v1134
      %v1136 = vpop.f32.mrf.mxu0
      %v1137 = vadd.f32 0.0, %v1136
      %1138 = vdwg.mxu0
      %1139 = vmatprep.subr.mxu0 %v1067
      %1140 = vmatpush1.msra.mxu0 %v1066
      %1141 = vmatprep.subr.mxu0 %v1063
      %1142 = vmatpush1.msra.mxu0 %v1062
      %1143 = vmatprep.subr.mxu0 %v1059
      %1144 = vmatpush1.msra.mxu0 %v1058
      %1145 = vmatprep.subr.mxu0 %v1055
      %1146 = vmatpush1.msra.mxu0 %v1054
      %1147 = vmatprep.subr.mxu0 %v1051
      %1148 = vmatpush1.msra.mxu0 %v1050
      %1149 = vmatprep.subr.mxu0 %v1047
      %1150 = vmatpush1.msra.mxu0 %v1046
      %1151 = vmatprep.subr.mxu0 %v1043
      %1152 = vmatpush1.msra.mxu0 %v1042
      %1153 = vmatprep.subr.mxu0 %v1039
      %1154 = vmatpush1.msra.mxu0 %v1038
      %1155 = vmatprep.subr.mxu0 %v1035
      %1156 = vmatpush1.msra.mxu0 %v1034
      %1157 = vmatprep.subr.mxu0 %v1031
      %1158 = vmatpush1.msra.mxu0 %v1030
      %1159 = vmatprep.subr.mxu0 %v1027
      %1160 = vmatpush1.msra.mxu0 %v1026
      %1161 = vmatprep.subr.mxu0 %v1023
      %1162 = vmatpush1.msra.mxu0 %v1022
      %1163 = vmatprep.subr.mxu0 %v1019
      %1164 = vmatpush1.msra.mxu0 %v1018
      %1165 = vmatprep.subr.mxu0 %v1015
      %1166 = vmatpush1.msra.mxu0 %v1014
      %1167 = vmatprep.subr.mxu0 %v1011
      %1168 = vmatpush1.msra.mxu0 %v1010
      %1169 = vmatprep.subr.mxu0 %v1007
      %1170 = vmatpush1.msra.mxu0 %v1006
      %1171 = vmatprep.subr.mxu0 0.0
      %1172 = vmatpush2.msra.mxu0 0.0
      %1173 = vmatprep.subr.mxu0 0.0
      %1174 = vmatpush2.msra.mxu0 0.0
      %1175 = vmatprep.subr.mxu0 0.0
      %1176 = vmatpush2.msra.mxu0 0.0
      %1177 = vmatprep.subr.mxu0 0.0
      %1178 = vmatpush2.msra.mxu0 0.0
      %1179 = vmatprep.subr.mxu0 0.0
      %1180 = vmatpush2.msra.mxu0 0.0
      %1181 = vmatprep.subr.mxu0 0.0
      %1182 = vmatpush2.msra.mxu0 0.0
      %1183 = vmatprep.subr.mxu0 0.0
      %1184 = vmatpush2.msra.mxu0 0.0
      %1185 = vmatprep.subr.mxu0 0.0
      %1186 = vmatpush2.msra.mxu0 0.0
      %1187 = vmatprep.subr.mxu0 0.0
      %1188 = vmatpush2.msra.mxu0 0.0
      %1189 = vmatprep.subr.mxu0 0.0
      %1190 = vmatpush2.msra.mxu0 0.0
      %1191 = vmatprep.subr.mxu0 0.0
      %1192 = vmatpush2.msra.mxu0 0.0
      %1193 = vmatprep.subr.mxu0 0.0
      %1194 = vmatpush2.msra.mxu0 0.0
      %1195 = vmatprep.subr.mxu0 0.0
      %1196 = vmatpush2.msra.mxu0 0.0
      %1197 = vmatprep.subr.mxu0 0.0
      %1198 = vmatpush2.msra.mxu0 0.0
      %1199 = vmatprep.subr.mxu0 0.0
      %1200 = vmatpush2.msra.mxu0 0.0
      %1201 = vmatprep.subr.mxu0 0.0
      %1202 = vmatpush2.msra.mxu0 0.0
      %1203 = vmatprep.mubr.f32.mxu0 0.0
      %1204 = vmatmul.mubr.f32.gmra.mxu0 %v993
      %v1205 = vpop.f32.mrf.mxu0
      %v1206 = vadd.f32 0.0, %v1205
      %v1207 = vpop.f32.mrf.mxu0
      %v1208 = vadd.f32 0.0, %v1207
      %1209 = vdwg.mxu0
      %v1210 = vadd.f32 %v1000, %v1135
      %v1211 = vadd.f32 %v1001, %v1137
      %v1212 = vadd.f32 %v1002, %v1206
      %v1213 = vadd.f32 %v1003, %v1208
      %s1214 = smul.u32 3, 4
      %s1215 = smul.addr %s1214, 8
      %s1216 = scalar_lea.vmem [#allocation3], %s1215
      %v1217 = vld [vmem:[%s1216] sm:$0xff]
      %v1218 = vld [vmem:[%s1216 + $0x8] sm:$0xff]
      %v1219 = vld [vmem:[%s1216 + $0x10] sm:$0xff]
      %v1220 = vld [vmem:[%s1216 + $0x18] sm:$0xff]
      %v1221 = vld [vmem:[%s7] sm:$0xff]
      %v1222 = vld [vmem:[%s7 + $0x8] sm:$0xff]
      %v1223 = vld [vmem:[%s7 + $0x10] sm:$0xff]
      %v1224 = vld [vmem:[%s7 + $0x18] sm:$0xff]
      %v1225 = vld [vmem:[%s7 + $0x20] sm:$0xff]
      %v1226 = vld [vmem:[%s7 + $0x28] sm:$0xff]
      %v1227 = vld [vmem:[%s7 + $0x30] sm:$0xff]
      %v1228 = vld [vmem:[%s7 + $0x38] sm:$0xff]
      %v1229 = vld [vmem:[%s7 + $0x40] sm:$0xff]
      %v1230 = vld [vmem:[%s7 + $0x48] sm:$0xff]
      %v1231 = vld [vmem:[%s7 + $0x50] sm:$0xff]
      %v1232 = vld [vmem:[%s7 + $0x58] sm:$0xff]
      %v1233 = vld [vmem:[%s7 + $0x60] sm:$0xff]
      %v1234 = vld [vmem:[%s7 + $0x68] sm:$0xff]
      %v1235 = vld [vmem:[%s7 + $0x70] sm:$0xff]
      %v1236 = vld [vmem:[%s7 + $0x78] sm:$0xff]
      %v1237 = vld [vmem:[%s7 + $0x80] sm:$0xff]
      %v1238 = vld [vmem:[%s7 + $0x88] sm:$0xff]
      %v1239 = vld [vmem:[%s7 + $0x90] sm:$0xff]
      %v1240 = vld [vmem:[%s7 + $0x98] sm:$0xff]
      %v1241 = vld [vmem:[%s7 + $0xa0] sm:$0xff]
      %v1242 = vld [vmem:[%s7 + $0xa8] sm:$0xff]
      %v1243 = vld [vmem:[%s7 + $0xb0] sm:$0xff]
      %v1244 = vld [vmem:[%s7 + $0xb8] sm:$0xff]
      %v1245 = vld [vmem:[%s7 + $0xc0] sm:$0xff]
      %v1246 = vld [vmem:[%s7 + $0xc8] sm:$0xff]
      %v1247 = vld [vmem:[%s7 + $0xd0] sm:$0xff]
      %v1248 = vld [vmem:[%s7 + $0xd8] sm:$0xff]
      %v1249 = vld [vmem:[%s7 + $0xe0] sm:$0xff]
      %v1250 = vld [vmem:[%s7 + $0xe8] sm:$0xff]
      %v1251 = vld [vmem:[%s7 + $0xf0] sm:$0xff]
      %v1252 = vld [vmem:[%s7 + $0xf8] sm:$0xff]
      %v1253 = vld [vmem:[%s7 + $0x100] sm:$0xff]
      %v1254 = vld [vmem:[%s7 + $0x108] sm:$0xff]
      %v1255 = vld [vmem:[%s7 + $0x110] sm:$0xff]
      %v1256 = vld [vmem:[%s7 + $0x118] sm:$0xff]
      %v1257 = vld [vmem:[%s7 + $0x120] sm:$0xff]
      %v1258 = vld [vmem:[%s7 + $0x128] sm:$0xff]
      %v1259 = vld [vmem:[%s7 + $0x130] sm:$0xff]
      %v1260 = vld [vmem:[%s7 + $0x138] sm:$0xff]
      %v1261 = vld [vmem:[%s7 + $0x140] sm:$0xff]
      %v1262 = vld [vmem:[%s7 + $0x148] sm:$0xff]
      %v1263 = vld [vmem:[%s7 + $0x150] sm:$0xff]
      %v1264 = vld [vmem:[%s7 + $0x158] sm:$0xff]
      %v1265 = vld [vmem:[%s7 + $0x160] sm:$0xff]
      %v1266 = vld [vmem:[%s7 + $0x168] sm:$0xff]
      %v1267 = vld [vmem:[%s7 + $0x170] sm:$0xff]
      %v1268 = vld [vmem:[%s7 + $0x178] sm:$0xff]
      %v1269 = vld [vmem:[%s7 + $0x180] sm:$0xff]
      %v1270 = vld [vmem:[%s7 + $0x188] sm:$0xff]
      %v1271 = vld [vmem:[%s7 + $0x190] sm:$0xff]
      %v1272 = vld [vmem:[%s7 + $0x198] sm:$0xff]
      %v1273 = vld [vmem:[%s7 + $0x1a0] sm:$0xff]
      %v1274 = vld [vmem:[%s7 + $0x1a8] sm:$0xff]
      %v1275 = vld [vmem:[%s7 + $0x1b0] sm:$0xff]
      %v1276 = vld [vmem:[%s7 + $0x1b8] sm:$0xff]
      %v1277 = vld [vmem:[%s7 + $0x1c0] sm:$0xff]
      %v1278 = vld [vmem:[%s7 + $0x1c8] sm:$0xff]
      %v1279 = vld [vmem:[%s7 + $0x1d0] sm:$0xff]
      %v1280 = vld [vmem:[%s7 + $0x1d8] sm:$0xff]
      %v1281 = vld [vmem:[%s7 + $0x1e0] sm:$0xff]
      %v1282 = vld [vmem:[%s7 + $0x1e8] sm:$0xff]
      %v1283 = vld [vmem:[%s7 + $0x1f0] sm:$0xff]
      %v1284 = vld [vmem:[%s7 + $0x1f8] sm:$0xff]
      %1285 = vmatprep.subr.mxu0 %v1282
      %1286 = vmatpush1.msra.mxu0 %v1281
      %1287 = vmatprep.subr.mxu0 %v1278
      %1288 = vmatpush1.msra.mxu0 %v1277
      %1289 = vmatprep.subr.mxu0 %v1274
      %1290 = vmatpush1.msra.mxu0 %v1273
      %1291 = vmatprep.subr.mxu0 %v1270
      %1292 = vmatpush1.msra.mxu0 %v1269
      %1293 = vmatprep.subr.mxu0 %v1266
      %1294 = vmatpush1.msra.mxu0 %v1265
      %1295 = vmatprep.subr.mxu0 %v1262
      %1296 = vmatpush1.msra.mxu0 %v1261
      %1297 = vmatprep.subr.mxu0 %v1258
      %1298 = vmatpush1.msra.mxu0 %v1257
      %1299 = vmatprep.subr.mxu0 %v1254
      %1300 = vmatpush1.msra.mxu0 %v1253
      %1301 = vmatprep.subr.mxu0 %v1250
      %1302 = vmatpush1.msra.mxu0 %v1249
      %1303 = vmatprep.subr.mxu0 %v1246
      %1304 = vmatpush1.msra.mxu0 %v1245
      %1305 = vmatprep.subr.mxu0 %v1242
      %1306 = vmatpush1.msra.mxu0 %v1241
      %1307 = vmatprep.subr.mxu0 %v1238
      %1308 = vmatpush1.msra.mxu0 %v1237
      %1309 = vmatprep.subr.mxu0 %v1234
      %1310 = vmatpush1.msra.mxu0 %v1233
      %1311 = vmatprep.subr.mxu0 %v1230
      %1312 = vmatpush1.msra.mxu0 %v1229
      %1313 = vmatprep.subr.mxu0 %v1226
      %1314 = vmatpush1.msra.mxu0 %v1225
      %1315 = vmatprep.subr.mxu0 %v1222
      %1316 = vmatpush1.msra.mxu0 %v1221
      %1317 = vmatprep.subr.mxu0 0.0
      %1318 = vmatpush2.msra.mxu0 0.0
      %1319 = vmatprep.subr.mxu0 0.0
      %1320 = vmatpush2.msra.mxu0 0.0
      %1321 = vmatprep.subr.mxu0 0.0
      %1322 = vmatpush2.msra.mxu0 0.0
      %1323 = vmatprep.subr.mxu0 0.0
      %1324 = vmatpush2.msra.mxu0 0.0
      %1325 = vmatprep.subr.mxu0 0.0
      %1326 = vmatpush2.msra.mxu0 0.0
      %1327 = vmatprep.subr.mxu0 0.0
      %1328 = vmatpush2.msra.mxu0 0.0
      %1329 = vmatprep.subr.mxu0 0.0
      %1330 = vmatpush2.msra.mxu0 0.0
      %1331 = vmatprep.subr.mxu0 0.0
      %1332 = vmatpush2.msra.mxu0 0.0
      %1333 = vmatprep.subr.mxu0 0.0
      %1334 = vmatpush2.msra.mxu0 0.0
      %1335 = vmatprep.subr.mxu0 0.0
      %1336 = vmatpush2.msra.mxu0 0.0
      %1337 = vmatprep.subr.mxu0 0.0
      %1338 = vmatpush2.msra.mxu0 0.0
      %1339 = vmatprep.subr.mxu0 0.0
      %1340 = vmatpush2.msra.mxu0 0.0
      %1341 = vmatprep.subr.mxu0 0.0
      %1342 = vmatpush2.msra.mxu0 0.0
      %1343 = vmatprep.subr.mxu0 0.0
      %1344 = vmatpush2.msra.mxu0 0.0
      %1345 = vmatprep.subr.mxu0 0.0
      %1346 = vmatpush2.msra.mxu0 0.0
      %1347 = vmatprep.subr.mxu0 0.0
      %1348 = vmatpush2.msra.mxu0 0.0
      %1349 = vmatprep.mubr.f32.mxu0 0.0
      %1350 = vmatmul.mubr.f32.gmra.mxu0 %v995
      %v1351 = vpop.f32.mrf.mxu0
      %v1352 = vadd.f32 0.0, %v1351
      %v1353 = vpop.f32.mrf.mxu0
      %v1354 = vadd.f32 0.0, %v1353
      %1355 = vdwg.mxu0
      %1356 = vmatprep.subr.mxu0 %v1284
      %1357 = vmatpush1.msra.mxu0 %v1283
      %1358 = vmatprep.subr.mxu0 %v1280
      %1359 = vmatpush1.msra.mxu0 %v1279
      %1360 = vmatprep.subr.mxu0 %v1276
      %1361 = vmatpush1.msra.mxu0 %v1275
      %1362 = vmatprep.subr.mxu0 %v1272
      %1363 = vmatpush1.msra.mxu0 %v1271
      %1364 = vmatprep.subr.mxu0 %v1268
      %1365 = vmatpush1.msra.mxu0 %v1267
      %1366 = vmatprep.subr.mxu0 %v1264
      %1367 = vmatpush1.msra.mxu0 %v1263
      %1368 = vmatprep.subr.mxu0 %v1260
      %1369 = vmatpush1.msra.mxu0 %v1259
      %1370 = vmatprep.subr.mxu0 %v1256
      %1371 = vmatpush1.msra.mxu0 %v1255
      %1372 = vmatprep.subr.mxu0 %v1252
      %1373 = vmatpush1.msra.mxu0 %v1251
      %1374 = vmatprep.subr.mxu0 %v1248
      %1375 = vmatpush1.msra.mxu0 %v1247
      %1376 = vmatprep.subr.mxu0 %v1244
      %1377 = vmatpush1.msra.mxu0 %v1243
      %1378 = vmatprep.subr.mxu0 %v1240
      %1379 = vmatpush1.msra.mxu0 %v1239
      %1380 = vmatprep.subr.mxu0 %v1236
      %1381 = vmatpush1.msra.mxu0 %v1235
      %1382 = vmatprep.subr.mxu0 %v1232
      %1383 = vmatpush1.msra.mxu0 %v1231
      %1384 = vmatprep.subr.mxu0 %v1228
      %1385 = vmatpush1.msra.mxu0 %v1227
      %1386 = vmatprep.subr.mxu0 %v1224
      %1387 = vmatpush1.msra.mxu0 %v1223
      %1388 = vmatprep.subr.mxu0 0.0
      %1389 = vmatpush2.msra.mxu0 0.0
      %1390 = vmatprep.subr.mxu0 0.0
      %1391 = vmatpush2.msra.mxu0 0.0
      %1392 = vmatprep.subr.mxu0 0.0
      %1393 = vmatpush2.msra.mxu0 0.0
      %1394 = vmatprep.subr.mxu0 0.0
      %1395 = vmatpush2.msra.mxu0 0.0
      %1396 = vmatprep.subr.mxu0 0.0
      %1397 = vmatpush2.msra.mxu0 0.0
      %1398 = vmatprep.subr.mxu0 0.0
      %1399 = vmatpush2.msra.mxu0 0.0
      %1400 = vmatprep.subr.mxu0 0.0
      %1401 = vmatpush2.msra.mxu0 0.0
      %1402 = vmatprep.subr.mxu0 0.0
      %1403 = vmatpush2.msra.mxu0 0.0
      %1404 = vmatprep.subr.mxu0 0.0
      %1405 = vmatpush2.msra.mxu0 0.0
      %1406 = vmatprep.subr.mxu0 0.0
      %1407 = vmatpush2.msra.mxu0 0.0
      %1408 = vmatprep.subr.mxu0 0.0
      %1409 = vmatpush2.msra.mxu0 0.0
      %1410 = vmatprep.subr.mxu0 0.0
      %1411 = vmatpush2.msra.mxu0 0.0
      %1412 = vmatprep.subr.mxu0 0.0
      %1413 = vmatpush2.msra.mxu0 0.0
      %1414 = vmatprep.subr.mxu0 0.0
      %1415 = vmatpush2.msra.mxu0 0.0
      %1416 = vmatprep.subr.mxu0 0.0
      %1417 = vmatpush2.msra.mxu0 0.0
      %1418 = vmatprep.subr.mxu0 0.0
      %1419 = vmatpush2.msra.mxu0 0.0
      %1420 = vmatprep.mubr.f32.mxu0 0.0
      %1421 = vmatmul.mubr.f32.gmra.mxu0 %v995
      %v1422 = vpop.f32.mrf.mxu0
      %v1423 = vadd.f32 0.0, %v1422
      %v1424 = vpop.f32.mrf.mxu0
      %v1425 = vadd.f32 0.0, %v1424
      %1426 = vdwg.mxu0
      %v1427 = vadd.f32 %v1217, %v1352
      %v1428 = vadd.f32 %v1218, %v1354
      %v1429 = vadd.f32 %v1219, %v1423
      %v1430 = vadd.f32 %v1220, %v1425
      %v1431 = vxor.u32 %v1210, 2147483648
      %v1432 = vxor.u32 %v1211, 2147483648
      %v1433 = vxor.u32 %v1212, 2147483648
      %v1434 = vmul.f32 %v1431, 1.442695
      %v1435 = vpow.pop %v1434
      %v1436 = vmul.f32 %v1432, 1.442695
      %v1437 = vpow.pop %v1436
      %v1438 = vmul.f32 %v1433, 1.442695
      %v1439 = vpow.pop %v1438
      %v1440 = vadd.f32 %v1435, 1.0
      %v1441 = vadd.f32 %v1437, 1.0
      %v1442 = vadd.f32 %v1439, 1.0
      %v1443 = vrcp.pop %v1440
      %v1444 = vmul.f32 1.0, %v1443
      %v1445 = vrcp.pop %v1441
      %v1446 = vmul.f32 1.0, %v1445
      %v1447 = vrcp.pop %v1442
      %v1448 = vmul.f32 1.0, %v1447
      %v1449 = vtanh.pop %v1213
      %v1450 = vmul.f32 %v1446, %v994
      %v1451 = vmul.f32 %v1444, %v1449
      %v1452 = vadd.f32 %v1450, %v1451
      %v1453 = vtanh.pop %v1452
      %v1454 = vmul.f32 %v1448, %v1453
      %v1455 = vxor.u32 %v1427, 2147483648
      %v1456 = vxor.u32 %v1428, 2147483648
      %v1457 = vxor.u32 %v1429, 2147483648
      %v1458 = vmul.f32 %v1455, 1.442695
      %v1459 = vpow.pop %v1458
      %v1460 = vmul.f32 %v1456, 1.442695
      %v1461 = vpow.pop %v1460
      %v1462 = vmul.f32 %v1457, 1.442695
      %v1463 = vpow.pop %v1462
      %v1464 = vadd.f32 %v1459, 1.0
      %v1465 = vadd.f32 %v1461, 1.0
      %v1466 = vadd.f32 %v1463, 1.0
      %v1467 = vrcp.pop %v1464
      %v1468 = vmul.f32 1.0, %v1467
      %v1469 = vrcp.pop %v1465
      %v1470 = vmul.f32 1.0, %v1469
      %v1471 = vrcp.pop %v1466
      %v1472 = vmul.f32 1.0, %v1471
      %v1473 = vtanh.pop %v1430
      %v1474 = vmul.f32 %v1470, %v996
      %v1475 = vmul.f32 %v1468, %v1473
      %v1476 = vadd.f32 %v1474, %v1475
      %v1477 = vtanh.pop %v1476
      %v1478 = vmul.f32 %v1472, %v1477
      %s1479 = smul.u32 1, 4
      %s1480 = smul.addr %s1479, 8
      %s1481 = scalar_lea.vmem [#allocation2], %s1480
      %v1482 = vld [vmem:[%s1481] sm:$0xff]
      %v1483 = vld [vmem:[%s1481 + $0x8] sm:$0xff]
      %v1484 = vld [vmem:[%s1481 + $0x10] sm:$0xff]
      %v1485 = vld [vmem:[%s1481 + $0x18] sm:$0xff]
      %1486 = vmatprep.subr.mxu0 %v1065
      %1487 = vmatpush1.msra.mxu0 %v1064
      %1488 = vmatprep.subr.mxu0 %v1061
      %1489 = vmatpush1.msra.mxu0 %v1060
      %1490 = vmatprep.subr.mxu0 %v1057
      %1491 = vmatpush1.msra.mxu0 %v1056
      %1492 = vmatprep.subr.mxu0 %v1053
      %1493 = vmatpush1.msra.mxu0 %v1052
      %1494 = vmatprep.subr.mxu0 %v1049
      %1495 = vmatpush1.msra.mxu0 %v1048
      %1496 = vmatprep.subr.mxu0 %v1045
      %1497 = vmatpush1.msra.mxu0 %v1044
      %1498 = vmatprep.subr.mxu0 %v1041
      %1499 = vmatpush1.msra.mxu0 %v1040
      %1500 = vmatprep.subr.mxu0 %v1037
      %1501 = vmatpush1.msra.mxu0 %v1036
      %1502 = vmatprep.subr.mxu0 %v1033
      %1503 = vmatpush1.msra.mxu0 %v1032
      %1504 = vmatprep.subr.mxu0 %v1029
      %1505 = vmatpush1.msra.mxu0 %v1028
      %1506 = vmatprep.subr.mxu0 %v1025
      %1507 = vmatpush1.msra.mxu0 %v1024
      %1508 = vmatprep.subr.mxu0 %v1021
      %1509 = vmatpush1.msra.mxu0 %v1020
      %1510 = vmatprep.subr.mxu0 %v1017
      %1511 = vmatpush1.msra.mxu0 %v1016
      %1512 = vmatprep.subr.mxu0 %v1013
      %1513 = vmatpush1.msra.mxu0 %v1012
      %1514 = vmatprep.subr.mxu0 %v1009
      %1515 = vmatpush1.msra.mxu0 %v1008
      %1516 = vmatprep.subr.mxu0 %v1005
      %1517 = vmatpush1.msra.mxu0 %v1004
      %1518 = vmatprep.subr.mxu0 0.0
      %1519 = vmatpush2.msra.mxu0 0.0
      %1520 = vmatprep.subr.mxu0 0.0
      %1521 = vmatpush2.msra.mxu0 0.0
      %1522 = vmatprep.subr.mxu0 0.0
      %1523 = vmatpush2.msra.mxu0 0.0
      %1524 = vmatprep.subr.mxu0 0.0
      %1525 = vmatpush2.msra.mxu0 0.0
      %1526 = vmatprep.subr.mxu0 0.0
      %1527 = vmatpush2.msra.mxu0 0.0
      %1528 = vmatprep.subr.mxu0 0.0
      %1529 = vmatpush2.msra.mxu0 0.0
      %1530 = vmatprep.subr.mxu0 0.0
      %1531 = vmatpush2.msra.mxu0 0.0
      %1532 = vmatprep.subr.mxu0 0.0
      %1533 = vmatpush2.msra.mxu0 0.0
      %1534 = vmatprep.subr.mxu0 0.0
      %1535 = vmatpush2.msra.mxu0 0.0
      %1536 = vmatprep.subr.mxu0 0.0
      %1537 = vmatpush2.msra.mxu0 0.0
      %1538 = vmatprep.subr.mxu0 0.0
      %1539 = vmatpush2.msra.mxu0 0.0
      %1540 = vmatprep.subr.mxu0 0.0
      %1541 = vmatpush2.msra.mxu0 0.0
      %1542 = vmatprep.subr.mxu0 0.0
      %1543 = vmatpush2.msra.mxu0 0.0
      %1544 = vmatprep.subr.mxu0 0.0
      %1545 = vmatpush2.msra.mxu0 0.0
      %1546 = vmatprep.subr.mxu0 0.0
      %1547 = vmatpush2.msra.mxu0 0.0
      %1548 = vmatprep.subr.mxu0 0.0
      %1549 = vmatpush2.msra.mxu0 0.0
      %1550 = vmatprep.mubr.f32.mxu0 0.0
      %1551 = vmatmul.mubr.f32.gmra.mxu0 %v1454
      %v1552 = vpop.f32.mrf.mxu0
      %v1553 = vadd.f32 0.0, %v1552
      %v1554 = vpop.f32.mrf.mxu0
      %v1555 = vadd.f32 0.0, %v1554
      %1556 = vdwg.mxu0
      %1557 = vmatprep.subr.mxu0 %v1067
      %1558 = vmatpush1.msra.mxu0 %v1066
      %1559 = vmatprep.subr.mxu0 %v1063
      %1560 = vmatpush1.msra.mxu0 %v1062
      %1561 = vmatprep.subr.mxu0 %v1059
      %1562 = vmatpush1.msra.mxu0 %v1058
      %1563 = vmatprep.subr.mxu0 %v1055
      %1564 = vmatpush1.msra.mxu0 %v1054
      %1565 = vmatprep.subr.mxu0 %v1051
      %1566 = vmatpush1.msra.mxu0 %v1050
      %1567 = vmatprep.subr.mxu0 %v1047
      %1568 = vmatpush1.msra.mxu0 %v1046
      %1569 = vmatprep.subr.mxu0 %v1043
      %1570 = vmatpush1.msra.mxu0 %v1042
      %1571 = vmatprep.subr.mxu0 %v1039
      %1572 = vmatpush1.msra.mxu0 %v1038
      %1573 = vmatprep.subr.mxu0 %v1035
      %1574 = vmatpush1.msra.mxu0 %v1034
      %1575 = vmatprep.subr.mxu0 %v1031
      %1576 = vmatpush1.msra.mxu0 %v1030
      %1577 = vmatprep.subr.mxu0 %v1027
      %1578 = vmatpush1.msra.mxu0 %v1026
      %1579 = vmatprep.subr.mxu0 %v1023
      %1580 = vmatpush1.msra.mxu0 %v1022
      %1581 = vmatprep.subr.mxu0 %v1019
      %1582 = vmatpush1.msra.mxu0 %v1018
      %1583 = vmatprep.subr.mxu0 %v1015
      %1584 = vmatpush1.msra.mxu0 %v1014
      %1585 = vmatprep.subr.mxu0 %v1011
      %1586 = vmatpush1.msra.mxu0 %v1010
      %1587 = vmatprep.subr.mxu0 %v1007
      %1588 = vmatpush1.msra.mxu0 %v1006
      %1589 = vmatprep.subr.mxu0 0.0
      %1590 = vmatpush2.msra.mxu0 0.0
      %1591 = vmatprep.subr.mxu0 0.0
      %1592 = vmatpush2.msra.mxu0 0.0
      %1593 = vmatprep.subr.mxu0 0.0
      %1594 = vmatpush2.msra.mxu0 0.0
      %1595 = vmatprep.subr.mxu0 0.0
      %1596 = vmatpush2.msra.mxu0 0.0
      %1597 = vmatprep.subr.mxu0 0.0
      %1598 = vmatpush2.msra.mxu0 0.0
      %1599 = vmatprep.subr.mxu0 0.0
      %1600 = vmatpush2.msra.mxu0 0.0
      %1601 = vmatprep.subr.mxu0 0.0
      %1602 = vmatpush2.msra.mxu0 0.0
      %1603 = vmatprep.subr.mxu0 0.0
      %1604 = vmatpush2.msra.mxu0 0.0
      %1605 = vmatprep.subr.mxu0 0.0
      %1606 = vmatpush2.msra.mxu0 0.0
      %1607 = vmatprep.subr.mxu0 0.0
      %1608 = vmatpush2.msra.mxu0 0.0
      %1609 = vmatprep.subr.mxu0 0.0
      %1610 = vmatpush2.msra.mxu0 0.0
      %1611 = vmatprep.subr.mxu0 0.0
      %1612 = vmatpush2.msra.mxu0 0.0
      %1613 = vmatprep.subr.mxu0 0.0
      %1614 = vmatpush2.msra.mxu0 0.0
      %1615 = vmatprep.subr.mxu0 0.0
      %1616 = vmatpush2.msra.mxu0 0.0
      %1617 = vmatprep.subr.mxu0 0.0
      %1618 = vmatpush2.msra.mxu0 0.0
      %1619 = vmatprep.subr.mxu0 0.0
      %1620 = vmatpush2.msra.mxu0 0.0
      %1621 = vmatprep.mubr.f32.mxu0 0.0
      %1622 = vmatmul.mubr.f32.gmra.mxu0 %v1454
      %v1623 = vpop.f32.mrf.mxu0
      %v1624 = vadd.f32 0.0, %v1623
      %v1625 = vpop.f32.mrf.mxu0
      %v1626 = vadd.f32 0.0, %v1625
      %1627 = vdwg.mxu0
      %v1628 = vadd.f32 %v1482, %v1553
      %v1629 = vadd.f32 %v1483, %v1555
      %v1630 = vadd.f32 %v1484, %v1624
      %v1631 = vadd.f32 %v1485, %v1626
      %s1632 = smul.u32 2, 4
      %s1633 = smul.addr %s1632, 8
      %s1634 = scalar_lea.vmem [#allocation3], %s1633
      %v1635 = vld [vmem:[%s1634] sm:$0xff]
      %v1636 = vld [vmem:[%s1634 + $0x8] sm:$0xff]
      %v1637 = vld [vmem:[%s1634 + $0x10] sm:$0xff]
      %v1638 = vld [vmem:[%s1634 + $0x18] sm:$0xff]
      %1639 = vmatprep.subr.mxu0 %v1282
      %1640 = vmatpush1.msra.mxu0 %v1281
      %1641 = vmatprep.subr.mxu0 %v1278
      %1642 = vmatpush1.msra.mxu0 %v1277
      %1643 = vmatprep.subr.mxu0 %v1274
      %1644 = vmatpush1.msra.mxu0 %v1273
      %1645 = vmatprep.subr.mxu0 %v1270
      %1646 = vmatpush1.msra.mxu0 %v1269
      %1647 = vmatprep.subr.mxu0 %v1266
      %1648 = vmatpush1.msra.mxu0 %v1265
      %1649 = vmatprep.subr.mxu0 %v1262
      %1650 = vmatpush1.msra.mxu0 %v1261
      %1651 = vmatprep.subr.mxu0 %v1258
      %1652 = vmatpush1.msra.mxu0 %v1257
      %1653 = vmatprep.subr.mxu0 %v1254
      %1654 = vmatpush1.msra.mxu0 %v1253
      %1655 = vmatprep.subr.mxu0 %v1250
      %1656 = vmatpush1.msra.mxu0 %v1249
      %1657 = vmatprep.subr.mxu0 %v1246
      %1658 = vmatpush1.msra.mxu0 %v1245
      %1659 = vmatprep.subr.mxu0 %v1242
      %1660 = vmatpush1.msra.mxu0 %v1241
      %1661 = vmatprep.subr.mxu0 %v1238
      %1662 = vmatpush1.msra.mxu0 %v1237
      %1663 = vmatprep.subr.mxu0 %v1234
      %1664 = vmatpush1.msra.mxu0 %v1233
      %1665 = vmatprep.subr.mxu0 %v1230
      %1666 = vmatpush1.msra.mxu0 %v1229
      %1667 = vmatprep.subr.mxu0 %v1226
      %1668 = vmatpush1.msra.mxu0 %v1225
      %1669 = vmatprep.subr.mxu0 %v1222
      %1670 = vmatpush1.msra.mxu0 %v1221
      %1671 = vmatprep.subr.mxu0 0.0
      %1672 = vmatpush2.msra.mxu0 0.0
      %1673 = vmatprep.subr.mxu0 0.0
      %1674 = vmatpush2.msra.mxu0 0.0
      %1675 = vmatprep.subr.mxu0 0.0
      %1676 = vmatpush2.msra.mxu0 0.0
      %1677 = vmatprep.subr.mxu0 0.0
      %1678 = vmatpush2.msra.mxu0 0.0
      %1679 = vmatprep.subr.mxu0 0.0
      %1680 = vmatpush2.msra.mxu0 0.0
      %1681 = vmatprep.subr.mxu0 0.0
      %1682 = vmatpush2.msra.mxu0 0.0
      %1683 = vmatprep.subr.mxu0 0.0
      %1684 = vmatpush2.msra.mxu0 0.0
      %1685 = vmatprep.subr.mxu0 0.0
      %1686 = vmatpush2.msra.mxu0 0.0
      %1687 = vmatprep.subr.mxu0 0.0
      %1688 = vmatpush2.msra.mxu0 0.0
      %1689 = vmatprep.subr.mxu0 0.0
      %1690 = vmatpush2.msra.mxu0 0.0
      %1691 = vmatprep.subr.mxu0 0.0
      %1692 = vmatpush2.msra.mxu0 0.0
      %1693 = vmatprep.subr.mxu0 0.0
      %1694 = vmatpush2.msra.mxu0 0.0
      %1695 = vmatprep.subr.mxu0 0.0
      %1696 = vmatpush2.msra.mxu0 0.0
      %1697 = vmatprep.subr.mxu0 0.0
      %1698 = vmatpush2.msra.mxu0 0.0
      %1699 = vmatprep.subr.mxu0 0.0
      %1700 = vmatpush2.msra.mxu0 0.0
      %1701 = vmatprep.subr.mxu0 0.0
      %1702 = vmatpush2.msra.mxu0 0.0
      %1703 = vmatprep.mubr.f32.mxu0 0.0
      %1704 = vmatmul.mubr.f32.gmra.mxu0 %v1478
      %v1705 = vpop.f32.mrf.mxu0
      %v1706 = vadd.f32 0.0, %v1705
      %v1707 = vpop.f32.mrf.mxu0
      %v1708 = vadd.f32 0.0, %v1707
      %1709 = vdwg.mxu0
      %1710 = vmatprep.subr.mxu0 %v1284
      %1711 = vmatpush1.msra.mxu0 %v1283
      %1712 = vmatprep.subr.mxu0 %v1280
      %1713 = vmatpush1.msra.mxu0 %v1279
      %1714 = vmatprep.subr.mxu0 %v1276
      %1715 = vmatpush1.msra.mxu0 %v1275
      %1716 = vmatprep.subr.mxu0 %v1272
      %1717 = vmatpush1.msra.mxu0 %v1271
      %1718 = vmatprep.subr.mxu0 %v1268
      %1719 = vmatpush1.msra.mxu0 %v1267
      %1720 = vmatprep.subr.mxu0 %v1264
      %1721 = vmatpush1.msra.mxu0 %v1263
      %1722 = vmatprep.subr.mxu0 %v1260
      %1723 = vmatpush1.msra.mxu0 %v1259
      %1724 = vmatprep.subr.mxu0 %v1256
      %1725 = vmatpush1.msra.mxu0 %v1255
      %1726 = vmatprep.subr.mxu0 %v1252
      %1727 = vmatpush1.msra.mxu0 %v1251
      %1728 = vmatprep.subr.mxu0 %v1248
      %1729 = vmatpush1.msra.mxu0 %v1247
      %1730 = vmatprep.subr.mxu0 %v1244
      %1731 = vmatpush1.msra.mxu0 %v1243
      %1732 = vmatprep.subr.mxu0 %v1240
      %1733 = vmatpush1.msra.mxu0 %v1239
      %1734 = vmatprep.subr.mxu0 %v1236
      %1735 = vmatpush1.msra.mxu0 %v1235
      %1736 = vmatprep.subr.mxu0 %v1232
      %1737 = vmatpush1.msra.mxu0 %v1231
      %1738 = vmatprep.subr.mxu0 %v1228
      %1739 = vmatpush1.msra.mxu0 %v1227
      %1740 = vmatprep.subr.mxu0 %v1224
      %1741 = vmatpush1.msra.mxu0 %v1223
      %1742 = vmatprep.subr.mxu0 0.0
      %1743 = vmatpush2.msra.mxu0 0.0
      %1744 = vmatprep.subr.mxu0 0.0
      %1745 = vmatpush2.msra.mxu0 0.0
      %1746 = vmatprep.subr.mxu0 0.0
      %1747 = vmatpush2.msra.mxu0 0.0
      %1748 = vmatprep.subr.mxu0 0.0
      %1749 = vmatpush2.msra.mxu0 0.0
      %1750 = vmatprep.subr.mxu0 0.0
      %1751 = vmatpush2.msra.mxu0 0.0
      %1752 = vmatprep.subr.mxu0 0.0
      %1753 = vmatpush2.msra.mxu0 0.0
      %1754 = vmatprep.subr.mxu0 0.0
      %1755 = vmatpush2.msra.mxu0 0.0
      %1756 = vmatprep.subr.mxu0 0.0
      %1757 = vmatpush2.msra.mxu0 0.0
      %1758 = vmatprep.subr.mxu0 0.0
      %1759 = vmatpush2.msra.mxu0 0.0
      %1760 = vmatprep.subr.mxu0 0.0
      %1761 = vmatpush2.msra.mxu0 0.0
      %1762 = vmatprep.subr.mxu0 0.0
      %1763 = vmatpush2.msra.mxu0 0.0
      %1764 = vmatprep.subr.mxu0 0.0
      %1765 = vmatpush2.msra.mxu0 0.0
      %1766 = vmatprep.subr.mxu0 0.0
      %1767 = vmatpush2.msra.mxu0 0.0
      %1768 = vmatprep.subr.mxu0 0.0
      %1769 = vmatpush2.msra.mxu0 0.0
      %1770 = vmatprep.subr.mxu0 0.0
      %1771 = vmatpush2.msra.mxu0 0.0
      %1772 = vmatprep.subr.mxu0 0.0
      %1773 = vmatpush2.msra.mxu0 0.0
      %1774 = vmatprep.mubr.f32.mxu0 0.0
      %1775 = vmatmul.mubr.f32.gmra.mxu0 %v1478
      %v1776 = vpop.f32.mrf.mxu0
      %v1777 = vadd.f32 0.0, %v1776
      %v1778 = vpop.f32.mrf.mxu0
      %v1779 = vadd.f32 0.0, %v1778
      %1780 = vdwg.mxu0
      %v1781 = vadd.f32 %v1635, %v1706
      %v1782 = vadd.f32 %v1636, %v1708
      %v1783 = vadd.f32 %v1637, %v1777
      %v1784 = vadd.f32 %v1638, %v1779
      %v1785 = vxor.u32 %v1628, 2147483648
      %v1786 = vxor.u32 %v1629, 2147483648
      %v1787 = vxor.u32 %v1630, 2147483648
      %v1788 = vmul.f32 %v1785, 1.442695
      %v1789 = vpow.pop %v1788
      %v1790 = vmul.f32 %v1786, 1.442695
      %v1791 = vpow.pop %v1790
      %v1792 = vmul.f32 %v1787, 1.442695
      %v1793 = vpow.pop %v1792
      %v1794 = vadd.f32 %v1789, 1.0
      %v1795 = vadd.f32 %v1791, 1.0
      %v1796 = vadd.f32 %v1793, 1.0
      %v1797 = vrcp.pop %v1794
      %v1798 = vmul.f32 1.0, %v1797
      %v1799 = vrcp.pop %v1795
      %v1800 = vmul.f32 1.0, %v1799
      %v1801 = vrcp.pop %v1796
      %v1802 = vmul.f32 1.0, %v1801
      %v1803 = vtanh.pop %v1631
      %v1804 = vmul.f32 %v1800, %v1452
      %v1805 = vmul.f32 %v1798, %v1803
      %v1806 = vadd.f32 %v1804, %v1805
      %v1807 = vtanh.pop %v1806
      %v1808 = vmul.f32 %v1802, %v1807
      %v1809 = vxor.u32 %v1781, 2147483648
      %v1810 = vxor.u32 %v1782, 2147483648
      %v1811 = vxor.u32 %v1783, 2147483648
      %v1812 = vmul.f32 %v1809, 1.442695
      %v1813 = vpow.pop %v1812
      %v1814 = vmul.f32 %v1810, 1.442695
      %v1815 = vpow.pop %v1814
      %v1816 = vmul.f32 %v1811, 1.442695
      %v1817 = vpow.pop %v1816
      %v1818 = vadd.f32 %v1813, 1.0
      %v1819 = vadd.f32 %v1815, 1.0
      %v1820 = vadd.f32 %v1817, 1.0
      %v1821 = vrcp.pop %v1818
      %v1822 = vmul.f32 1.0, %v1821
      %v1823 = vrcp.pop %v1819
      %v1824 = vmul.f32 1.0, %v1823
      %v1825 = vrcp.pop %v1820
      %v1826 = vmul.f32 1.0, %v1825
      %v1827 = vtanh.pop %v1784
      %v1828 = vmul.f32 %v1824, %v1476
      %v1829 = vmul.f32 %v1822, %v1827
      %v1830 = vadd.f32 %v1828, %v1829
      %v1831 = vtanh.pop %v1830
      %v1832 = vmul.f32 %v1826, %v1831
      %s1833 = smul.addr %s1632, 8
      %s1834 = scalar_lea.vmem [#allocation2], %s1833
      %v1835 = vld [vmem:[%s1834] sm:$0xff]
      %v1836 = vld [vmem:[%s1834 + $0x8] sm:$0xff]
      %v1837 = vld [vmem:[%s1834 + $0x10] sm:$0xff]
      %v1838 = vld [vmem:[%s1834 + $0x18] sm:$0xff]
      %1839 = vmatprep.subr.mxu0 %v1065
      %1840 = vmatpush1.msra.mxu0 %v1064
      %1841 = vmatprep.subr.mxu0 %v1061
      %1842 = vmatpush1.msra.mxu0 %v1060
      %1843 = vmatprep.subr.mxu0 %v1057
      %1844 = vmatpush1.msra.mxu0 %v1056
      %1845 = vmatprep.subr.mxu0 %v1053
      %1846 = vmatpush1.msra.mxu0 %v1052
      %1847 = vmatprep.subr.mxu0 %v1049
      %1848 = vmatpush1.msra.mxu0 %v1048
      %1849 = vmatprep.subr.mxu0 %v1045
      %1850 = vmatpush1.msra.mxu0 %v1044
      %1851 = vmatprep.subr.mxu0 %v1041
      %1852 = vmatpush1.msra.mxu0 %v1040
      %1853 = vmatprep.subr.mxu0 %v1037
      %1854 = vmatpush1.msra.mxu0 %v1036
      %1855 = vmatprep.subr.mxu0 %v1033
      %1856 = vmatpush1.msra.mxu0 %v1032
      %1857 = vmatprep.subr.mxu0 %v1029
      %1858 = vmatpush1.msra.mxu0 %v1028
      %1859 = vmatprep.subr.mxu0 %v1025
      %1860 = vmatpush1.msra.mxu0 %v1024
      %1861 = vmatprep.subr.mxu0 %v1021
      %1862 = vmatpush1.msra.mxu0 %v1020
      %1863 = vmatprep.subr.mxu0 %v1017
      %1864 = vmatpush1.msra.mxu0 %v1016
      %1865 = vmatprep.subr.mxu0 %v1013
      %1866 = vmatpush1.msra.mxu0 %v1012
      %1867 = vmatprep.subr.mxu0 %v1009
      %1868 = vmatpush1.msra.mxu0 %v1008
      %1869 = vmatprep.subr.mxu0 %v1005
      %1870 = vmatpush1.msra.mxu0 %v1004
      %1871 = vmatprep.subr.mxu0 0.0
      %1872 = vmatpush2.msra.mxu0 0.0
      %1873 = vmatprep.subr.mxu0 0.0
      %1874 = vmatpush2.msra.mxu0 0.0
      %1875 = vmatprep.subr.mxu0 0.0
      %1876 = vmatpush2.msra.mxu0 0.0
      %1877 = vmatprep.subr.mxu0 0.0
      %1878 = vmatpush2.msra.mxu0 0.0
      %1879 = vmatprep.subr.mxu0 0.0
      %1880 = vmatpush2.msra.mxu0 0.0
      %1881 = vmatprep.subr.mxu0 0.0
      %1882 = vmatpush2.msra.mxu0 0.0
      %1883 = vmatprep.subr.mxu0 0.0
      %1884 = vmatpush2.msra.mxu0 0.0
      %1885 = vmatprep.subr.mxu0 0.0
      %1886 = vmatpush2.msra.mxu0 0.0
      %1887 = vmatprep.subr.mxu0 0.0
      %1888 = vmatpush2.msra.mxu0 0.0
      %1889 = vmatprep.subr.mxu0 0.0
      %1890 = vmatpush2.msra.mxu0 0.0
      %1891 = vmatprep.subr.mxu0 0.0
      %1892 = vmatpush2.msra.mxu0 0.0
      %1893 = vmatprep.subr.mxu0 0.0
      %1894 = vmatpush2.msra.mxu0 0.0
      %1895 = vmatprep.subr.mxu0 0.0
      %1896 = vmatpush2.msra.mxu0 0.0
      %1897 = vmatprep.subr.mxu0 0.0
      %1898 = vmatpush2.msra.mxu0 0.0
      %1899 = vmatprep.subr.mxu0 0.0
      %1900 = vmatpush2.msra.mxu0 0.0
      %1901 = vmatprep.subr.mxu0 0.0
      %1902 = vmatpush2.msra.mxu0 0.0
      %1903 = vmatprep.mubr.f32.mxu0 0.0
      %1904 = vmatmul.mubr.f32.gmra.mxu0 %v1808
      %v1905 = vpop.f32.mrf.mxu0
      %v1906 = vadd.f32 0.0, %v1905
      %v1907 = vpop.f32.mrf.mxu0
      %v1908 = vadd.f32 0.0, %v1907
      %1909 = vdwg.mxu0
      %1910 = vmatprep.subr.mxu0 %v1067
      %1911 = vmatpush1.msra.mxu0 %v1066
      %1912 = vmatprep.subr.mxu0 %v1063
      %1913 = vmatpush1.msra.mxu0 %v1062
      %1914 = vmatprep.subr.mxu0 %v1059
      %1915 = vmatpush1.msra.mxu0 %v1058
      %1916 = vmatprep.subr.mxu0 %v1055
      %1917 = vmatpush1.msra.mxu0 %v1054
      %1918 = vmatprep.subr.mxu0 %v1051
      %1919 = vmatpush1.msra.mxu0 %v1050
      %1920 = vmatprep.subr.mxu0 %v1047
      %1921 = vmatpush1.msra.mxu0 %v1046
      %1922 = vmatprep.subr.mxu0 %v1043
      %1923 = vmatpush1.msra.mxu0 %v1042
      %1924 = vmatprep.subr.mxu0 %v1039
      %1925 = vmatpush1.msra.mxu0 %v1038
      %1926 = vmatprep.subr.mxu0 %v1035
      %1927 = vmatpush1.msra.mxu0 %v1034
      %1928 = vmatprep.subr.mxu0 %v1031
      %1929 = vmatpush1.msra.mxu0 %v1030
      %1930 = vmatprep.subr.mxu0 %v1027
      %1931 = vmatpush1.msra.mxu0 %v1026
      %1932 = vmatprep.subr.mxu0 %v1023
      %1933 = vmatpush1.msra.mxu0 %v1022
      %1934 = vmatprep.subr.mxu0 %v1019
      %1935 = vmatpush1.msra.mxu0 %v1018
      %1936 = vmatprep.subr.mxu0 %v1015
      %1937 = vmatpush1.msra.mxu0 %v1014
      %1938 = vmatprep.subr.mxu0 %v1011
      %1939 = vmatpush1.msra.mxu0 %v1010
      %1940 = vmatprep.subr.mxu0 %v1007
      %1941 = vmatpush1.msra.mxu0 %v1006
      %1942 = vmatprep.subr.mxu0 0.0
      %1943 = vmatpush2.msra.mxu0 0.0
      %1944 = vmatprep.subr.mxu0 0.0
      %1945 = vmatpush2.msra.mxu0 0.0
      %1946 = vmatprep.subr.mxu0 0.0
      %1947 = vmatpush2.msra.mxu0 0.0
      %1948 = vmatprep.subr.mxu0 0.0
      %1949 = vmatpush2.msra.mxu0 0.0
      %1950 = vmatprep.subr.mxu0 0.0
      %1951 = vmatpush2.msra.mxu0 0.0
      %1952 = vmatprep.subr.mxu0 0.0
      %1953 = vmatpush2.msra.mxu0 0.0
      %1954 = vmatprep.subr.mxu0 0.0
      %1955 = vmatpush2.msra.mxu0 0.0
      %1956 = vmatprep.subr.mxu0 0.0
      %1957 = vmatpush2.msra.mxu0 0.0
      %1958 = vmatprep.subr.mxu0 0.0
      %1959 = vmatpush2.msra.mxu0 0.0
      %1960 = vmatprep.subr.mxu0 0.0
      %1961 = vmatpush2.msra.mxu0 0.0
      %1962 = vmatprep.subr.mxu0 0.0
      %1963 = vmatpush2.msra.mxu0 0.0
      %1964 = vmatprep.subr.mxu0 0.0
      %1965 = vmatpush2.msra.mxu0 0.0
      %1966 = vmatprep.subr.mxu0 0.0
      %1967 = vmatpush2.msra.mxu0 0.0
      %1968 = vmatprep.subr.mxu0 0.0
      %1969 = vmatpush2.msra.mxu0 0.0
      %1970 = vmatprep.subr.mxu0 0.0
      %1971 = vmatpush2.msra.mxu0 0.0
      %1972 = vmatprep.subr.mxu0 0.0
      %1973 = vmatpush2.msra.mxu0 0.0
      %1974 = vmatprep.mubr.f32.mxu0 0.0
      %1975 = vmatmul.mubr.f32.gmra.mxu0 %v1808
      %v1976 = vpop.f32.mrf.mxu0
      %v1977 = vadd.f32 0.0, %v1976
      %v1978 = vpop.f32.mrf.mxu0
      %v1979 = vadd.f32 0.0, %v1978
      %1980 = vdwg.mxu0
      %v1981 = vadd.f32 %v1835, %v1906
      %v1982 = vadd.f32 %v1836, %v1908
      %v1983 = vadd.f32 %v1837, %v1977
      %v1984 = vadd.f32 %v1838, %v1979
      %s1985 = smul.addr %s1479, 8
      %s1986 = scalar_lea.vmem [#allocation3], %s1985
      %v1987 = vld [vmem:[%s1986] sm:$0xff]
      %v1988 = vld [vmem:[%s1986 + $0x8] sm:$0xff]
      %v1989 = vld [vmem:[%s1986 + $0x10] sm:$0xff]
      %v1990 = vld [vmem:[%s1986 + $0x18] sm:$0xff]
      %1991 = vmatprep.subr.mxu0 %v1282
      %1992 = vmatpush1.msra.mxu0 %v1281
      %1993 = vmatprep.subr.mxu0 %v1278
      %1994 = vmatpush1.msra.mxu0 %v1277
      %1995 = vmatprep.subr.mxu0 %v1274
      %1996 = vmatpush1.msra.mxu0 %v1273
      %1997 = vmatprep.subr.mxu0 %v1270
      %1998 = vmatpush1.msra.mxu0 %v1269
      %1999 = vmatprep.subr.mxu0 %v1266
      %2000 = vmatpush1.msra.mxu0 %v1265
      %2001 = vmatprep.subr.mxu0 %v1262
      %2002 = vmatpush1.msra.mxu0 %v1261
      %2003 = vmatprep.subr.mxu0 %v1258
      %2004 = vmatpush1.msra.mxu0 %v1257
      %2005 = vmatprep.subr.mxu0 %v1254
      %2006 = vmatpush1.msra.mxu0 %v1253
      %2007 = vmatprep.subr.mxu0 %v1250
      %2008 = vmatpush1.msra.mxu0 %v1249
      %2009 = vmatprep.subr.mxu0 %v1246
      %2010 = vmatpush1.msra.mxu0 %v1245
      %2011 = vmatprep.subr.mxu0 %v1242
      %2012 = vmatpush1.msra.mxu0 %v1241
      %2013 = vmatprep.subr.mxu0 %v1238
      %2014 = vmatpush1.msra.mxu0 %v1237
      %2015 = vmatprep.subr.mxu0 %v1234
      %2016 = vmatpush1.msra.mxu0 %v1233
      %2017 = vmatprep.subr.mxu0 %v1230
      %2018 = vmatpush1.msra.mxu0 %v1229
      %2019 = vmatprep.subr.mxu0 %v1226
      %2020 = vmatpush1.msra.mxu0 %v1225
      %2021 = vmatprep.subr.mxu0 %v1222
      %2022 = vmatpush1.msra.mxu0 %v1221
      %2023 = vmatprep.subr.mxu0 0.0
      %2024 = vmatpush2.msra.mxu0 0.0
      %2025 = vmatprep.subr.mxu0 0.0
      %2026 = vmatpush2.msra.mxu0 0.0
      %2027 = vmatprep.subr.mxu0 0.0
      %2028 = vmatpush2.msra.mxu0 0.0
      %2029 = vmatprep.subr.mxu0 0.0
      %2030 = vmatpush2.msra.mxu0 0.0
      %2031 = vmatprep.subr.mxu0 0.0
      %2032 = vmatpush2.msra.mxu0 0.0
      %2033 = vmatprep.subr.mxu0 0.0
      %2034 = vmatpush2.msra.mxu0 0.0
      %2035 = vmatprep.subr.mxu0 0.0
      %2036 = vmatpush2.msra.mxu0 0.0
      %2037 = vmatprep.subr.mxu0 0.0
      %2038 = vmatpush2.msra.mxu0 0.0
      %2039 = vmatprep.subr.mxu0 0.0
      %2040 = vmatpush2.msra.mxu0 0.0
      %2041 = vmatprep.subr.mxu0 0.0
      %2042 = vmatpush2.msra.mxu0 0.0
      %2043 = vmatprep.subr.mxu0 0.0
      %2044 = vmatpush2.msra.mxu0 0.0
      %2045 = vmatprep.subr.mxu0 0.0
      %2046 = vmatpush2.msra.mxu0 0.0
      %2047 = vmatprep.subr.mxu0 0.0
      %2048 = vmatpush2.msra.mxu0 0.0
      %2049 = vmatprep.subr.mxu0 0.0
      %2050 = vmatpush2.msra.mxu0 0.0
      %2051 = vmatprep.subr.mxu0 0.0
      %2052 = vmatpush2.msra.mxu0 0.0
      %2053 = vmatprep.subr.mxu0 0.0
      %2054 = vmatpush2.msra.mxu0 0.0
      %2055 = vmatprep.mubr.f32.mxu0 0.0
      %2056 = vmatmul.mubr.f32.gmra.mxu0 %v1832
      %v2057 = vpop.f32.mrf.mxu0
      %v2058 = vadd.f32 0.0, %v2057
      %v2059 = vpop.f32.mrf.mxu0
      %v2060 = vadd.f32 0.0, %v2059
      %2061 = vdwg.mxu0
      %2062 = vmatprep.subr.mxu0 %v1284
      %2063 = vmatpush1.msra.mxu0 %v1283
      %2064 = vmatprep.subr.mxu0 %v1280
      %2065 = vmatpush1.msra.mxu0 %v1279
      %2066 = vmatprep.subr.mxu0 %v1276
      %2067 = vmatpush1.msra.mxu0 %v1275
      %2068 = vmatprep.subr.mxu0 %v1272
      %2069 = vmatpush1.msra.mxu0 %v1271
      %2070 = vmatprep.subr.mxu0 %v1268
      %2071 = vmatpush1.msra.mxu0 %v1267
      %2072 = vmatprep.subr.mxu0 %v1264
      %2073 = vmatpush1.msra.mxu0 %v1263
      %2074 = vmatprep.subr.mxu0 %v1260
      %2075 = vmatpush1.msra.mxu0 %v1259
      %2076 = vmatprep.subr.mxu0 %v1256
      %2077 = vmatpush1.msra.mxu0 %v1255
      %2078 = vmatprep.subr.mxu0 %v1252
      %2079 = vmatpush1.msra.mxu0 %v1251
      %2080 = vmatprep.subr.mxu0 %v1248
      %2081 = vmatpush1.msra.mxu0 %v1247
      %2082 = vmatprep.subr.mxu0 %v1244
      %2083 = vmatpush1.msra.mxu0 %v1243
      %2084 = vmatprep.subr.mxu0 %v1240
      %2085 = vmatpush1.msra.mxu0 %v1239
      %2086 = vmatprep.subr.mxu0 %v1236
      %2087 = vmatpush1.msra.mxu0 %v1235
      %2088 = vmatprep.subr.mxu0 %v1232
      %2089 = vmatpush1.msra.mxu0 %v1231
      %2090 = vmatprep.subr.mxu0 %v1228
      %2091 = vmatpush1.msra.mxu0 %v1227
      %2092 = vmatprep.subr.mxu0 %v1224
      %2093 = vmatpush1.msra.mxu0 %v1223
      %2094 = vmatprep.subr.mxu0 0.0
      %2095 = vmatpush2.msra.mxu0 0.0
      %2096 = vmatprep.subr.mxu0 0.0
      %2097 = vmatpush2.msra.mxu0 0.0
      %2098 = vmatprep.subr.mxu0 0.0
      %2099 = vmatpush2.msra.mxu0 0.0
      %2100 = vmatprep.subr.mxu0 0.0
      %2101 = vmatpush2.msra.mxu0 0.0
      %2102 = vmatprep.subr.mxu0 0.0
      %2103 = vmatpush2.msra.mxu0 0.0
      %2104 = vmatprep.subr.mxu0 0.0
      %2105 = vmatpush2.msra.mxu0 0.0
      %2106 = vmatprep.subr.mxu0 0.0
      %2107 = vmatpush2.msra.mxu0 0.0
      %2108 = vmatprep.subr.mxu0 0.0
      %2109 = vmatpush2.msra.mxu0 0.0
      %2110 = vmatprep.subr.mxu0 0.0
      %2111 = vmatpush2.msra.mxu0 0.0
      %2112 = vmatprep.subr.mxu0 0.0
      %2113 = vmatpush2.msra.mxu0 0.0
      %2114 = vmatprep.subr.mxu0 0.0
      %2115 = vmatpush2.msra.mxu0 0.0
      %2116 = vmatprep.subr.mxu0 0.0
      %2117 = vmatpush2.msra.mxu0 0.0
      %2118 = vmatprep.subr.mxu0 0.0
      %2119 = vmatpush2.msra.mxu0 0.0
      %2120 = vmatprep.subr.mxu0 0.0
      %2121 = vmatpush2.msra.mxu0 0.0
      %2122 = vmatprep.subr.mxu0 0.0
      %2123 = vmatpush2.msra.mxu0 0.0
      %2124 = vmatprep.subr.mxu0 0.0
      %2125 = vmatpush2.msra.mxu0 0.0
      %2126 = vmatprep.mubr.f32.mxu0 0.0
      %2127 = vmatmul.mubr.f32.gmra.mxu0 %v1832
      %v2128 = vpop.f32.mrf.mxu0
      %v2129 = vadd.f32 0.0, %v2128
      %v2130 = vpop.f32.mrf.mxu0
      %v2131 = vadd.f32 0.0, %v2130
      %2132 = vdwg.mxu0
      %v2133 = vadd.f32 %v1987, %v2058
      %v2134 = vadd.f32 %v1988, %v2060
      %v2135 = vadd.f32 %v1989, %v2129
      %v2136 = vadd.f32 %v1990, %v2131
      %v2137 = vxor.u32 %v1981, 2147483648
      %v2138 = vxor.u32 %v1982, 2147483648
      %v2139 = vxor.u32 %v1983, 2147483648
      %v2140 = vmul.f32 %v2137, 1.442695
      %v2141 = vpow.pop %v2140
      %v2142 = vmul.f32 %v2138, 1.442695
      %v2143 = vpow.pop %v2142
      %v2144 = vmul.f32 %v2139, 1.442695
      %v2145 = vpow.pop %v2144
      %v2146 = vadd.f32 %v2141, 1.0
      %v2147 = vadd.f32 %v2143, 1.0
      %v2148 = vadd.f32 %v2145, 1.0
      %v2149 = vrcp.pop %v2146
      %v2150 = vmul.f32 1.0, %v2149
      %v2151 = vrcp.pop %v2147
      %v2152 = vmul.f32 1.0, %v2151
      %v2153 = vrcp.pop %v2148
      %v2154 = vmul.f32 1.0, %v2153
      %v2155 = vtanh.pop %v1984
      %v2156 = vmul.f32 %v2152, %v1806
      %v2157 = vmul.f32 %v2150, %v2155
      %v2158 = vadd.f32 %v2156, %v2157
      %v2159 = vtanh.pop %v2158
      %v2160 = vmul.f32 %v2154, %v2159
      %v2161 = vxor.u32 %v2133, 2147483648
      %v2162 = vxor.u32 %v2134, 2147483648
      %v2163 = vxor.u32 %v2135, 2147483648
      %v2164 = vmul.f32 %v2161, 1.442695
      %v2165 = vpow.pop %v2164
      %v2166 = vmul.f32 %v2162, 1.442695
      %v2167 = vpow.pop %v2166
      %v2168 = vmul.f32 %v2163, 1.442695
      %v2169 = vpow.pop %v2168
      %v2170 = vadd.f32 %v2165, 1.0
      %v2171 = vadd.f32 %v2167, 1.0
      %v2172 = vadd.f32 %v2169, 1.0
      %v2173 = vrcp.pop %v2170
      %v2174 = vmul.f32 1.0, %v2173
      %v2175 = vrcp.pop %v2171
      %v2176 = vmul.f32 1.0, %v2175
      %v2177 = vrcp.pop %v2172
      %v2178 = vmul.f32 1.0, %v2177
      %v2179 = vtanh.pop %v2136
      %v2180 = vmul.f32 %v2176, %v1830
      %v2181 = vmul.f32 %v2174, %v2179
      %v2182 = vadd.f32 %v2180, %v2181
      %v2183 = vtanh.pop %v2182
      %v2184 = vmul.f32 %v2178, %v2183
      %s2185 = smul.addr %s1214, 8
      %s2186 = scalar_lea.vmem [#allocation2], %s2185
      %v2187 = vld [vmem:[%s2186] sm:$0xff]
      %v2188 = vld [vmem:[%s2186 + $0x8] sm:$0xff]
      %v2189 = vld [vmem:[%s2186 + $0x10] sm:$0xff]
      %v2190 = vld [vmem:[%s2186 + $0x18] sm:$0xff]
      %2191 = vmatprep.subr.mxu0 %v1065
      %2192 = vmatpush1.msra.mxu0 %v1064
      %2193 = vmatprep.subr.mxu0 %v1061
      %2194 = vmatpush1.msra.mxu0 %v1060
      %2195 = vmatprep.subr.mxu0 %v1057
      %2196 = vmatpush1.msra.mxu0 %v1056
      %2197 = vmatprep.subr.mxu0 %v1053
      %2198 = vmatpush1.msra.mxu0 %v1052
      %2199 = vmatprep.subr.mxu0 %v1049
      %2200 = vmatpush1.msra.mxu0 %v1048
      %2201 = vmatprep.subr.mxu0 %v1045
      %2202 = vmatpush1.msra.mxu0 %v1044
      %2203 = vmatprep.subr.mxu0 %v1041
      %2204 = vmatpush1.msra.mxu0 %v1040
      %2205 = vmatprep.subr.mxu0 %v1037
      %2206 = vmatpush1.msra.mxu0 %v1036
      %2207 = vmatprep.subr.mxu0 %v1033
      %2208 = vmatpush1.msra.mxu0 %v1032
      %2209 = vmatprep.subr.mxu0 %v1029
      %2210 = vmatpush1.msra.mxu0 %v1028
      %2211 = vmatprep.subr.mxu0 %v1025
      %2212 = vmatpush1.msra.mxu0 %v1024
      %2213 = vmatprep.subr.mxu0 %v1021
      %2214 = vmatpush1.msra.mxu0 %v1020
      %2215 = vmatprep.subr.mxu0 %v1017
      %2216 = vmatpush1.msra.mxu0 %v1016
      %2217 = vmatprep.subr.mxu0 %v1013
      %2218 = vmatpush1.msra.mxu0 %v1012
      %2219 = vmatprep.subr.mxu0 %v1009
      %2220 = vmatpush1.msra.mxu0 %v1008
      %2221 = vmatprep.subr.mxu0 %v1005
      %2222 = vmatpush1.msra.mxu0 %v1004
      %2223 = vmatprep.subr.mxu0 0.0
      %2224 = vmatpush2.msra.mxu0 0.0
      %2225 = vmatprep.subr.mxu0 0.0
      %2226 = vmatpush2.msra.mxu0 0.0
      %2227 = vmatprep.subr.mxu0 0.0
      %2228 = vmatpush2.msra.mxu0 0.0
      %2229 = vmatprep.subr.mxu0 0.0
      %2230 = vmatpush2.msra.mxu0 0.0
      %2231 = vmatprep.subr.mxu0 0.0
      %2232 = vmatpush2.msra.mxu0 0.0
      %2233 = vmatprep.subr.mxu0 0.0
      %2234 = vmatpush2.msra.mxu0 0.0
      %2235 = vmatprep.subr.mxu0 0.0
      %2236 = vmatpush2.msra.mxu0 0.0
      %2237 = vmatprep.subr.mxu0 0.0
      %2238 = vmatpush2.msra.mxu0 0.0
      %2239 = vmatprep.subr.mxu0 0.0
      %2240 = vmatpush2.msra.mxu0 0.0
      %2241 = vmatprep.subr.mxu0 0.0
      %2242 = vmatpush2.msra.mxu0 0.0
      %2243 = vmatprep.subr.mxu0 0.0
      %2244 = vmatpush2.msra.mxu0 0.0
      %2245 = vmatprep.subr.mxu0 0.0
      %2246 = vmatpush2.msra.mxu0 0.0
      %2247 = vmatprep.subr.mxu0 0.0
      %2248 = vmatpush2.msra.mxu0 0.0
      %2249 = vmatprep.subr.mxu0 0.0
      %2250 = vmatpush2.msra.mxu0 0.0
      %2251 = vmatprep.subr.mxu0 0.0
      %2252 = vmatpush2.msra.mxu0 0.0
      %2253 = vmatprep.subr.mxu0 0.0
      %2254 = vmatpush2.msra.mxu0 0.0
      %2255 = vmatprep.mubr.f32.mxu0 0.0
      %2256 = vmatmul.mubr.f32.gmra.mxu0 %v2160
      %v2257 = vpop.f32.mrf.mxu0
      %v2258 = vadd.f32 0.0, %v2257
      %v2259 = vpop.f32.mrf.mxu0
      %v2260 = vadd.f32 0.0, %v2259
      %2261 = vdwg.mxu0
      %2262 = vmatprep.subr.mxu0 %v1067
      %2263 = vmatpush1.msra.mxu0 %v1066
      %2264 = vmatprep.subr.mxu0 %v1063
      %2265 = vmatpush1.msra.mxu0 %v1062
      %2266 = vmatprep.subr.mxu0 %v1059
      %2267 = vmatpush1.msra.mxu0 %v1058
      %2268 = vmatprep.subr.mxu0 %v1055
      %2269 = vmatpush1.msra.mxu0 %v1054
      %2270 = vmatprep.subr.mxu0 %v1051
      %2271 = vmatpush1.msra.mxu0 %v1050
      %2272 = vmatprep.subr.mxu0 %v1047
      %2273 = vmatpush1.msra.mxu0 %v1046
      %2274 = vmatprep.subr.mxu0 %v1043
      %2275 = vmatpush1.msra.mxu0 %v1042
      %2276 = vmatprep.subr.mxu0 %v1039
      %2277 = vmatpush1.msra.mxu0 %v1038
      %2278 = vmatprep.subr.mxu0 %v1035
      %2279 = vmatpush1.msra.mxu0 %v1034
      %2280 = vmatprep.subr.mxu0 %v1031
      %2281 = vmatpush1.msra.mxu0 %v1030
      %2282 = vmatprep.subr.mxu0 %v1027
      %2283 = vmatpush1.msra.mxu0 %v1026
      %2284 = vmatprep.subr.mxu0 %v1023
      %2285 = vmatpush1.msra.mxu0 %v1022
      %2286 = vmatprep.subr.mxu0 %v1019
      %2287 = vmatpush1.msra.mxu0 %v1018
      %2288 = vmatprep.subr.mxu0 %v1015
      %2289 = vmatpush1.msra.mxu0 %v1014
      %2290 = vmatprep.subr.mxu0 %v1011
      %2291 = vmatpush1.msra.mxu0 %v1010
      %2292 = vmatprep.subr.mxu0 %v1007
      %2293 = vmatpush1.msra.mxu0 %v1006
      %2294 = vmatprep.subr.mxu0 0.0
      %2295 = vmatpush2.msra.mxu0 0.0
      %2296 = vmatprep.subr.mxu0 0.0
      %2297 = vmatpush2.msra.mxu0 0.0
      %2298 = vmatprep.subr.mxu0 0.0
      %2299 = vmatpush2.msra.mxu0 0.0
      %2300 = vmatprep.subr.mxu0 0.0
      %2301 = vmatpush2.msra.mxu0 0.0
      %2302 = vmatprep.subr.mxu0 0.0
      %2303 = vmatpush2.msra.mxu0 0.0
      %2304 = vmatprep.subr.mxu0 0.0
      %2305 = vmatpush2.msra.mxu0 0.0
      %2306 = vmatprep.subr.mxu0 0.0
      %2307 = vmatpush2.msra.mxu0 0.0
      %2308 = vmatprep.subr.mxu0 0.0
      %2309 = vmatpush2.msra.mxu0 0.0
      %2310 = vmatprep.subr.mxu0 0.0
      %2311 = vmatpush2.msra.mxu0 0.0
      %2312 = vmatprep.subr.mxu0 0.0
      %2313 = vmatpush2.msra.mxu0 0.0
      %2314 = vmatprep.subr.mxu0 0.0
      %2315 = vmatpush2.msra.mxu0 0.0
      %2316 = vmatprep.subr.mxu0 0.0
      %2317 = vmatpush2.msra.mxu0 0.0
      %2318 = vmatprep.subr.mxu0 0.0
      %2319 = vmatpush2.msra.mxu0 0.0
      %2320 = vmatprep.subr.mxu0 0.0
      %2321 = vmatpush2.msra.mxu0 0.0
      %2322 = vmatprep.subr.mxu0 0.0
      %2323 = vmatpush2.msra.mxu0 0.0
      %2324 = vmatprep.subr.mxu0 0.0
      %2325 = vmatpush2.msra.mxu0 0.0
      %2326 = vmatprep.mubr.f32.mxu0 0.0
      %2327 = vmatmul.mubr.f32.gmra.mxu0 %v2160
      %v2328 = vpop.f32.mrf.mxu0
      %v2329 = vadd.f32 0.0, %v2328
      %v2330 = vpop.f32.mrf.mxu0
      %v2331 = vadd.f32 0.0, %v2330
      %2332 = vdwg.mxu0
      %v2333 = vadd.f32 %v2187, %v2258
      %v2334 = vadd.f32 %v2188, %v2260
      %v2335 = vadd.f32 %v2189, %v2329
      %v2336 = vadd.f32 %v2190, %v2331
      %s2337 = smul.addr %s997, 8
      %s2338 = scalar_lea.vmem [#allocation3], %s2337
      %v2339 = vld [vmem:[%s2338] sm:$0xff]
      %v2340 = vld [vmem:[%s2338 + $0x8] sm:$0xff]
      %v2341 = vld [vmem:[%s2338 + $0x10] sm:$0xff]
      %v2342 = vld [vmem:[%s2338 + $0x18] sm:$0xff]
      %2343 = vmatprep.subr.mxu0 %v1282
      %2344 = vmatpush1.msra.mxu0 %v1281
      %2345 = vmatprep.subr.mxu0 %v1278
      %2346 = vmatpush1.msra.mxu0 %v1277
      %2347 = vmatprep.subr.mxu0 %v1274
      %2348 = vmatpush1.msra.mxu0 %v1273
      %2349 = vmatprep.subr.mxu0 %v1270
      %2350 = vmatpush1.msra.mxu0 %v1269
      %2351 = vmatprep.subr.mxu0 %v1266
      %2352 = vmatpush1.msra.mxu0 %v1265
      %2353 = vmatprep.subr.mxu0 %v1262
      %2354 = vmatpush1.msra.mxu0 %v1261
      %2355 = vmatprep.subr.mxu0 %v1258
      %2356 = vmatpush1.msra.mxu0 %v1257
      %2357 = vmatprep.subr.mxu0 %v1254
      %2358 = vmatpush1.msra.mxu0 %v1253
      %2359 = vmatprep.subr.mxu0 %v1250
      %2360 = vmatpush1.msra.mxu0 %v1249
      %2361 = vmatprep.subr.mxu0 %v1246
      %2362 = vmatpush1.msra.mxu0 %v1245
      %2363 = vmatprep.subr.mxu0 %v1242
      %2364 = vmatpush1.msra.mxu0 %v1241
      %2365 = vmatprep.subr.mxu0 %v1238
      %2366 = vmatpush1.msra.mxu0 %v1237
      %2367 = vmatprep.subr.mxu0 %v1234
      %2368 = vmatpush1.msra.mxu0 %v1233
      %2369 = vmatprep.subr.mxu0 %v1230
      %2370 = vmatpush1.msra.mxu0 %v1229
      %2371 = vmatprep.subr.mxu0 %v1226
      %2372 = vmatpush1.msra.mxu0 %v1225
      %2373 = vmatprep.subr.mxu0 %v1222
      %2374 = vmatpush1.msra.mxu0 %v1221
      %2375 = vmatprep.subr.mxu0 0.0
      %2376 = vmatpush2.msra.mxu0 0.0
      %2377 = vmatprep.subr.mxu0 0.0
      %2378 = vmatpush2.msra.mxu0 0.0
      %2379 = vmatprep.subr.mxu0 0.0
      %2380 = vmatpush2.msra.mxu0 0.0
      %2381 = vmatprep.subr.mxu0 0.0
      %2382 = vmatpush2.msra.mxu0 0.0
      %2383 = vmatprep.subr.mxu0 0.0
      %2384 = vmatpush2.msra.mxu0 0.0
      %2385 = vmatprep.subr.mxu0 0.0
      %2386 = vmatpush2.msra.mxu0 0.0
      %2387 = vmatprep.subr.mxu0 0.0
      %2388 = vmatpush2.msra.mxu0 0.0
      %2389 = vmatprep.subr.mxu0 0.0
      %2390 = vmatpush2.msra.mxu0 0.0
      %2391 = vmatprep.subr.mxu0 0.0
      %2392 = vmatpush2.msra.mxu0 0.0
      %2393 = vmatprep.subr.mxu0 0.0
      %2394 = vmatpush2.msra.mxu0 0.0
      %2395 = vmatprep.subr.mxu0 0.0
      %2396 = vmatpush2.msra.mxu0 0.0
      %2397 = vmatprep.subr.mxu0 0.0
      %2398 = vmatpush2.msra.mxu0 0.0
      %2399 = vmatprep.subr.mxu0 0.0
      %2400 = vmatpush2.msra.mxu0 0.0
      %2401 = vmatprep.subr.mxu0 0.0
      %2402 = vmatpush2.msra.mxu0 0.0
      %2403 = vmatprep.subr.mxu0 0.0
      %2404 = vmatpush2.msra.mxu0 0.0
      %2405 = vmatprep.subr.mxu0 0.0
      %2406 = vmatpush2.msra.mxu0 0.0
      %2407 = vmatprep.mubr.f32.mxu0 0.0
      %2408 = vmatmul.mubr.f32.gmra.mxu0 %v2184
      %v2409 = vpop.f32.mrf.mxu0
      %v2410 = vadd.f32 0.0, %v2409
      %v2411 = vpop.f32.mrf.mxu0
      %v2412 = vadd.f32 0.0, %v2411
      %2413 = vdwg.mxu0
      %2414 = vmatprep.subr.mxu0 %v1284
      %2415 = vmatpush1.msra.mxu0 %v1283
      %2416 = vmatprep.subr.mxu0 %v1280
      %2417 = vmatpush1.msra.mxu0 %v1279
      %2418 = vmatprep.subr.mxu0 %v1276
      %2419 = vmatpush1.msra.mxu0 %v1275
      %2420 = vmatprep.subr.mxu0 %v1272
      %2421 = vmatpush1.msra.mxu0 %v1271
      %2422 = vmatprep.subr.mxu0 %v1268
      %2423 = vmatpush1.msra.mxu0 %v1267
      %2424 = vmatprep.subr.mxu0 %v1264
      %2425 = vmatpush1.msra.mxu0 %v1263
      %2426 = vmatprep.subr.mxu0 %v1260
      %2427 = vmatpush1.msra.mxu0 %v1259
      %2428 = vmatprep.subr.mxu0 %v1256
      %2429 = vmatpush1.msra.mxu0 %v1255
      %2430 = vmatprep.subr.mxu0 %v1252
      %2431 = vmatpush1.msra.mxu0 %v1251
      %2432 = vmatprep.subr.mxu0 %v1248
      %2433 = vmatpush1.msra.mxu0 %v1247
      %2434 = vmatprep.subr.mxu0 %v1244
      %2435 = vmatpush1.msra.mxu0 %v1243
      %2436 = vmatprep.subr.mxu0 %v1240
      %2437 = vmatpush1.msra.mxu0 %v1239
      %2438 = vmatprep.subr.mxu0 %v1236
      %2439 = vmatpush1.msra.mxu0 %v1235
      %2440 = vmatprep.subr.mxu0 %v1232
      %2441 = vmatpush1.msra.mxu0 %v1231
      %2442 = vmatprep.subr.mxu0 %v1228
      %2443 = vmatpush1.msra.mxu0 %v1227
      %2444 = vmatprep.subr.mxu0 %v1224
      %2445 = vmatpush1.msra.mxu0 %v1223
      %2446 = vmatprep.subr.mxu0 0.0
      %2447 = vmatpush2.msra.mxu0 0.0
      %2448 = vmatprep.subr.mxu0 0.0
      %2449 = vmatpush2.msra.mxu0 0.0
      %2450 = vmatprep.subr.mxu0 0.0
      %2451 = vmatpush2.msra.mxu0 0.0
      %2452 = vmatprep.subr.mxu0 0.0
      %2453 = vmatpush2.msra.mxu0 0.0
      %2454 = vmatprep.subr.mxu0 0.0
      %2455 = vmatpush2.msra.mxu0 0.0
      %2456 = vmatprep.subr.mxu0 0.0
      %2457 = vmatpush2.msra.mxu0 0.0
      %2458 = vmatprep.subr.mxu0 0.0
      %2459 = vmatpush2.msra.mxu0 0.0
      %2460 = vmatprep.subr.mxu0 0.0
      %2461 = vmatpush2.msra.mxu0 0.0
      %2462 = vmatprep.subr.mxu0 0.0
      %2463 = vmatpush2.msra.mxu0 0.0
      %2464 = vmatprep.subr.mxu0 0.0
      %2465 = vmatpush2.msra.mxu0 0.0
      %2466 = vmatprep.subr.mxu0 0.0
      %2467 = vmatpush2.msra.mxu0 0.0
      %2468 = vmatprep.subr.mxu0 0.0
      %2469 = vmatpush2.msra.mxu0 0.0
      %2470 = vmatprep.subr.mxu0 0.0
      %2471 = vmatpush2.msra.mxu0 0.0
      %2472 = vmatprep.subr.mxu0 0.0
      %2473 = vmatpush2.msra.mxu0 0.0
      %2474 = vmatprep.subr.mxu0 0.0
      %2475 = vmatpush2.msra.mxu0 0.0
      %2476 = vmatprep.subr.mxu0 0.0
      %2477 = vmatpush2.msra.mxu0 0.0
      %2478 = vmatprep.mubr.f32.mxu0 0.0
      %2479 = vmatmul.mubr.f32.gmra.mxu0 %v2184
      %v2480 = vpop.f32.mrf.mxu0
      %v2481 = vadd.f32 0.0, %v2480
      %v2482 = vpop.f32.mrf.mxu0
      %v2483 = vadd.f32 0.0, %v2482
      %2484 = vdwg.mxu0
      %v2485 = vadd.f32 %v2339, %v2410
      %v2486 = vadd.f32 %v2340, %v2412
      %v2487 = vadd.f32 %v2341, %v2481
      %v2488 = vadd.f32 %v2342, %v2483
      %v2489 = vxor.u32 %v2333, 2147483648
      %v2490 = vxor.u32 %v2334, 2147483648
      %v2491 = vxor.u32 %v2335, 2147483648
      %v2492 = vmul.f32 %v2489, 1.442695
      %v2493 = vpow.pop %v2492
      %v2494 = vmul.f32 %v2490, 1.442695
      %v2495 = vpow.pop %v2494
      %v2496 = vmul.f32 %v2491, 1.442695
      %v2497 = vpow.pop %v2496
      %v2498 = vadd.f32 %v2493, 1.0
      %v2499 = vadd.f32 %v2495, 1.0
      %v2500 = vadd.f32 %v2497, 1.0
      %v2501 = vrcp.pop %v2498
      %v2502 = vmul.f32 1.0, %v2501
      %v2503 = vrcp.pop %v2499
      %v2504 = vmul.f32 1.0, %v2503
      %v2505 = vrcp.pop %v2500
      %v2506 = vmul.f32 1.0, %v2505
      %v2507 = vtanh.pop %v2336
      %v2508 = vmul.f32 %v2504, %v2158
      %v2509 = vmul.f32 %v2502, %v2507
      %v2510 = vadd.f32 %v2508, %v2509
      %v2511 = vtanh.pop %v2510
      %v2512 = vmul.f32 %v2506, %v2511
      %v2513 = vxor.u32 %v2485, 2147483648
      %v2514 = vxor.u32 %v2486, 2147483648
      %v2515 = vxor.u32 %v2487, 2147483648
      %v2516 = vmul.f32 %v2513, 1.442695
      %v2517 = vpow.pop %v2516
      %v2518 = vmul.f32 %v2514, 1.442695
      %v2519 = vpow.pop %v2518
      %v2520 = vmul.f32 %v2515, 1.442695
      %v2521 = vpow.pop %v2520
      %v2522 = vadd.f32 %v2517, 1.0
      %v2523 = vadd.f32 %v2519, 1.0
      %v2524 = vadd.f32 %v2521, 1.0
      %v2525 = vrcp.pop %v2522
      %v2526 = vmul.f32 1.0, %v2525
      %v2527 = vrcp.pop %v2523
      %v2528 = vmul.f32 1.0, %v2527
      %v2529 = vrcp.pop %v2524
      %v2530 = vmul.f32 1.0, %v2529
      %v2531 = vtanh.pop %v2488
      %v2532 = vmul.f32 %v2528, %v2182
      %v2533 = vmul.f32 %v2526, %v2531
      %v2534 = vadd.f32 %v2532, %v2533
      %v2535 = vtanh.pop %v2534
      %v2536 = vmul.f32 %v2530, %v2535
      %2537 = vst [vmem:[#allocation4] sm:$0xff] %v2512
      %2538 = vst [vmem:[#allocation5] sm:$0xff] %v2510
      %2539 = vst [vmem:[#allocation6] sm:$0xff] %v2536
      %2540 = vst [vmem:[#allocation7] sm:$0xff] %v2534
      %p2541 = scmp.eq.s32.totalorder %s31, 1
      // Predicated region
      $region77: #{lstm_discriminator.1} parent=71 // pred_check
        %p2542 = pneg %p2541
      $region78: #{lstm_discriminator.1} parent=71 // pred_check_branch
        %2544 = sbr.rel (%p2542) target = $region80
      $region79: #{lstm_discriminator.1} parent=71 // pred_region
        %v2545 = vld [vmem:[%s8] sm:$0xff]
        %v2546 = vld [vmem:[%s8 + $0x8] sm:$0xff]
        %v2547 = vld [vmem:[%s8 + $0x10] sm:$0xff]
        %v2548 = vld [vmem:[%s8 + $0x18] sm:$0xff]
        %v2549 = vld [vmem:[%s8 + $0x20] sm:$0xff]
        %v2550 = vld [vmem:[%s8 + $0x28] sm:$0xff]
        %v2551 = vld [vmem:[%s8 + $0x30] sm:$0xff]
        %v2552 = vld [vmem:[%s8 + $0x38] sm:$0xff]
        %v2553 = vld [vmem:[%s8 + $0x40] sm:$0xff]
        %v2554 = vld [vmem:[%s8 + $0x48] sm:$0xff]
        %v2555 = vld [vmem:[%s8 + $0x50] sm:$0xff]
        %v2556 = vld [vmem:[%s8 + $0x58] sm:$0xff]
        %v2557 = vld [vmem:[%s8 + $0x60] sm:$0xff]
        %v2558 = vld [vmem:[%s8 + $0x68] sm:$0xff]
        %v2559 = vld [vmem:[%s8 + $0x70] sm:$0xff]
        %v2560 = vld [vmem:[%s8 + $0x78] sm:$0xff]
        %v2561 = vld [vmem:[%s8 + $0x80] sm:$0xff]
        %v2562 = vld [vmem:[%s8 + $0x88] sm:$0xff]
        %v2563 = vld [vmem:[%s8 + $0x90] sm:$0xff]
        %v2564 = vld [vmem:[%s8 + $0x98] sm:$0xff]
        %v2565 = vld [vmem:[%s8 + $0xa0] sm:$0xff]
        %v2566 = vld [vmem:[%s8 + $0xa8] sm:$0xff]
        %v2567 = vld [vmem:[%s8 + $0xb0] sm:$0xff]
        %v2568 = vld [vmem:[%s8 + $0xb8] sm:$0xff]
        %v2569 = vld [vmem:[%s8 + $0xc0] sm:$0xff]
        %v2570 = vld [vmem:[%s8 + $0xc8] sm:$0xff]
        %v2571 = vld [vmem:[%s8 + $0xd0] sm:$0xff]
        %v2572 = vld [vmem:[%s8 + $0xd8] sm:$0xff]
        %v2573 = vld [vmem:[%s8 + $0xe0] sm:$0xff]
        %v2574 = vld [vmem:[%s8 + $0xe8] sm:$0xff]
        %v2575 = vld [vmem:[%s8 + $0xf0] sm:$0xff]
        %v2576 = vld [vmem:[%s8 + $0xf8] sm:$0xff]
        %v2577 = vld [vmem:[%s9] sm:$0xff]
        %v2578 = vld [vmem:[%s9 + $0x8] sm:$0xff]
        %v2579 = vld [vmem:[%s9 + $0x10] sm:$0xff]
        %v2580 = vld [vmem:[%s9 + $0x18] sm:$0xff]
        %v2581 = vld [vmem:[%s9 + $0x20] sm:$0xff]
        %v2582 = vld [vmem:[%s9 + $0x28] sm:$0xff]
        %v2583 = vld [vmem:[%s9 + $0x30] sm:$0xff]
        %v2584 = vld [vmem:[%s9 + $0x38] sm:$0xff]
        %v2585 = vld [vmem:[%s9 + $0x40] sm:$0xff]
        %v2586 = vld [vmem:[%s9 + $0x48] sm:$0xff]
        %v2587 = vld [vmem:[%s9 + $0x50] sm:$0xff]
        %v2588 = vld [vmem:[%s9 + $0x58] sm:$0xff]
        %v2589 = vld [vmem:[%s9 + $0x60] sm:$0xff]
        %v2590 = vld [vmem:[%s9 + $0x68] sm:$0xff]
        %v2591 = vld [vmem:[%s9 + $0x70] sm:$0xff]
        %v2592 = vld [vmem:[%s9 + $0x78] sm:$0xff]
        %v2593 = vld [vmem:[%s9 + $0x80] sm:$0xff]
        %v2594 = vld [vmem:[%s9 + $0x88] sm:$0xff]
        %v2595 = vld [vmem:[%s9 + $0x90] sm:$0xff]
        %v2596 = vld [vmem:[%s9 + $0x98] sm:$0xff]
        %v2597 = vld [vmem:[%s9 + $0xa0] sm:$0xff]
        %v2598 = vld [vmem:[%s9 + $0xa8] sm:$0xff]
        %v2599 = vld [vmem:[%s9 + $0xb0] sm:$0xff]
        %v2600 = vld [vmem:[%s9 + $0xb8] sm:$0xff]
        %v2601 = vld [vmem:[%s9 + $0xc0] sm:$0xff]
        %v2602 = vld [vmem:[%s9 + $0xc8] sm:$0xff]
        %v2603 = vld [vmem:[%s9 + $0xd0] sm:$0xff]
        %v2604 = vld [vmem:[%s9 + $0xd8] sm:$0xff]
        %v2605 = vld [vmem:[%s9 + $0xe0] sm:$0xff]
        %v2606 = vld [vmem:[%s9 + $0xe8] sm:$0xff]
        %v2607 = vld [vmem:[%s9 + $0xf0] sm:$0xff]
        %v2608 = vld [vmem:[%s9 + $0xf8] sm:$0xff]
        %2609 = vmatprep.subr.mxu0 %v2608
        %2610 = vmatpush1.msra.mxu0 %v2607
        %2611 = vmatprep.subr.mxu0 %v2606
        %2612 = vmatpush1.msra.mxu0 %v2605
        %2613 = vmatprep.subr.mxu0 %v2604
        %2614 = vmatpush1.msra.mxu0 %v2603
        %2615 = vmatprep.subr.mxu0 %v2602
        %2616 = vmatpush1.msra.mxu0 %v2601
        %2617 = vmatprep.subr.mxu0 %v2600
        %2618 = vmatpush1.msra.mxu0 %v2599
        %2619 = vmatprep.subr.mxu0 %v2598
        %2620 = vmatpush1.msra.mxu0 %v2597
        %2621 = vmatprep.subr.mxu0 %v2596
        %2622 = vmatpush1.msra.mxu0 %v2595
        %2623 = vmatprep.subr.mxu0 %v2594
        %2624 = vmatpush1.msra.mxu0 %v2593
        %2625 = vmatprep.subr.mxu0 %v2592
        %2626 = vmatpush1.msra.mxu0 %v2591
        %2627 = vmatprep.subr.mxu0 %v2590
        %2628 = vmatpush1.msra.mxu0 %v2589
        %2629 = vmatprep.subr.mxu0 %v2588
        %2630 = vmatpush1.msra.mxu0 %v2587
        %2631 = vmatprep.subr.mxu0 %v2586
        %2632 = vmatpush1.msra.mxu0 %v2585
        %2633 = vmatprep.subr.mxu0 %v2584
        %2634 = vmatpush1.msra.mxu0 %v2583
        %2635 = vmatprep.subr.mxu0 %v2582
        %2636 = vmatpush1.msra.mxu0 %v2581
        %2637 = vmatprep.subr.mxu0 %v2580
        %2638 = vmatpush1.msra.mxu0 %v2579
        %2639 = vmatprep.subr.mxu0 %v2578
        %2640 = vmatpush1.msra.mxu0 %v2577
        %2641 = vmatprep.subr.mxu0 0.0
        %2642 = vmatpush2.msra.mxu0 0.0
        %2643 = vmatprep.subr.mxu0 0.0
        %2644 = vmatpush2.msra.mxu0 0.0
        %2645 = vmatprep.subr.mxu0 0.0
        %2646 = vmatpush2.msra.mxu0 0.0
        %2647 = vmatprep.subr.mxu0 0.0
        %2648 = vmatpush2.msra.mxu0 0.0
        %2649 = vmatprep.subr.mxu0 0.0
        %2650 = vmatpush2.msra.mxu0 0.0
        %2651 = vmatprep.subr.mxu0 0.0
        %2652 = vmatpush2.msra.mxu0 0.0
        %2653 = vmatprep.subr.mxu0 0.0
        %2654 = vmatpush2.msra.mxu0 0.0
        %2655 = vmatprep.subr.mxu0 0.0
        %2656 = vmatpush2.msra.mxu0 0.0
        %2657 = vmatprep.subr.mxu0 0.0
        %2658 = vmatpush2.msra.mxu0 0.0
        %2659 = vmatprep.subr.mxu0 0.0
        %2660 = vmatpush2.msra.mxu0 0.0
        %2661 = vmatprep.subr.mxu0 0.0
        %2662 = vmatpush2.msra.mxu0 0.0
        %2663 = vmatprep.subr.mxu0 0.0
        %2664 = vmatpush2.msra.mxu0 0.0
        %2665 = vmatprep.subr.mxu0 0.0
        %2666 = vmatpush2.msra.mxu0 0.0
        %2667 = vmatprep.subr.mxu0 0.0
        %2668 = vmatpush2.msra.mxu0 0.0
        %2669 = vmatprep.subr.mxu0 0.0
        %2670 = vmatpush2.msra.mxu0 0.0
        %2671 = vmatprep.subr.mxu0 0.0
        %2672 = vmatpush2.msra.mxu0 0.0
        %2673 = vmatprep.mubr.f32.mxu0 0.0
        %2674 = vmatmul.mubr.f32.gmra.mxu0 %v2536
        %v2675 = vpop.f32.mrf.mxu0
        %v2676 = vadd.f32 0.0, %v2675
        %v2677 = vpop.f32.mrf.mxu0
        %v2678 = vadd.f32 0.0, %v2677
        %2679 = vdwg.mxu0
        %2680 = vmatprep.subr.mxu0 %v2576
        %2681 = vmatpush1.msra.mxu0 %v2575
        %2682 = vmatprep.subr.mxu0 %v2574
        %2683 = vmatpush1.msra.mxu0 %v2573
        %2684 = vmatprep.subr.mxu0 %v2572
        %2685 = vmatpush1.msra.mxu0 %v2571
        %2686 = vmatprep.subr.mxu0 %v2570
        %2687 = vmatpush1.msra.mxu0 %v2569
        %2688 = vmatprep.subr.mxu0 %v2568
        %2689 = vmatpush1.msra.mxu0 %v2567
        %2690 = vmatprep.subr.mxu0 %v2566
        %2691 = vmatpush1.msra.mxu0 %v2565
        %2692 = vmatprep.subr.mxu0 %v2564
        %2693 = vmatpush1.msra.mxu0 %v2563
        %2694 = vmatprep.subr.mxu0 %v2562
        %2695 = vmatpush1.msra.mxu0 %v2561
        %2696 = vmatprep.subr.mxu0 %v2560
        %2697 = vmatpush1.msra.mxu0 %v2559
        %2698 = vmatprep.subr.mxu0 %v2558
        %2699 = vmatpush1.msra.mxu0 %v2557
        %2700 = vmatprep.subr.mxu0 %v2556
        %2701 = vmatpush1.msra.mxu0 %v2555
        %2702 = vmatprep.subr.mxu0 %v2554
        %2703 = vmatpush1.msra.mxu0 %v2553
        %2704 = vmatprep.subr.mxu0 %v2552
        %2705 = vmatpush1.msra.mxu0 %v2551
        %2706 = vmatprep.subr.mxu0 %v2550
        %2707 = vmatpush1.msra.mxu0 %v2549
        %2708 = vmatprep.subr.mxu0 %v2548
        %2709 = vmatpush1.msra.mxu0 %v2547
        %2710 = vmatprep.subr.mxu0 %v2546
        %2711 = vmatpush1.msra.mxu0 %v2545
        %2712 = vmatprep.subr.mxu0 0.0
        %2713 = vmatpush2.msra.mxu0 0.0
        %2714 = vmatprep.subr.mxu0 0.0
        %2715 = vmatpush2.msra.mxu0 0.0
        %2716 = vmatprep.subr.mxu0 0.0
        %2717 = vmatpush2.msra.mxu0 0.0
        %2718 = vmatprep.subr.mxu0 0.0
        %2719 = vmatpush2.msra.mxu0 0.0
        %2720 = vmatprep.subr.mxu0 0.0
        %2721 = vmatpush2.msra.mxu0 0.0
        %2722 = vmatprep.subr.mxu0 0.0
        %2723 = vmatpush2.msra.mxu0 0.0
        %2724 = vmatprep.subr.mxu0 0.0
        %2725 = vmatpush2.msra.mxu0 0.0
        %2726 = vmatprep.subr.mxu0 0.0
        %2727 = vmatpush2.msra.mxu0 0.0
        %2728 = vmatprep.subr.mxu0 0.0
        %2729 = vmatpush2.msra.mxu0 0.0
        %2730 = vmatprep.subr.mxu0 0.0
        %2731 = vmatpush2.msra.mxu0 0.0
        %2732 = vmatprep.subr.mxu0 0.0
        %2733 = vmatpush2.msra.mxu0 0.0
        %2734 = vmatprep.subr.mxu0 0.0
        %2735 = vmatpush2.msra.mxu0 0.0
        %2736 = vmatprep.subr.mxu0 0.0
        %2737 = vmatpush2.msra.mxu0 0.0
        %2738 = vmatprep.subr.mxu0 0.0
        %2739 = vmatpush2.msra.mxu0 0.0
        %2740 = vmatprep.subr.mxu0 0.0
        %2741 = vmatpush2.msra.mxu0 0.0
        %2742 = vmatprep.subr.mxu0 0.0
        %2743 = vmatpush2.msra.mxu0 0.0
        %2744 = vmatprep.mubr.f32.mxu0 0.0
        %2745 = vmatmul.mubr.f32.gmra.mxu0 %v2512
        %v2746 = vpop.f32.mrf.mxu0
        %v2747 = vadd.f32 %v2676, %v2746
        %v2748 = vpop.f32.mrf.mxu0
        %v2749 = vadd.f32 %v2678, %v2748
        %2750 = vdwg.mxu0
        %v2751 = vld [vmem:[%s10] sm:$0x3]
        %v2753 = vlaneseq
        %v2754 = vshrl.u32 %v2753, 7
        %v2755 = vsub.s32 0, %v2754
        %v2756 = vrot.slane %v2751, %v2755
        %v2757 = vlaneseq
        %v2758 = vshrl.u32 %v2757, 7
        %v2759 = vsub.s32 1, %v2758
        %v2760 = vrot.slane %v2751, %v2759
        %v2763 = vadd.f32 %v2747, %v2756
        %v2764 = vadd.f32 %v2749, %v2760
        %v2765 = vmax.f32 %v2763, 0.0
        %v2766 = vmax.f32 %v2764, 0.0
        %v2767 = vld [vmem:[%s11] sm:$0xff]
        %v2768 = vld [vmem:[%s11 + $0x8] sm:$0xff]
        %v2769 = vld [vmem:[%s11 + $0x10] sm:$0xff]
        %v2770 = vld [vmem:[%s11 + $0x18] sm:$0xff]
        %v2771 = vld [vmem:[%s11 + $0x20] sm:$0xff]
        %v2772 = vld [vmem:[%s11 + $0x28] sm:$0xff]
        %v2773 = vld [vmem:[%s11 + $0x30] sm:$0xff]
        %v2774 = vld [vmem:[%s11 + $0x38] sm:$0xff]
        %v2775 = vld [vmem:[%s11 + $0x40] sm:$0xff]
        %v2776 = vld [vmem:[%s11 + $0x48] sm:$0xff]
        %v2777 = vld [vmem:[%s11 + $0x50] sm:$0xff]
        %v2778 = vld [vmem:[%s11 + $0x58] sm:$0xff]
        %v2779 = vld [vmem:[%s11 + $0x60] sm:$0xff]
        %v2780 = vld [vmem:[%s11 + $0x68] sm:$0xff]
        %v2781 = vld [vmem:[%s11 + $0x70] sm:$0xff]
        %v2782 = vld [vmem:[%s11 + $0x78] sm:$0xff]
        %v2783 = vld [vmem:[%s11 + $0x80] sm:$0xff]
        %v2784 = vld [vmem:[%s11 + $0x88] sm:$0xff]
        %v2785 = vld [vmem:[%s11 + $0x90] sm:$0xff]
        %v2786 = vld [vmem:[%s11 + $0x98] sm:$0xff]
        %v2787 = vld [vmem:[%s11 + $0xa0] sm:$0xff]
        %v2788 = vld [vmem:[%s11 + $0xa8] sm:$0xff]
        %v2789 = vld [vmem:[%s11 + $0xb0] sm:$0xff]
        %v2790 = vld [vmem:[%s11 + $0xb8] sm:$0xff]
        %v2791 = vld [vmem:[%s11 + $0xc0] sm:$0xff]
        %v2792 = vld [vmem:[%s11 + $0xc8] sm:$0xff]
        %v2793 = vld [vmem:[%s11 + $0xd0] sm:$0xff]
        %v2794 = vld [vmem:[%s11 + $0xd8] sm:$0xff]
        %v2795 = vld [vmem:[%s11 + $0xe0] sm:$0xff]
        %v2796 = vld [vmem:[%s11 + $0xe8] sm:$0xff]
        %v2797 = vld [vmem:[%s11 + $0xf0] sm:$0xff]
        %v2798 = vld [vmem:[%s11 + $0xf8] sm:$0xff]
        %v2799 = vld [vmem:[#allocation8] sm:$0x1]
        %v2801 = vlaneseq
        %v2802 = vshrl.u32 %v2801, 7
        %v2803 = vsub.s32 0, %v2802
        %v2804 = vrot.slane %v2799, %v2803
        %2806 = vmatprep.subr.mxu0 0.0
        %2807 = vmatpush1.msra.mxu0 %v2782
        %2808 = vmatprep.subr.mxu0 0.0
        %2809 = vmatpush1.msra.mxu0 %v2781
        %2810 = vmatprep.subr.mxu0 0.0
        %2811 = vmatpush1.msra.mxu0 %v2780
        %2812 = vmatprep.subr.mxu0 0.0
        %2813 = vmatpush1.msra.mxu0 %v2779
        %2814 = vmatprep.subr.mxu0 0.0
        %2815 = vmatpush1.msra.mxu0 %v2778
        %2816 = vmatprep.subr.mxu0 0.0
        %2817 = vmatpush1.msra.mxu0 %v2777
        %2818 = vmatprep.subr.mxu0 0.0
        %2819 = vmatpush1.msra.mxu0 %v2776
        %2820 = vmatprep.subr.mxu0 0.0
        %2821 = vmatpush1.msra.mxu0 %v2775
        %2822 = vmatprep.subr.mxu0 0.0
        %2823 = vmatpush1.msra.mxu0 %v2774
        %2824 = vmatprep.subr.mxu0 0.0
        %2825 = vmatpush1.msra.mxu0 %v2773
        %2826 = vmatprep.subr.mxu0 0.0
        %2827 = vmatpush1.msra.mxu0 %v2772
        %2828 = vmatprep.subr.mxu0 0.0
        %2829 = vmatpush1.msra.mxu0 %v2771
        %2830 = vmatprep.subr.mxu0 0.0
        %2831 = vmatpush1.msra.mxu0 %v2770
        %2832 = vmatprep.subr.mxu0 0.0
        %2833 = vmatpush1.msra.mxu0 %v2769
        %2834 = vmatprep.subr.mxu0 0.0
        %2835 = vmatpush1.msra.mxu0 %v2768
        %2836 = vmatprep.subr.mxu0 0.0
        %2837 = vmatpush1.msra.mxu0 %v2767
        %2838 = vmatprep.subr.mxu0 0.0
        %2839 = vmatpush2.msra.mxu0 %v2798
        %2840 = vmatprep.subr.mxu0 0.0
        %2841 = vmatpush2.msra.mxu0 %v2797
        %2842 = vmatprep.subr.mxu0 0.0
        %2843 = vmatpush2.msra.mxu0 %v2796
        %2844 = vmatprep.subr.mxu0 0.0
        %2845 = vmatpush2.msra.mxu0 %v2795
        %2846 = vmatprep.subr.mxu0 0.0
        %2847 = vmatpush2.msra.mxu0 %v2794
        %2848 = vmatprep.subr.mxu0 0.0
        %2849 = vmatpush2.msra.mxu0 %v2793
        %2850 = vmatprep.subr.mxu0 0.0
        %2851 = vmatpush2.msra.mxu0 %v2792
        %2852 = vmatprep.subr.mxu0 0.0
        %2853 = vmatpush2.msra.mxu0 %v2791
        %2854 = vmatprep.subr.mxu0 0.0
        %2855 = vmatpush2.msra.mxu0 %v2790
        %2856 = vmatprep.subr.mxu0 0.0
        %2857 = vmatpush2.msra.mxu0 %v2789
        %2858 = vmatprep.subr.mxu0 0.0
        %2859 = vmatpush2.msra.mxu0 %v2788
        %2860 = vmatprep.subr.mxu0 0.0
        %2861 = vmatpush2.msra.mxu0 %v2787
        %2862 = vmatprep.subr.mxu0 0.0
        %2863 = vmatpush2.msra.mxu0 %v2786
        %2864 = vmatprep.subr.mxu0 0.0
        %2865 = vmatpush2.msra.mxu0 %v2785
        %2866 = vmatprep.subr.mxu0 0.0
        %2867 = vmatpush2.msra.mxu0 %v2784
        %2868 = vmatprep.subr.mxu0 0.0
        %2869 = vmatpush2.msra.mxu0 %v2783
        %2870 = vmatprep.mubr.f32.mxu0 %v2766
        %2871 = vmatmul.mubr.f32.gmra.mxu0 %v2765
        %v2872 = vpop.f32.mrf.mxu0
        %v2873 = vadd.f32 %v2804, %v2872
        %v2874 = vpop.f32.mrf.mxu0
        %2875 = vdwg.mxu0
        %v2876 = vxor.u32 %v2873, 2147483648
        %v2877 = vmul.f32 %v2876, 1.442695
        %v2878 = vpow.pop %v2877
        %v2879 = vadd.f32 %v2878, 1.0
        %v2880 = vrcp.pop %v2879
        %v2881 = vmul.f32 1.0, %v2880
        %vm2882 = vcmask 7168
        %2883 = vst.msk [vmem:[%s511] sm:$0xff] %vm2882, %v2881
      $region80: #{lstm_discriminator.1} parent=71 // pred_fallthru
        _
      %p2884 = scmp.lt.s32.totalorder %s30, 0
      %s2885 = scalar_select %p2884, %s30, 0
      %s2886 = smul.addr %s2885, 8
      %s2887 = scalar_lea.vmem %s13, %s2886
      // Predicated region
      $region81: #{lstm_discriminator.1} parent=71 // pred_check
        %p2888 = pneg %p345
      $region82: #{lstm_discriminator.1} parent=71 // pred_check_branch
        %2890 = sbr.rel (%p2888) target = $region84
      $region83: #{lstm_discriminator.1} parent=71 // pred_region
        _
      $region84: #{lstm_discriminator.1} parent=71 // pred_fallthru
        _
      // Predicated region
      $region85: #{lstm_discriminator.1} parent=71 // pred_check
        %p2891 = pneg %p345
      $region86: #{lstm_discriminator.1} parent=71 // pred_check_branch
        %2893 = sbr.rel (%p2891) target = $region88
      $region87: #{lstm_discriminator.1} parent=71 // pred_region
        %p2894 = scmp.lt.s32.totalorder %s30, 0
        %s2895 = scalar_select %p2894, %s30, 0
        %s2896 = smul.addr %s2895, 8
        %s2897 = scalar_lea.vmem %s13, %s2896
      $region88: #{lstm_discriminator.1} parent=71 // pred_fallthru
        _
    $region72: #{lstm_discriminator.1} parent=5 // pred_fallthru
      _
    %p2898 = scmp.le.s32.totalorder 2, %s21
    // Predicated region
    $region89: #{lstm_discriminator.1} parent=5 // pred_check
      %p2899 = pneg %p2898
    $region90: #{lstm_discriminator.1} parent=5 // pred_check_branch
      %2901 = sbr.rel (%p2899) target = $region92
    $region91: #{lstm_discriminator.1} parent=5 // pred_region
      %s2902 = ssub.s32 %s21, 2
    $region92: #{lstm_discriminator.1} parent=5 // pred_fallthru
      _
  $region6: #{lstm_discriminator.1} parent=0 // loop_footer
    %s25 = sadd.s32 1, %s21
  $region7: #{lstm_discriminator.1} parent=0 // loop_footer_branch
    %20 = sbr.rel target = $region3
  $region8: #{lstm_discriminator.1} parent=0 // loop_exit
    _

</llo_original>
